<compile_context>
chip_gen: v6e
topology: v6e:2x2x1
jax: 0.10.0
libtpu: 0.0.40
codegen_flags: <defaults>
</compile_context>

<pallas_src>
import functools

import jax
import jax.numpy as jnp
from jax import lax
from jax.experimental import pallas as pl
from jax.experimental.pallas import tpu as pltpu


# ------------------------- fused conv3d + bias + FRN + TLU kernel ------------------------- #

def _fused_conv_frn_tlu_kernel(xe_ref, wf_ref, par_ref, o_ref, *,
                               depth, hw, rows_per_d, eps):
    """One grid step == one sample.

    xe_ref : (1, Dp*rows_per_d, hw) bf16   pre-shifted padded volume, rows = (dp, kh, kw, ci)
    wf_ref : (Cout, 3*rows_per_d)   bf16   folded weights, rows = (kd, kh, kw, ci) (zero-padded)
    par_ref: (Cout, 4)              f32    packed [bias, gamma, beta, tau]
    o_ref  : (1, Cout, depth*hw)    f32    final output block (lane-dense, multiple of 128)
    """
    wf = wf_ref[...]                          # (Cout, 3*rows_per_d) bf16, resident
    bias = par_ref[:, 0:1]                    # (Cout, 1) f32
    cout = par_ref.shape[0]

    # ---- pass 1: conv + bias, one K-folded MXU matmul per output depth slice ----
    # Accumulate per-channel sum(y^2) on the fly for FRN (divisor is exactly depth*hw,
    # the layout has no garbage columns).
    ssq = jnp.zeros((cout, 1), jnp.float32)
    for d in range(depth):                                            # static unroll (D small)
        # rows [d*rows_per_d, (d+3)*rows_per_d) = taps (kd, kh, kw, ci) for output depth d;
        # start/size are multiples of 16 -> aligned bf16 sublane window, no relayout.
        xs = xe_ref[0, pl.ds(d * rows_per_d, 3 * rows_per_d), :]      # (3R, hw) bf16
        y = jnp.dot(wf, xs, preferred_element_type=jnp.float32)       # (Cout, hw) f32 on MXU
        y = y + bias                                                  # f32 epilogue
        o_ref[0, :, pl.ds(d * hw, hw)] = y                            # lane offset d*hw (aligned)
        ssq = ssq + jnp.sum(y * y, axis=1, keepdims=True)

    # ---- pass 2: FRN normalize + TLU, chunked per depth slice (low vreg pressure) ----
    nu2 = ssq * (1.0 / float(depth * hw))                             # mean over D*H*W
    gamma = par_ref[:, 1:2]
    beta = par_ref[:, 2:3]
    tau = par_ref[:, 3:4]
    scale = gamma * lax.rsqrt(nu2 + eps)                              # gamma * rsqrt(nu2+|eps|)
    for d in range(depth):
        yb = o_ref[0, :, pl.ds(d * hw, hw)]                           # re-read own VMEM block
        o_ref[0, :, pl.ds(d * hw, hw)] = jnp.maximum(scale * yb + beta, tau)


# ------------------------------------------ wrapper ------------------------------------------ #

def conv3d_frn_tlu(x, w, b, gamma, beta, tau, *, eps=1e-6,
                   compute_dtype=jnp.bfloat16):
    """Forward pass of conv3d_FRN_TLU.  x: (N, Cin, D, H, W) f32 (NCDHW)."""
    N, Cin, D, H, W = x.shape
    Cout = w.shape[0]
    Dp = D + 2
    HW = H * W
    R = 9 * Cin                                   # real rows per padded depth: (kh, kw, ci)
    R_pad = ((R + 15) // 16) * 16                 # align row groups to bf16 packed vregs
    KF = 3 * R_pad                                # folded contraction length (<= 256 here)

    # ---- input prep: one small XLA fusion.  Pad (D, H, W) by 1, pre-shift the 9 in-plane
    #      taps, flatten spatial to a compact lane axis of H*W (no garbage columns). ----
    xt = jnp.transpose(x, (0, 2, 1, 3, 4))                          # (N, D, Cin, H, W)
    xp = jnp.pad(xt, ((0, 0), (1, 1), (0, 0), (1, 1), (1, 1)))      # (N, Dp, Cin, Hp, Wp)
    shifts = [xp[:, :, :, kh:kh + H, kw:kw + W]                     # (N, Dp, Cin, H, W) each
              for kh in range(3) for kw in range(3)]
    xe = jnp.stack(shifts, axis=2)                                  # (N, Dp, 9, Cin, H, W)
    xe = xe.reshape(N, Dp, R, HW)                                   # rows (kh*3+kw)*Cin + ci
    xe = jnp.pad(xe, ((0, 0), (0, 0), (0, R_pad - R), (0, 0)))      # zero dummy rows
    xe = xe.reshape(N, Dp * R_pad, HW).astype(compute_dtype)        # bf16 HBM stream

    # ---- folded weights: rows ordered (kd, kh, kw, ci), dummy rows zero (PyTorch Conv3d
    #      is cross-correlation, so no kernel flip). ----
    wf = jnp.transpose(w, (0, 2, 3, 4, 1)).reshape(Cout, 3, R)      # (Cout, kd, (kh,kw,ci))
    wf = jnp.pad(wf, ((0, 0), (0, 0), (0, R_pad - R)))
    wf = wf.reshape(Cout, KF).astype(compute_dtype)

    # ---- packed per-channel params: one small block instead of four 1-lane blocks ----
    params = jnp.stack([b, gamma, beta, tau], axis=1).astype(jnp.float32)   # (Cout, 4)

    kernel = functools.partial(_fused_conv_frn_tlu_kernel,
                               depth=D, hw=HW, rows_per_d=R_pad,
                               eps=abs(float(eps)))

    out = pl.pallas_call(
        kernel,
        out_shape=jax.ShapeDtypeStruct((N, Cout, D * HW), jnp.float32),
        grid=(N,),
        in_specs=[
            pl.BlockSpec((1, Dp * R_pad, HW), lambda n: (n, 0, 0)),   # whole sample resident
            pl.BlockSpec((Cout, KF), lambda n: (0, 0)),               # folded weights
            pl.BlockSpec((Cout, 4), lambda n: (0, 0)),                # packed params
        ],
        out_specs=pl.BlockSpec((1, Cout, D * HW), lambda n: (n, 0, 0)),
        compiler_params=pltpu.CompilerParams(
            dimension_semantics=("parallel",)),                      # 2 samples -> 2 v7x TCs
    )(xe, wf, params)

    # free metadata reshape (last dim split only, no copy / no XLA slice)
    return out.reshape(N, Cout, D, H, W)


# ----------------------------------------- reference ----------------------------------------- #

def conv3d_frn_tlu_reference(x, w, b, gamma, beta, tau, eps=1e-6):
    """Pure-JAX reference: Conv3d(k=3, p=1) + FRN + TLU."""
    y = lax.conv_general_dilated(
        x, w, window_strides=(1, 1, 1), padding=((1, 1), (1, 1), (1, 1)),
        dimension_numbers=("NCDHW", "OIDHW", "NCDHW"),
        precision=lax.Precision.HIGHEST)
    y = y + b[None, :, None, None, None]
    nu2 = jnp.mean(y * y, axis=(2, 3, 4), keepdims=True)
    y = y * lax.rsqrt(nu2 + abs(eps))
    y = gamma[None, :, None, None, None] * y + beta[None, :, None, None, None]
    return jnp.maximum(y, tau[None, :, None, None, None])


if __name__ == "__main__":
    # small shapes consistent with the module: batch=2, in_ch=4, out_ch=8, 16^3 volume
    N, Cin, Cout, D, H, W = 2, 4, 8, 16, 16, 16

    key = jax.random.PRNGKey(0)
    kx, kw, kb, kg, kbe, kt = jax.random.split(key, 6)
    x = jax.random.normal(kx, (N, Cin, D, H, W), dtype=jnp.float32)
    w = jax.random.normal(kw, (Cout, Cin, 3, 3, 3), dtype=jnp.float32) * 0.1
    b = jax.random.normal(kb, (Cout,), dtype=jnp.float32) * 0.1
    gamma = 1.0 + 0.1 * jax.random.normal(kg, (Cout,), dtype=jnp.float32)
    beta = 0.1 * jax.random.normal(kbe, (Cout,), dtype=jnp.float32)
    tau = 0.1 * jax.random.normal(kt, (Cout,), dtype=jnp.float32)

    fwd = jax.jit(conv3d_frn_tlu)
    y = jax.block_until_ready(fwd(x, w, b, gamma, beta, tau))
    assert y.shape == (N, Cout, D, H, W), y.shape

    # Reference at matched input precision: the kernel feeds the MXU bf16 operands with
    # f32 accumulation, so round x/w to bf16 for the f32 reference to isolate kernel bugs.
    rb = lambda a: a.astype(jnp.bfloat16).astype(jnp.float32)
    y_ref = jax.block_until_ready(
        conv3d_frn_tlu_reference(rb(x), rb(w), b, gamma, beta, tau))

    err = float(jnp.max(jnp.abs(y - y_ref)))
    assert jnp.allclose(y, y_ref, rtol=2e-3, atol=2e-3), err
    print("KERNEL_OK")
</pallas_src>

<mosaic_0001>
module attributes {stable_mosaic.version = 11 : i64} {
  func.func @_fused_conv_frn_tlu_kernel(%arg0: i32, %arg1: memref<1x864x256xbf16, #tpu.memory_space<vmem>>, %arg2: memref<8x144xbf16, #tpu.memory_space<vmem>>, %arg3: memref<8x4xf32, #tpu.memory_space<vmem>>, %arg4: memref<1x8x4096xf32, #tpu.memory_space<vmem>>) attributes {dimension_semantics = [#tpu.dimension_semantics<parallel>], iteration_bounds = array<i64: 2>, scalar_prefetch = 0 : i64, scratch_operands = 0 : i64, tpu.core_type = #tpu.core_type<tc>, window_params = [{transform_indices = @transform_0, window_bounds = array<i64: 1, 864, 256>}, {pipeline_mode = #tpu.pipeline_mode<synchronous>, transform_indices = @transform_1, window_bounds = array<i64: 8, 144>}, {pipeline_mode = #tpu.pipeline_mode<synchronous>, transform_indices = @transform_2, window_bounds = array<i64: 8, 4>}, {transform_indices = @transform_3, window_bounds = array<i64: 1, 8, 4096>}]} {
    %c0 = arith.constant 0 : index
    %c0_0 = arith.constant 0 : index
    %0 = vector.load %arg2[%c0, %c0_0] : memref<8x144xbf16, #tpu.memory_space<vmem>>, vector<8x144xbf16>
    %c0_1 = arith.constant 0 : index
    %c0_2 = arith.constant 0 : index
    %1 = vector.load %arg3[%c0_1, %c0_2] : memref<8x4xf32, #tpu.memory_space<vmem>>, vector<8x1xf32>
    %cst = arith.constant 0.000000e+00 : f32
    %2 = vector.broadcast %cst : f32 to vector<8x1xf32>
    %c0_3 = arith.constant 0 : index
    %c0_4 = arith.constant 0 : index
    %c0_5 = arith.constant 0 : index
    %3 = vector.load %arg1[%c0_3, %c0_4, %c0_5] : memref<1x864x256xbf16, #tpu.memory_space<vmem>>, vector<1x144x256xbf16>
    %4 = vector.shape_cast %3 : vector<1x144x256xbf16> to vector<144x256xbf16>
    %cst_6 = arith.constant dense<0.000000e+00> : vector<8x256xf32>
    %5 = tpu.matmul %0, %4, %cst_6 {dimension_numbers = #tpu.dot_dimension_numbers<[1], [0], [0], [1], [0, 0, 1, 1], [], []>} : vector<8x144xbf16>, vector<144x256xbf16>, vector<8x256xf32> -> vector<8x256xf32>
    %6 = vector.broadcast %1 : vector<8x1xf32> to vector<8x256xf32>
    %7 = arith.addf %5, %6 : vector<8x256xf32>
    %c0_7 = arith.constant 0 : index
    %c0_8 = arith.constant 0 : index
    %c0_9 = arith.constant 0 : index
    %8 = vector.load %arg4[%c0_7, %c0_8, %c0_9] : memref<1x8x4096xf32, #tpu.memory_space<vmem>>, vector<1x8x256xf32>
    %9 = vector.shape_cast %8 : vector<1x8x256xf32> to vector<8x256xf32>
    %10 = vector.shape_cast %7 : vector<8x256xf32> to vector<1x8x256xf32>
    tpu.vector_store %arg4[%c0_7, %c0_8, %c0_9], %10 {strides = array<i32>} : memref<1x8x4096xf32, #tpu.memory_space<vmem>>, vector<1x8x256xf32>,
    %11 = arith.mulf %7, %7 : vector<8x256xf32>
    %cst_10 = arith.constant dense<0.000000e+00> : vector<8xf32>
    %12 = vector.multi_reduction <add>, %11, %cst_10 [1] : vector<8x256xf32> to vector<8xf32>
    %13 = vector.shape_cast %12 : vector<8xf32> to vector<8x1xf32>
    %14 = arith.addf %2, %13 : vector<8x1xf32>
    %c0_11 = arith.constant 0 : index
    %c48 = arith.constant 48 : index
    %c0_12 = arith.constant 0 : index
    %15 = vector.load %arg1[%c0_11, %c48, %c0_12] : memref<1x864x256xbf16, #tpu.memory_space<vmem>>, vector<1x144x256xbf16>
    %16 = vector.shape_cast %15 : vector<1x144x256xbf16> to vector<144x256xbf16>
    %cst_13 = arith.constant dense<0.000000e+00> : vector<8x256xf32>
    %17 = tpu.matmul %0, %16, %cst_13 {dimension_numbers = #tpu.dot_dimension_numbers<[1], [0], [0], [1], [0, 0, 1, 1], [], []>} : vector<8x144xbf16>, vector<144x256xbf16>, vector<8x256xf32> -> vector<8x256xf32>
    %18 = vector.broadcast %1 : vector<8x1xf32> to vector<8x256xf32>
    %19 = arith.addf %17, %18 : vector<8x256xf32>
    %c0_14 = arith.constant 0 : index
    %c0_15 = arith.constant 0 : index
    %c256 = arith.constant 256 : index
    %20 = vector.load %arg4[%c0_14, %c0_15, %c256] : memref<1x8x4096xf32, #tpu.memory_space<vmem>>, vector<1x8x256xf32>
    %21 = vector.shape_cast %20 : vector<1x8x256xf32> to vector<8x256xf32>
    %22 = vector.shape_cast %19 : vector<8x256xf32> to vector<1x8x256xf32>
    tpu.vector_store %arg4[%c0_14, %c0_15, %c256], %22 {strides = array<i32>} : memref<1x8x4096xf32, #tpu.memory_space<vmem>>, vector<1x8x256xf32>,
    %23 = arith.mulf %19, %19 : vector<8x256xf32>
    %cst_16 = arith.constant dense<0.000000e+00> : vector<8xf32>
    %24 = vector.multi_reduction <add>, %23, %cst_16 [1] : vector<8x256xf32> to vector<8xf32>
    %25 = vector.shape_cast %24 : vector<8xf32> to vector<8x1xf32>
    %26 = arith.addf %14, %25 : vector<8x1xf32>
    %c0_17 = arith.constant 0 : index
    %c96 = arith.constant 96 : index
    %c0_18 = arith.constant 0 : index
    %27 = vector.load %arg1[%c0_17, %c96, %c0_18] : memref<1x864x256xbf16, #tpu.memory_space<vmem>>, vector<1x144x256xbf16>
    %28 = vector.shape_cast %27 : vector<1x144x256xbf16> to vector<144x256xbf16>
    %cst_19 = arith.constant dense<0.000000e+00> : vector<8x256xf32>
    %29 = tpu.matmul %0, %28, %cst_19 {dimension_numbers = #tpu.dot_dimension_numbers<[1], [0], [0], [1], [0, 0, 1, 1], [], []>} : vector<8x144xbf16>, vector<144x256xbf16>, vector<8x256xf32> -> vector<8x256xf32>
    %30 = vector.broadcast %1 : vector<8x1xf32> to vector<8x256xf32>
    %31 = arith.addf %29, %30 : vector<8x256xf32>
    %c0_20 = arith.constant 0 : index
    %c0_21 = arith.constant 0 : index
    %c512 = arith.constant 512 : index
    %32 = vector.load %arg4[%c0_20, %c0_21, %c512] : memref<1x8x4096xf32, #tpu.memory_space<vmem>>, vector<1x8x256xf32>
    %33 = vector.shape_cast %32 : vector<1x8x256xf32> to vector<8x256xf32>
    %34 = vector.shape_cast %31 : vector<8x256xf32> to vector<1x8x256xf32>
    tpu.vector_store %arg4[%c0_20, %c0_21, %c512], %34 {strides = array<i32>} : memref<1x8x4096xf32, #tpu.memory_space<vmem>>, vector<1x8x256xf32>,
    %35 = arith.mulf %31, %31 : vector<8x256xf32>
    %cst_22 = arith.constant dense<0.000000e+00> : vector<8xf32>
    %36 = vector.multi_reduction <add>, %35, %cst_22 [1] : vector<8x256xf32> to vector<8xf32>
    %37 = vector.shape_cast %36 : vector<8xf32> to vector<8x1xf32>
    %38 = arith.addf %26, %37 : vector<8x1xf32>
    %c0_23 = arith.constant 0 : index
    %c144 = arith.constant 144 : index
    %c0_24 = arith.constant 0 : index
    %39 = vector.load %arg1[%c0_23, %c144, %c0_24] : memref<1x864x256xbf16, #tpu.memory_space<vmem>>, vector<1x144x256xbf16>
    %40 = vector.shape_cast %39 : vector<1x144x256xbf16> to vector<144x256xbf16>
    %cst_25 = arith.constant dense<0.000000e+00> : vector<8x256xf32>
    %41 = tpu.matmul %0, %40, %cst_25 {dimension_numbers = #tpu.dot_dimension_numbers<[1], [0], [0], [1], [0, 0, 1, 1], [], []>} : vector<8x144xbf16>, vector<144x256xbf16>, vector<8x256xf32> -> vector<8x256xf32>
    %42 = vector.broadcast %1 : vector<8x1xf32> to vector<8x256xf32>
    %43 = arith.addf %41, %42 : vector<8x256xf32>
    %c0_26 = arith.constant 0 : index
    %c0_27 = arith.constant 0 : index
    %c768 = arith.constant 768 : index
    %44 = vector.load %arg4[%c0_26, %c0_27, %c768] : memref<1x8x4096xf32, #tpu.memory_space<vmem>>, vector<1x8x256xf32>
    %45 = vector.shape_cast %44 : vector<1x8x256xf32> to vector<8x256xf32>
    %46 = vector.shape_cast %43 : vector<8x256xf32> to vector<1x8x256xf32>
    tpu.vector_store %arg4[%c0_26, %c0_27, %c768], %46 {strides = array<i32>} : memref<1x8x4096xf32, #tpu.memory_space<vmem>>, vector<1x8x256xf32>,
    %47 = arith.mulf %43, %43 : vector<8x256xf32>
    %cst_28 = arith.constant dense<0.000000e+00> : vector<8xf32>
    %48 = vector.multi_reduction <add>, %47, %cst_28 [1] : vector<8x256xf32> to vector<8xf32>
    %49 = vector.shape_cast %48 : vector<8xf32> to vector<8x1xf32>
    %50 = arith.addf %38, %49 : vector<8x1xf32>
    %c0_29 = arith.constant 0 : index
    %c192 = arith.constant 192 : index
    %c0_30 = arith.constant 0 : index
    %51 = vector.load %arg1[%c0_29, %c192, %c0_30] : memref<1x864x256xbf16, #tpu.memory_space<vmem>>, vector<1x144x256xbf16>
    %52 = vector.shape_cast %51 : vector<1x144x256xbf16> to vector<144x256xbf16>
    %cst_31 = arith.constant dense<0.000000e+00> : vector<8x256xf32>
    %53 = tpu.matmul %0, %52, %cst_31 {dimension_numbers = #tpu.dot_dimension_numbers<[1], [0], [0], [1], [0, 0, 1, 1], [], []>} : vector<8x144xbf16>, vector<144x256xbf16>, vector<8x256xf32> -> vector<8x256xf32>
    %54 = vector.broadcast %1 : vector<8x1xf32> to vector<8x256xf32>
    %55 = arith.addf %53, %54 : vector<8x256xf32>
    %c0_32 = arith.constant 0 : index
    %c0_33 = arith.constant 0 : index
    %c1024 = arith.constant 1024 : index
    %56 = vector.load %arg4[%c0_32, %c0_33, %c1024] : memref<1x8x4096xf32, #tpu.memory_space<vmem>>, vector<1x8x256xf32>
    %57 = vector.shape_cast %56 : vector<1x8x256xf32> to vector<8x256xf32>
    %58 = vector.shape_cast %55 : vector<8x256xf32> to vector<1x8x256xf32>
    tpu.vector_store %arg4[%c0_32, %c0_33, %c1024], %58 {strides = array<i32>} : memref<1x8x4096xf32, #tpu.memory_space<vmem>>, vector<1x8x256xf32>,
    %59 = arith.mulf %55, %55 : vector<8x256xf32>
    %cst_34 = arith.constant dense<0.000000e+00> : vector<8xf32>
    %60 = vector.multi_reduction <add>, %59, %cst_34 [1] : vector<8x256xf32> to vector<8xf32>
    %61 = vector.shape_cast %60 : vector<8xf32> to vector<8x1xf32>
    %62 = arith.addf %50, %61 : vector<8x1xf32>
    %c0_35 = arith.constant 0 : index
    %c240 = arith.constant 240 : index
    %c0_36 = arith.constant 0 : index
    %63 = vector.load %arg1[%c0_35, %c240, %c0_36] : memref<1x864x256xbf16, #tpu.memory_space<vmem>>, vector<1x144x256xbf16>
    %64 = vector.shape_cast %63 : vector<1x144x256xbf16> to vector<144x256xbf16>
    %cst_37 = arith.constant dense<0.000000e+00> : vector<8x256xf32>
    %65 = tpu.matmul %0, %64, %cst_37 {dimension_numbers = #tpu.dot_dimension_numbers<[1], [0], [0], [1], [0, 0, 1, 1], [], []>} : vector<8x144xbf16>, vector<144x256xbf16>, vector<8x256xf32> -> vector<8x256xf32>
    %66 = vector.broadcast %1 : vector<8x1xf32> to vector<8x256xf32>
    %67 = arith.addf %65, %66 : vector<8x256xf32>
    %c0_38 = arith.constant 0 : index
    %c0_39 = arith.constant 0 : index
    %c1280 = arith.constant 1280 : index
    %68 = vector.load %arg4[%c0_38, %c0_39, %c1280] : memref<1x8x4096xf32, #tpu.memory_space<vmem>>, vector<1x8x256xf32>
    %69 = vector.shape_cast %68 : vector<1x8x256xf32> to vector<8x256xf32>
    %70 = vector.shape_cast %67 : vector<8x256xf32> to vector<1x8x256xf32>
    tpu.vector_store %arg4[%c0_38, %c0_39, %c1280], %70 {strides = array<i32>} : memref<1x8x4096xf32, #tpu.memory_space<vmem>>, vector<1x8x256xf32>,
    %71 = arith.mulf %67, %67 : vector<8x256xf32>
    %cst_40 = arith.constant dense<0.000000e+00> : vector<8xf32>
    %72 = vector.multi_reduction <add>, %71, %cst_40 [1] : vector<8x256xf32> to vector<8xf32>
    %73 = vector.shape_cast %72 : vector<8xf32> to vector<8x1xf32>
    %74 = arith.addf %62, %73 : vector<8x1xf32>
    %c0_41 = arith.constant 0 : index
    %c288 = arith.constant 288 : index
    %c0_42 = arith.constant 0 : index
    %75 = vector.load %arg1[%c0_41, %c288, %c0_42] : memref<1x864x256xbf16, #tpu.memory_space<vmem>>, vector<1x144x256xbf16>
    %76 = vector.shape_cast %75 : vector<1x144x256xbf16> to vector<144x256xbf16>
    %cst_43 = arith.constant dense<0.000000e+00> : vector<8x256xf32>
    %77 = tpu.matmul %0, %76, %cst_43 {dimension_numbers = #tpu.dot_dimension_numbers<[1], [0], [0], [1], [0, 0, 1, 1], [], []>} : vector<8x144xbf16>, vector<144x256xbf16>, vector<8x256xf32> -> vector<8x256xf32>
    %78 = vector.broadcast %1 : vector<8x1xf32> to vector<8x256xf32>
    %79 = arith.addf %77, %78 : vector<8x256xf32>
    %c0_44 = arith.constant 0 : index
    %c0_45 = arith.constant 0 : index
    %c1536 = arith.constant 1536 : index
    %80 = vector.load %arg4[%c0_44, %c0_45, %c1536] : memref<1x8x4096xf32, #tpu.memory_space<vmem>>, vector<1x8x256xf32>
    %81 = vector.shape_cast %80 : vector<1x8x256xf32> to vector<8x256xf32>
    %82 = vector.shape_cast %79 : vector<8x256xf32> to vector<1x8x256xf32>
    tpu.vector_store %arg4[%c0_44, %c0_45, %c1536], %82 {strides = array<i32>} : memref<1x8x4096xf32, #tpu.memory_space<vmem>>, vector<1x8x256xf32>,
    %83 = arith.mulf %79, %79 : vector<8x256xf32>
    %cst_46 = arith.constant dense<0.000000e+00> : vector<8xf32>
    %84 = vector.multi_reduction <add>, %83, %cst_46 [1] : vector<8x256xf32> to vector<8xf32>
    %85 = vector.shape_cast %84 : vector<8xf32> to vector<8x1xf32>
    %86 = arith.addf %74, %85 : vector<8x1xf32>
    %c0_47 = arith.constant 0 : index
    %c336 = arith.constant 336 : index
    %c0_48 = arith.constant 0 : index
    %87 = vector.load %arg1[%c0_47, %c336, %c0_48] : memref<1x864x256xbf16, #tpu.memory_space<vmem>>, vector<1x144x256xbf16>
    %88 = vector.shape_cast %87 : vector<1x144x256xbf16> to vector<144x256xbf16>
    %cst_49 = arith.constant dense<0.000000e+00> : vector<8x256xf32>
    %89 = tpu.matmul %0, %88, %cst_49 {dimension_numbers = #tpu.dot_dimension_numbers<[1], [0], [0], [1], [0, 0, 1, 1], [], []>} : vector<8x144xbf16>, vector<144x256xbf16>, vector<8x256xf32> -> vector<8x256xf32>
    %90 = vector.broadcast %1 : vector<8x1xf32> to vector<8x256xf32>
    %91 = arith.addf %89, %90 : vector<8x256xf32>
    %c0_50 = arith.constant 0 : index
    %c0_51 = arith.constant 0 : index
    %c1792 = arith.constant 1792 : index
    %92 = vector.load %arg4[%c0_50, %c0_51, %c1792] : memref<1x8x4096xf32, #tpu.memory_space<vmem>>, vector<1x8x256xf32>
    %93 = vector.shape_cast %92 : vector<1x8x256xf32> to vector<8x256xf32>
    %94 = vector.shape_cast %91 : vector<8x256xf32> to vector<1x8x256xf32>
    tpu.vector_store %arg4[%c0_50, %c0_51, %c1792], %94 {strides = array<i32>} : memref<1x8x4096xf32, #tpu.memory_space<vmem>>, vector<1x8x256xf32>,
    %95 = arith.mulf %91, %91 : vector<8x256xf32>
    %cst_52 = arith.constant dense<0.000000e+00> : vector<8xf32>
    %96 = vector.multi_reduction <add>, %95, %cst_52 [1] : vector<8x256xf32> to vector<8xf32>
    %97 = vector.shape_cast %96 : vector<8xf32> to vector<8x1xf32>
    %98 = arith.addf %86, %97 : vector<8x1xf32>
    %c0_53 = arith.constant 0 : index
    %c384 = arith.constant 384 : index
    %c0_54 = arith.constant 0 : index
    %99 = vector.load %arg1[%c0_53, %c384, %c0_54] : memref<1x864x256xbf16, #tpu.memory_space<vmem>>, vector<1x144x256xbf16>
    %100 = vector.shape_cast %99 : vector<1x144x256xbf16> to vector<144x256xbf16>
    %cst_55 = arith.constant dense<0.000000e+00> : vector<8x256xf32>
    %101 = tpu.matmul %0, %100, %cst_55 {dimension_numbers = #tpu.dot_dimension_numbers<[1], [0], [0], [1], [0, 0, 1, 1], [], []>} : vector<8x144xbf16>, vector<144x256xbf16>, vector<8x256xf32> -> vector<8x256xf32>
    %102 = vector.broadcast %1 : vector<8x1xf32> to vector<8x256xf32>
    %103 = arith.addf %101, %102 : vector<8x256xf32>
    %c0_56 = arith.constant 0 : index
    %c0_57 = arith.constant 0 : index
    %c2048 = arith.constant 2048 : index
    %104 = vector.load %arg4[%c0_56, %c0_57, %c2048] : memref<1x8x4096xf32, #tpu.memory_space<vmem>>, vector<1x8x256xf32>
    %105 = vector.shape_cast %104 : vector<1x8x256xf32> to vector<8x256xf32>
    %106 = vector.shape_cast %103 : vector<8x256xf32> to vector<1x8x256xf32>
    tpu.vector_store %arg4[%c0_56, %c0_57, %c2048], %106 {strides = array<i32>} : memref<1x8x4096xf32, #tpu.memory_space<vmem>>, vector<1x8x256xf32>,
    %107 = arith.mulf %103, %103 : vector<8x256xf32>
    %cst_58 = arith.constant dense<0.000000e+00> : vector<8xf32>
    %108 = vector.multi_reduction <add>, %107, %cst_58 [1] : vector<8x256xf32> to vector<8xf32>
    %109 = vector.shape_cast %108 : vector<8xf32> to vector<8x1xf32>
    %110 = arith.addf %98, %109 : vector<8x1xf32>
    %c0_59 = arith.constant 0 : index
    %c432 = arith.constant 432 : index
    %c0_60 = arith.constant 0 : index
    %111 = vector.load %arg1[%c0_59, %c432, %c0_60] : memref<1x864x256xbf16, #tpu.memory_space<vmem>>, vector<1x144x256xbf16>
    %112 = vector.shape_cast %111 : vector<1x144x256xbf16> to vector<144x256xbf16>
    %cst_61 = arith.constant dense<0.000000e+00> : vector<8x256xf32>
    %113 = tpu.matmul %0, %112, %cst_61 {dimension_numbers = #tpu.dot_dimension_numbers<[1], [0], [0], [1], [0, 0, 1, 1], [], []>} : vector<8x144xbf16>, vector<144x256xbf16>, vector<8x256xf32> -> vector<8x256xf32>
    %114 = vector.broadcast %1 : vector<8x1xf32> to vector<8x256xf32>
    %115 = arith.addf %113, %114 : vector<8x256xf32>
    %c0_62 = arith.constant 0 : index
    %c0_63 = arith.constant 0 : index
    %c2304 = arith.constant 2304 : index
    %116 = vector.load %arg4[%c0_62, %c0_63, %c2304] : memref<1x8x4096xf32, #tpu.memory_space<vmem>>, vector<1x8x256xf32>
    %117 = vector.shape_cast %116 : vector<1x8x256xf32> to vector<8x256xf32>
    %118 = vector.shape_cast %115 : vector<8x256xf32> to vector<1x8x256xf32>
    tpu.vector_store %arg4[%c0_62, %c0_63, %c2304], %118 {strides = array<i32>} : memref<1x8x4096xf32, #tpu.memory_space<vmem>>, vector<1x8x256xf32>,
    %119 = arith.mulf %115, %115 : vector<8x256xf32>
    %cst_64 = arith.constant dense<0.000000e+00> : vector<8xf32>
    %120 = vector.multi_reduction <add>, %119, %cst_64 [1] : vector<8x256xf32> to vector<8xf32>
    %121 = vector.shape_cast %120 : vector<8xf32> to vector<8x1xf32>
    %122 = arith.addf %110, %121 : vector<8x1xf32>
    %c0_65 = arith.constant 0 : index
    %c480 = arith.constant 480 : index
    %c0_66 = arith.constant 0 : index
    %123 = vector.load %arg1[%c0_65, %c480, %c0_66] : memref<1x864x256xbf16, #tpu.memory_space<vmem>>, vector<1x144x256xbf16>
    %124 = vector.shape_cast %123 : vector<1x144x256xbf16> to vector<144x256xbf16>
    %cst_67 = arith.constant dense<0.000000e+00> : vector<8x256xf32>
    %125 = tpu.matmul %0, %124, %cst_67 {dimension_numbers = #tpu.dot_dimension_numbers<[1], [0], [0], [1], [0, 0, 1, 1], [], []>} : vector<8x144xbf16>, vector<144x256xbf16>, vector<8x256xf32> -> vector<8x256xf32>
    %126 = vector.broadcast %1 : vector<8x1xf32> to vector<8x256xf32>
    %127 = arith.addf %125, %126 : vector<8x256xf32>
    %c0_68 = arith.constant 0 : index
    %c0_69 = arith.constant 0 : index
    %c2560 = arith.constant 2560 : index
    %128 = vector.load %arg4[%c0_68, %c0_69, %c2560] : memref<1x8x4096xf32, #tpu.memory_space<vmem>>, vector<1x8x256xf32>
    %129 = vector.shape_cast %128 : vector<1x8x256xf32> to vector<8x256xf32>
    %130 = vector.shape_cast %127 : vector<8x256xf32> to vector<1x8x256xf32>
    tpu.vector_store %arg4[%c0_68, %c0_69, %c2560], %130 {strides = array<i32>} : memref<1x8x4096xf32, #tpu.memory_space<vmem>>, vector<1x8x256xf32>,
    %131 = arith.mulf %127, %127 : vector<8x256xf32>
    %cst_70 = arith.constant dense<0.000000e+00> : vector<8xf32>
    %132 = vector.multi_reduction <add>, %131, %cst_70 [1] : vector<8x256xf32> to vector<8xf32>
    %133 = vector.shape_cast %132 : vector<8xf32> to vector<8x1xf32>
    %134 = arith.addf %122, %133 : vector<8x1xf32>
    %c0_71 = arith.constant 0 : index
    %c528 = arith.constant 528 : index
    %c0_72 = arith.constant 0 : index
    %135 = vector.load %arg1[%c0_71, %c528, %c0_72] : memref<1x864x256xbf16, #tpu.memory_space<vmem>>, vector<1x144x256xbf16>
    %136 = vector.shape_cast %135 : vector<1x144x256xbf16> to vector<144x256xbf16>
    %cst_73 = arith.constant dense<0.000000e+00> : vector<8x256xf32>
    %137 = tpu.matmul %0, %136, %cst_73 {dimension_numbers = #tpu.dot_dimension_numbers<[1], [0], [0], [1], [0, 0, 1, 1], [], []>} : vector<8x144xbf16>, vector<144x256xbf16>, vector<8x256xf32> -> vector<8x256xf32>
    %138 = vector.broadcast %1 : vector<8x1xf32> to vector<8x256xf32>
    %139 = arith.addf %137, %138 : vector<8x256xf32>
    %c0_74 = arith.constant 0 : index
    %c0_75 = arith.constant 0 : index
    %c2816 = arith.constant 2816 : index
    %140 = vector.load %arg4[%c0_74, %c0_75, %c2816] : memref<1x8x4096xf32, #tpu.memory_space<vmem>>, vector<1x8x256xf32>
    %141 = vector.shape_cast %140 : vector<1x8x256xf32> to vector<8x256xf32>
    %142 = vector.shape_cast %139 : vector<8x256xf32> to vector<1x8x256xf32>
    tpu.vector_store %arg4[%c0_74, %c0_75, %c2816], %142 {strides = array<i32>} : memref<1x8x4096xf32, #tpu.memory_space<vmem>>, vector<1x8x256xf32>,
    %143 = arith.mulf %139, %139 : vector<8x256xf32>
    %cst_76 = arith.constant dense<0.000000e+00> : vector<8xf32>
    %144 = vector.multi_reduction <add>, %143, %cst_76 [1] : vector<8x256xf32> to vector<8xf32>
    %145 = vector.shape_cast %144 : vector<8xf32> to vector<8x1xf32>
    %146 = arith.addf %134, %145 : vector<8x1xf32>
    %c0_77 = arith.constant 0 : index
    %c576 = arith.constant 576 : index
    %c0_78 = arith.constant 0 : index
    %147 = vector.load %arg1[%c0_77, %c576, %c0_78] : memref<1x864x256xbf16, #tpu.memory_space<vmem>>, vector<1x144x256xbf16>
    %148 = vector.shape_cast %147 : vector<1x144x256xbf16> to vector<144x256xbf16>
    %cst_79 = arith.constant dense<0.000000e+00> : vector<8x256xf32>
    %149 = tpu.matmul %0, %148, %cst_79 {dimension_numbers = #tpu.dot_dimension_numbers<[1], [0], [0], [1], [0, 0, 1, 1], [], []>} : vector<8x144xbf16>, vector<144x256xbf16>, vector<8x256xf32> -> vector<8x256xf32>
    %150 = vector.broadcast %1 : vector<8x1xf32> to vector<8x256xf32>
    %151 = arith.addf %149, %150 : vector<8x256xf32>
    %c0_80 = arith.constant 0 : index
    %c0_81 = arith.constant 0 : index
    %c3072 = arith.constant 3072 : index
    %152 = vector.load %arg4[%c0_80, %c0_81, %c3072] : memref<1x8x4096xf32, #tpu.memory_space<vmem>>, vector<1x8x256xf32>
    %153 = vector.shape_cast %152 : vector<1x8x256xf32> to vector<8x256xf32>
    %154 = vector.shape_cast %151 : vector<8x256xf32> to vector<1x8x256xf32>
    tpu.vector_store %arg4[%c0_80, %c0_81, %c3072], %154 {strides = array<i32>} : memref<1x8x4096xf32, #tpu.memory_space<vmem>>, vector<1x8x256xf32>,
    %155 = arith.mulf %151, %151 : vector<8x256xf32>
    %cst_82 = arith.constant dense<0.000000e+00> : vector<8xf32>
    %156 = vector.multi_reduction <add>, %155, %cst_82 [1] : vector<8x256xf32> to vector<8xf32>
    %157 = vector.shape_cast %156 : vector<8xf32> to vector<8x1xf32>
    %158 = arith.addf %146, %157 : vector<8x1xf32>
    %c0_83 = arith.constant 0 : index
    %c624 = arith.constant 624 : index
    %c0_84 = arith.constant 0 : index
    %159 = vector.load %arg1[%c0_83, %c624, %c0_84] : memref<1x864x256xbf16, #tpu.memory_space<vmem>>, vector<1x144x256xbf16>
    %160 = vector.shape_cast %159 : vector<1x144x256xbf16> to vector<144x256xbf16>
    %cst_85 = arith.constant dense<0.000000e+00> : vector<8x256xf32>
    %161 = tpu.matmul %0, %160, %cst_85 {dimension_numbers = #tpu.dot_dimension_numbers<[1], [0], [0], [1], [0, 0, 1, 1], [], []>} : vector<8x144xbf16>, vector<144x256xbf16>, vector<8x256xf32> -> vector<8x256xf32>
    %162 = vector.broadcast %1 : vector<8x1xf32> to vector<8x256xf32>
    %163 = arith.addf %161, %162 : vector<8x256xf32>
    %c0_86 = arith.constant 0 : index
    %c0_87 = arith.constant 0 : index
    %c3328 = arith.constant 3328 : index
    %164 = vector.load %arg4[%c0_86, %c0_87, %c3328] : memref<1x8x4096xf32, #tpu.memory_space<vmem>>, vector<1x8x256xf32>
    %165 = vector.shape_cast %164 : vector<1x8x256xf32> to vector<8x256xf32>
    %166 = vector.shape_cast %163 : vector<8x256xf32> to vector<1x8x256xf32>
    tpu.vector_store %arg4[%c0_86, %c0_87, %c3328], %166 {strides = array<i32>} : memref<1x8x4096xf32, #tpu.memory_space<vmem>>, vector<1x8x256xf32>,
    %167 = arith.mulf %163, %163 : vector<8x256xf32>
    %cst_88 = arith.constant dense<0.000000e+00> : vector<8xf32>
    %168 = vector.multi_reduction <add>, %167, %cst_88 [1] : vector<8x256xf32> to vector<8xf32>
    %169 = vector.shape_cast %168 : vector<8xf32> to vector<8x1xf32>
    %170 = arith.addf %158, %169 : vector<8x1xf32>
    %c0_89 = arith.constant 0 : index
    %c672 = arith.constant 672 : index
    %c0_90 = arith.constant 0 : index
    %171 = vector.load %arg1[%c0_89, %c672, %c0_90] : memref<1x864x256xbf16, #tpu.memory_space<vmem>>, vector<1x144x256xbf16>
    %172 = vector.shape_cast %171 : vector<1x144x256xbf16> to vector<144x256xbf16>
    %cst_91 = arith.constant dense<0.000000e+00> : vector<8x256xf32>
    %173 = tpu.matmul %0, %172, %cst_91 {dimension_numbers = #tpu.dot_dimension_numbers<[1], [0], [0], [1], [0, 0, 1, 1], [], []>} : vector<8x144xbf16>, vector<144x256xbf16>, vector<8x256xf32> -> vector<8x256xf32>
    %174 = vector.broadcast %1 : vector<8x1xf32> to vector<8x256xf32>
    %175 = arith.addf %173, %174 : vector<8x256xf32>
    %c0_92 = arith.constant 0 : index
    %c0_93 = arith.constant 0 : index
    %c3584 = arith.constant 3584 : index
    %176 = vector.load %arg4[%c0_92, %c0_93, %c3584] : memref<1x8x4096xf32, #tpu.memory_space<vmem>>, vector<1x8x256xf32>
    %177 = vector.shape_cast %176 : vector<1x8x256xf32> to vector<8x256xf32>
    %178 = vector.shape_cast %175 : vector<8x256xf32> to vector<1x8x256xf32>
    tpu.vector_store %arg4[%c0_92, %c0_93, %c3584], %178 {strides = array<i32>} : memref<1x8x4096xf32, #tpu.memory_space<vmem>>, vector<1x8x256xf32>,
    %179 = arith.mulf %175, %175 : vector<8x256xf32>
    %cst_94 = arith.constant dense<0.000000e+00> : vector<8xf32>
    %180 = vector.multi_reduction <add>, %179, %cst_94 [1] : vector<8x256xf32> to vector<8xf32>
    %181 = vector.shape_cast %180 : vector<8xf32> to vector<8x1xf32>
    %182 = arith.addf %170, %181 : vector<8x1xf32>
    %c0_95 = arith.constant 0 : index
    %c720 = arith.constant 720 : index
    %c0_96 = arith.constant 0 : index
    %183 = vector.load %arg1[%c0_95, %c720, %c0_96] : memref<1x864x256xbf16, #tpu.memory_space<vmem>>, vector<1x144x256xbf16>
    %184 = vector.shape_cast %183 : vector<1x144x256xbf16> to vector<144x256xbf16>
    %cst_97 = arith.constant dense<0.000000e+00> : vector<8x256xf32>
    %185 = tpu.matmul %0, %184, %cst_97 {dimension_numbers = #tpu.dot_dimension_numbers<[1], [0], [0], [1], [0, 0, 1, 1], [], []>} : vector<8x144xbf16>, vector<144x256xbf16>, vector<8x256xf32> -> vector<8x256xf32>
    %186 = vector.broadcast %1 : vector<8x1xf32> to vector<8x256xf32>
    %187 = arith.addf %185, %186 : vector<8x256xf32>
    %c0_98 = arith.constant 0 : index
    %c0_99 = arith.constant 0 : index
    %c3840 = arith.constant 3840 : index
    %188 = vector.load %arg4[%c0_98, %c0_99, %c3840] : memref<1x8x4096xf32, #tpu.memory_space<vmem>>, vector<1x8x256xf32>
    %189 = vector.shape_cast %188 : vector<1x8x256xf32> to vector<8x256xf32>
    %190 = vector.shape_cast %187 : vector<8x256xf32> to vector<1x8x256xf32>
    tpu.vector_store %arg4[%c0_98, %c0_99, %c3840], %190 {strides = array<i32>} : memref<1x8x4096xf32, #tpu.memory_space<vmem>>, vector<1x8x256xf32>,
    %191 = arith.mulf %187, %187 : vector<8x256xf32>
    %cst_100 = arith.constant dense<0.000000e+00> : vector<8xf32>
    %192 = vector.multi_reduction <add>, %191, %cst_100 [1] : vector<8x256xf32> to vector<8xf32>
    %193 = vector.shape_cast %192 : vector<8xf32> to vector<8x1xf32>
    %194 = arith.addf %182, %193 : vector<8x1xf32>
    %cst_101 = arith.constant 2.44140625E-4 : f32
    %195 = vector.broadcast %cst_101 : f32 to vector<8x1xf32>
    %196 = arith.mulf %194, %195 : vector<8x1xf32>
    %c0_102 = arith.constant 0 : index
    %c1 = arith.constant 1 : index
    %197 = vector.load %arg3[%c0_102, %c1] : memref<8x4xf32, #tpu.memory_space<vmem>>, vector<8x1xf32>
    %c0_103 = arith.constant 0 : index
    %c2 = arith.constant 2 : index
    %198 = vector.load %arg3[%c0_103, %c2] : memref<8x4xf32, #tpu.memory_space<vmem>>, vector<8x1xf32>
    %c0_104 = arith.constant 0 : index
    %c3 = arith.constant 3 : index
    %199 = vector.load %arg3[%c0_104, %c3] : memref<8x4xf32, #tpu.memory_space<vmem>>, vector<8x1xf32>
    %cst_105 = arith.constant 9.99999997E-7 : f32
    %200 = vector.broadcast %cst_105 : f32 to vector<8x1xf32>
    %201 = arith.addf %196, %200 : vector<8x1xf32>
    %202 = math.rsqrt %201 : vector<8x1xf32>
    %203 = arith.mulf %197, %202 : vector<8x1xf32>
    %c0_106 = arith.constant 0 : index
    %c0_107 = arith.constant 0 : index
    %c0_108 = arith.constant 0 : index
    %204 = vector.load %arg4[%c0_106, %c0_107, %c0_108] : memref<1x8x4096xf32, #tpu.memory_space<vmem>>, vector<1x8x256xf32>
    %205 = vector.shape_cast %204 : vector<1x8x256xf32> to vector<8x256xf32>
    %206 = vector.broadcast %203 : vector<8x1xf32> to vector<8x256xf32>
    %207 = arith.mulf %206, %205 : vector<8x256xf32>
    %208 = vector.broadcast %198 : vector<8x1xf32> to vector<8x256xf32>
    %209 = arith.addf %207, %208 : vector<8x256xf32>
    %210 = vector.broadcast %199 : vector<8x1xf32> to vector<8x256xf32>
    %211 = arith.maximumf %209, %210 : vector<8x256xf32>
    %c0_109 = arith.constant 0 : index
    %c0_110 = arith.constant 0 : index
    %c0_111 = arith.constant 0 : index
    %212 = vector.load %arg4[%c0_109, %c0_110, %c0_111] : memref<1x8x4096xf32, #tpu.memory_space<vmem>>, vector<1x8x256xf32>
    %213 = vector.shape_cast %212 : vector<1x8x256xf32> to vector<8x256xf32>
    %214 = vector.shape_cast %211 : vector<8x256xf32> to vector<1x8x256xf32>
    tpu.vector_store %arg4[%c0_109, %c0_110, %c0_111], %214 {strides = array<i32>} : memref<1x8x4096xf32, #tpu.memory_space<vmem>>, vector<1x8x256xf32>,
    %c0_112 = arith.constant 0 : index
    %c0_113 = arith.constant 0 : index
    %c256_114 = arith.constant 256 : index
    %215 = vector.load %arg4[%c0_112, %c0_113, %c256_114] : memref<1x8x4096xf32, #tpu.memory_space<vmem>>, vector<1x8x256xf32>
    %216 = vector.shape_cast %215 : vector<1x8x256xf32> to vector<8x256xf32>
    %217 = vector.broadcast %203 : vector<8x1xf32> to vector<8x256xf32>
    %218 = arith.mulf %217, %216 : vector<8x256xf32>
    %219 = vector.broadcast %198 : vector<8x1xf32> to vector<8x256xf32>
    %220 = arith.addf %218, %219 : vector<8x256xf32>
    %221 = vector.broadcast %199 : vector<8x1xf32> to vector<8x256xf32>
    %222 = arith.maximumf %220, %221 : vector<8x256xf32>
    %c0_115 = arith.constant 0 : index
    %c0_116 = arith.constant 0 : index
    %c256_117 = arith.constant 256 : index
    %223 = vector.load %arg4[%c0_115, %c0_116, %c256_117] : memref<1x8x4096xf32, #tpu.memory_space<vmem>>, vector<1x8x256xf32>
    %224 = vector.shape_cast %223 : vector<1x8x256xf32> to vector<8x256xf32>
    %225 = vector.shape_cast %222 : vector<8x256xf32> to vector<1x8x256xf32>
    tpu.vector_store %arg4[%c0_115, %c0_116, %c256_117], %225 {strides = array<i32>} : memref<1x8x4096xf32, #tpu.memory_space<vmem>>, vector<1x8x256xf32>,
    %c0_118 = arith.constant 0 : index
    %c0_119 = arith.constant 0 : index
    %c512_120 = arith.constant 512 : index
    %226 = vector.load %arg4[%c0_118, %c0_119, %c512_120] : memref<1x8x4096xf32, #tpu.memory_space<vmem>>, vector<1x8x256xf32>
    %227 = vector.shape_cast %226 : vector<1x8x256xf32> to vector<8x256xf32>
    %228 = vector.broadcast %203 : vector<8x1xf32> to vector<8x256xf32>
    %229 = arith.mulf %228, %227 : vector<8x256xf32>
    %230 = vector.broadcast %198 : vector<8x1xf32> to vector<8x256xf32>
    %231 = arith.addf %229, %230 : vector<8x256xf32>
    %232 = vector.broadcast %199 : vector<8x1xf32> to vector<8x256xf32>
    %233 = arith.maximumf %231, %232 : vector<8x256xf32>
    %c0_121 = arith.constant 0 : index
    %c0_122 = arith.constant 0 : index
    %c512_123 = arith.constant 512 : index
    %234 = vector.load %arg4[%c0_121, %c0_122, %c512_123] : memref<1x8x4096xf32, #tpu.memory_space<vmem>>, vector<1x8x256xf32>
    %235 = vector.shape_cast %234 : vector<1x8x256xf32> to vector<8x256xf32>
    %236 = vector.shape_cast %233 : vector<8x256xf32> to vector<1x8x256xf32>
    tpu.vector_store %arg4[%c0_121, %c0_122, %c512_123], %236 {strides = array<i32>} : memref<1x8x4096xf32, #tpu.memory_space<vmem>>, vector<1x8x256xf32>,
    %c0_124 = arith.constant 0 : index
    %c0_125 = arith.constant 0 : index
    %c768_126 = arith.constant 768 : index
    %237 = vector.load %arg4[%c0_124, %c0_125, %c768_126] : memref<1x8x4096xf32, #tpu.memory_space<vmem>>, vector<1x8x256xf32>
    %238 = vector.shape_cast %237 : vector<1x8x256xf32> to vector<8x256xf32>
    %239 = vector.broadcast %203 : vector<8x1xf32> to vector<8x256xf32>
    %240 = arith.mulf %239, %238 : vector<8x256xf32>
    %241 = vector.broadcast %198 : vector<8x1xf32> to vector<8x256xf32>
    %242 = arith.addf %240, %241 : vector<8x256xf32>
    %243 = vector.broadcast %199 : vector<8x1xf32> to vector<8x256xf32>
    %244 = arith.maximumf %242, %243 : vector<8x256xf32>
    %c0_127 = arith.constant 0 : index
    %c0_128 = arith.constant 0 : index
    %c768_129 = arith.constant 768 : index
    %245 = vector.load %arg4[%c0_127, %c0_128, %c768_129] : memref<1x8x4096xf32, #tpu.memory_space<vmem>>, vector<1x8x256xf32>
    %246 = vector.shape_cast %245 : vector<1x8x256xf32> to vector<8x256xf32>
    %247 = vector.shape_cast %244 : vector<8x256xf32> to vector<1x8x256xf32>
    tpu.vector_store %arg4[%c0_127, %c0_128, %c768_129], %247 {strides = array<i32>} : memref<1x8x4096xf32, #tpu.memory_space<vmem>>, vector<1x8x256xf32>,
    %c0_130 = arith.constant 0 : index
    %c0_131 = arith.constant 0 : index
    %c1024_132 = arith.constant 1024 : index
    %248 = vector.load %arg4[%c0_130, %c0_131, %c1024_132] : memref<1x8x4096xf32, #tpu.memory_space<vmem>>, vector<1x8x256xf32>
    %249 = vector.shape_cast %248 : vector<1x8x256xf32> to vector<8x256xf32>
    %250 = vector.broadcast %203 : vector<8x1xf32> to vector<8x256xf32>
    %251 = arith.mulf %250, %249 : vector<8x256xf32>
    %252 = vector.broadcast %198 : vector<8x1xf32> to vector<8x256xf32>
    %253 = arith.addf %251, %252 : vector<8x256xf32>
    %254 = vector.broadcast %199 : vector<8x1xf32> to vector<8x256xf32>
    %255 = arith.maximumf %253, %254 : vector<8x256xf32>
    %c0_133 = arith.constant 0 : index
    %c0_134 = arith.constant 0 : index
    %c1024_135 = arith.constant 1024 : index
    %256 = vector.load %arg4[%c0_133, %c0_134, %c1024_135] : memref<1x8x4096xf32, #tpu.memory_space<vmem>>, vector<1x8x256xf32>
    %257 = vector.shape_cast %256 : vector<1x8x256xf32> to vector<8x256xf32>
    %258 = vector.shape_cast %255 : vector<8x256xf32> to vector<1x8x256xf32>
    tpu.vector_store %arg4[%c0_133, %c0_134, %c1024_135], %258 {strides = array<i32>} : memref<1x8x4096xf32, #tpu.memory_space<vmem>>, vector<1x8x256xf32>,
    %c0_136 = arith.constant 0 : index
    %c0_137 = arith.constant 0 : index
    %c1280_138 = arith.constant 1280 : index
    %259 = vector.load %arg4[%c0_136, %c0_137, %c1280_138] : memref<1x8x4096xf32, #tpu.memory_space<vmem>>, vector<1x8x256xf32>
    %260 = vector.shape_cast %259 : vector<1x8x256xf32> to vector<8x256xf32>
    %261 = vector.broadcast %203 : vector<8x1xf32> to vector<8x256xf32>
    %262 = arith.mulf %261, %260 : vector<8x256xf32>
    %263 = vector.broadcast %198 : vector<8x1xf32> to vector<8x256xf32>
    %264 = arith.addf %262, %263 : vector<8x256xf32>
    %265 = vector.broadcast %199 : vector<8x1xf32> to vector<8x256xf32>
    %266 = arith.maximumf %264, %265 : vector<8x256xf32>
    %c0_139 = arith.constant 0 : index
    %c0_140 = arith.constant 0 : index
    %c1280_141 = arith.constant 1280 : index
    %267 = vector.load %arg4[%c0_139, %c0_140, %c1280_141] : memref<1x8x4096xf32, #tpu.memory_space<vmem>>, vector<1x8x256xf32>
    %268 = vector.shape_cast %267 : vector<1x8x256xf32> to vector<8x256xf32>
    %269 = vector.shape_cast %266 : vector<8x256xf32> to vector<1x8x256xf32>
    tpu.vector_store %arg4[%c0_139, %c0_140, %c1280_141], %269 {strides = array<i32>} : memref<1x8x4096xf32, #tpu.memory_space<vmem>>, vector<1x8x256xf32>,
    %c0_142 = arith.constant 0 : index
    %c0_143 = arith.constant 0 : index
    %c1536_144 = arith.constant 1536 : index
    %270 = vector.load %arg4[%c0_142, %c0_143, %c1536_144] : memref<1x8x4096xf32, #tpu.memory_space<vmem>>, vector<1x8x256xf32>
    %271 = vector.shape_cast %270 : vector<1x8x256xf32> to vector<8x256xf32>
    %272 = vector.broadcast %203 : vector<8x1xf32> to vector<8x256xf32>
    %273 = arith.mulf %272, %271 : vector<8x256xf32>
    %274 = vector.broadcast %198 : vector<8x1xf32> to vector<8x256xf32>
    %275 = arith.addf %273, %274 : vector<8x256xf32>
    %276 = vector.broadcast %199 : vector<8x1xf32> to vector<8x256xf32>
    %277 = arith.maximumf %275, %276 : vector<8x256xf32>
    %c0_145 = arith.constant 0 : index
    %c0_146 = arith.constant 0 : index
    %c1536_147 = arith.constant 1536 : index
    %278 = vector.load %arg4[%c0_145, %c0_146, %c1536_147] : memref<1x8x4096xf32, #tpu.memory_space<vmem>>, vector<1x8x256xf32>
    %279 = vector.shape_cast %278 : vector<1x8x256xf32> to vector<8x256xf32>
    %280 = vector.shape_cast %277 : vector<8x256xf32> to vector<1x8x256xf32>
    tpu.vector_store %arg4[%c0_145, %c0_146, %c1536_147], %280 {strides = array<i32>} : memref<1x8x4096xf32, #tpu.memory_space<vmem>>, vector<1x8x256xf32>,
    %c0_148 = arith.constant 0 : index
    %c0_149 = arith.constant 0 : index
    %c1792_150 = arith.constant 1792 : index
    %281 = vector.load %arg4[%c0_148, %c0_149, %c1792_150] : memref<1x8x4096xf32, #tpu.memory_space<vmem>>, vector<1x8x256xf32>
    %282 = vector.shape_cast %281 : vector<1x8x256xf32> to vector<8x256xf32>
    %283 = vector.broadcast %203 : vector<8x1xf32> to vector<8x256xf32>
    %284 = arith.mulf %283, %282 : vector<8x256xf32>
    %285 = vector.broadcast %198 : vector<8x1xf32> to vector<8x256xf32>
    %286 = arith.addf %284, %285 : vector<8x256xf32>
    %287 = vector.broadcast %199 : vector<8x1xf32> to vector<8x256xf32>
    %288 = arith.maximumf %286, %287 : vector<8x256xf32>
    %c0_151 = arith.constant 0 : index
    %c0_152 = arith.constant 0 : index
    %c1792_153 = arith.constant 1792 : index
    %289 = vector.load %arg4[%c0_151, %c0_152, %c1792_153] : memref<1x8x4096xf32, #tpu.memory_space<vmem>>, vector<1x8x256xf32>
    %290 = vector.shape_cast %289 : vector<1x8x256xf32> to vector<8x256xf32>
    %291 = vector.shape_cast %288 : vector<8x256xf32> to vector<1x8x256xf32>
    tpu.vector_store %arg4[%c0_151, %c0_152, %c1792_153], %291 {strides = array<i32>} : memref<1x8x4096xf32, #tpu.memory_space<vmem>>, vector<1x8x256xf32>,
    %c0_154 = arith.constant 0 : index
    %c0_155 = arith.constant 0 : index
    %c2048_156 = arith.constant 2048 : index
    %292 = vector.load %arg4[%c0_154, %c0_155, %c2048_156] : memref<1x8x4096xf32, #tpu.memory_space<vmem>>, vector<1x8x256xf32>
    %293 = vector.shape_cast %292 : vector<1x8x256xf32> to vector<8x256xf32>
    %294 = vector.broadcast %203 : vector<8x1xf32> to vector<8x256xf32>
    %295 = arith.mulf %294, %293 : vector<8x256xf32>
    %296 = vector.broadcast %198 : vector<8x1xf32> to vector<8x256xf32>
    %297 = arith.addf %295, %296 : vector<8x256xf32>
    %298 = vector.broadcast %199 : vector<8x1xf32> to vector<8x256xf32>
    %299 = arith.maximumf %297, %298 : vector<8x256xf32>
    %c0_157 = arith.constant 0 : index
    %c0_158 = arith.constant 0 : index
    %c2048_159 = arith.constant 2048 : index
    %300 = vector.load %arg4[%c0_157, %c0_158, %c2048_159] : memref<1x8x4096xf32, #tpu.memory_space<vmem>>, vector<1x8x256xf32>
    %301 = vector.shape_cast %300 : vector<1x8x256xf32> to vector<8x256xf32>
    %302 = vector.shape_cast %299 : vector<8x256xf32> to vector<1x8x256xf32>
    tpu.vector_store %arg4[%c0_157, %c0_158, %c2048_159], %302 {strides = array<i32>} : memref<1x8x4096xf32, #tpu.memory_space<vmem>>, vector<1x8x256xf32>,
    %c0_160 = arith.constant 0 : index
    %c0_161 = arith.constant 0 : index
    %c2304_162 = arith.constant 2304 : index
    %303 = vector.load %arg4[%c0_160, %c0_161, %c2304_162] : memref<1x8x4096xf32, #tpu.memory_space<vmem>>, vector<1x8x256xf32>
    %304 = vector.shape_cast %303 : vector<1x8x256xf32> to vector<8x256xf32>
    %305 = vector.broadcast %203 : vector<8x1xf32> to vector<8x256xf32>
    %306 = arith.mulf %305, %304 : vector<8x256xf32>
    %307 = vector.broadcast %198 : vector<8x1xf32> to vector<8x256xf32>
    %308 = arith.addf %306, %307 : vector<8x256xf32>
    %309 = vector.broadcast %199 : vector<8x1xf32> to vector<8x256xf32>
    %310 = arith.maximumf %308, %309 : vector<8x256xf32>
    %c0_163 = arith.constant 0 : index
    %c0_164 = arith.constant 0 : index
    %c2304_165 = arith.constant 2304 : index
    %311 = vector.load %arg4[%c0_163, %c0_164, %c2304_165] : memref<1x8x4096xf32, #tpu.memory_space<vmem>>, vector<1x8x256xf32>
    %312 = vector.shape_cast %311 : vector<1x8x256xf32> to vector<8x256xf32>
    %313 = vector.shape_cast %310 : vector<8x256xf32> to vector<1x8x256xf32>
    tpu.vector_store %arg4[%c0_163, %c0_164, %c2304_165], %313 {strides = array<i32>} : memref<1x8x4096xf32, #tpu.memory_space<vmem>>, vector<1x8x256xf32>,
    %c0_166 = arith.constant 0 : index
    %c0_167 = arith.constant 0 : index
    %c2560_168 = arith.constant 2560 : index
    %314 = vector.load %arg4[%c0_166, %c0_167, %c2560_168] : memref<1x8x4096xf32, #tpu.memory_space<vmem>>, vector<1x8x256xf32>
    %315 = vector.shape_cast %314 : vector<1x8x256xf32> to vector<8x256xf32>
    %316 = vector.broadcast %203 : vector<8x1xf32> to vector<8x256xf32>
    %317 = arith.mulf %316, %315 : vector<8x256xf32>
    %318 = vector.broadcast %198 : vector<8x1xf32> to vector<8x256xf32>
    %319 = arith.addf %317, %318 : vector<8x256xf32>
    %320 = vector.broadcast %199 : vector<8x1xf32> to vector<8x256xf32>
    %321 = arith.maximumf %319, %320 : vector<8x256xf32>
    %c0_169 = arith.constant 0 : index
    %c0_170 = arith.constant 0 : index
    %c2560_171 = arith.constant 2560 : index
    %322 = vector.load %arg4[%c0_169, %c0_170, %c2560_171] : memref<1x8x4096xf32, #tpu.memory_space<vmem>>, vector<1x8x256xf32>
    %323 = vector.shape_cast %322 : vector<1x8x256xf32> to vector<8x256xf32>
    %324 = vector.shape_cast %321 : vector<8x256xf32> to vector<1x8x256xf32>
    tpu.vector_store %arg4[%c0_169, %c0_170, %c2560_171], %324 {strides = array<i32>} : memref<1x8x4096xf32, #tpu.memory_space<vmem>>, vector<1x8x256xf32>,
    %c0_172 = arith.constant 0 : index
    %c0_173 = arith.constant 0 : index
    %c2816_174 = arith.constant 2816 : index
    %325 = vector.load %arg4[%c0_172, %c0_173, %c2816_174] : memref<1x8x4096xf32, #tpu.memory_space<vmem>>, vector<1x8x256xf32>
    %326 = vector.shape_cast %325 : vector<1x8x256xf32> to vector<8x256xf32>
    %327 = vector.broadcast %203 : vector<8x1xf32> to vector<8x256xf32>
    %328 = arith.mulf %327, %326 : vector<8x256xf32>
    %329 = vector.broadcast %198 : vector<8x1xf32> to vector<8x256xf32>
    %330 = arith.addf %328, %329 : vector<8x256xf32>
    %331 = vector.broadcast %199 : vector<8x1xf32> to vector<8x256xf32>
    %332 = arith.maximumf %330, %331 : vector<8x256xf32>
    %c0_175 = arith.constant 0 : index
    %c0_176 = arith.constant 0 : index
    %c2816_177 = arith.constant 2816 : index
    %333 = vector.load %arg4[%c0_175, %c0_176, %c2816_177] : memref<1x8x4096xf32, #tpu.memory_space<vmem>>, vector<1x8x256xf32>
    %334 = vector.shape_cast %333 : vector<1x8x256xf32> to vector<8x256xf32>
    %335 = vector.shape_cast %332 : vector<8x256xf32> to vector<1x8x256xf32>
    tpu.vector_store %arg4[%c0_175, %c0_176, %c2816_177], %335 {strides = array<i32>} : memref<1x8x4096xf32, #tpu.memory_space<vmem>>, vector<1x8x256xf32>,
    %c0_178 = arith.constant 0 : index
    %c0_179 = arith.constant 0 : index
    %c3072_180 = arith.constant 3072 : index
    %336 = vector.load %arg4[%c0_178, %c0_179, %c3072_180] : memref<1x8x4096xf32, #tpu.memory_space<vmem>>, vector<1x8x256xf32>
    %337 = vector.shape_cast %336 : vector<1x8x256xf32> to vector<8x256xf32>
    %338 = vector.broadcast %203 : vector<8x1xf32> to vector<8x256xf32>
    %339 = arith.mulf %338, %337 : vector<8x256xf32>
    %340 = vector.broadcast %198 : vector<8x1xf32> to vector<8x256xf32>
    %341 = arith.addf %339, %340 : vector<8x256xf32>
    %342 = vector.broadcast %199 : vector<8x1xf32> to vector<8x256xf32>
    %343 = arith.maximumf %341, %342 : vector<8x256xf32>
    %c0_181 = arith.constant 0 : index
    %c0_182 = arith.constant 0 : index
    %c3072_183 = arith.constant 3072 : index
    %344 = vector.load %arg4[%c0_181, %c0_182, %c3072_183] : memref<1x8x4096xf32, #tpu.memory_space<vmem>>, vector<1x8x256xf32>
    %345 = vector.shape_cast %344 : vector<1x8x256xf32> to vector<8x256xf32>
    %346 = vector.shape_cast %343 : vector<8x256xf32> to vector<1x8x256xf32>
    tpu.vector_store %arg4[%c0_181, %c0_182, %c3072_183], %346 {strides = array<i32>} : memref<1x8x4096xf32, #tpu.memory_space<vmem>>, vector<1x8x256xf32>,
    %c0_184 = arith.constant 0 : index
    %c0_185 = arith.constant 0 : index
    %c3328_186 = arith.constant 3328 : index
    %347 = vector.load %arg4[%c0_184, %c0_185, %c3328_186] : memref<1x8x4096xf32, #tpu.memory_space<vmem>>, vector<1x8x256xf32>
    %348 = vector.shape_cast %347 : vector<1x8x256xf32> to vector<8x256xf32>
    %349 = vector.broadcast %203 : vector<8x1xf32> to vector<8x256xf32>
    %350 = arith.mulf %349, %348 : vector<8x256xf32>
    %351 = vector.broadcast %198 : vector<8x1xf32> to vector<8x256xf32>
    %352 = arith.addf %350, %351 : vector<8x256xf32>
    %353 = vector.broadcast %199 : vector<8x1xf32> to vector<8x256xf32>
    %354 = arith.maximumf %352, %353 : vector<8x256xf32>
    %c0_187 = arith.constant 0 : index
    %c0_188 = arith.constant 0 : index
    %c3328_189 = arith.constant 3328 : index
    %355 = vector.load %arg4[%c0_187, %c0_188, %c3328_189] : memref<1x8x4096xf32, #tpu.memory_space<vmem>>, vector<1x8x256xf32>
    %356 = vector.shape_cast %355 : vector<1x8x256xf32> to vector<8x256xf32>
    %357 = vector.shape_cast %354 : vector<8x256xf32> to vector<1x8x256xf32>
    tpu.vector_store %arg4[%c0_187, %c0_188, %c3328_189], %357 {strides = array<i32>} : memref<1x8x4096xf32, #tpu.memory_space<vmem>>, vector<1x8x256xf32>,
    %c0_190 = arith.constant 0 : index
    %c0_191 = arith.constant 0 : index
    %c3584_192 = arith.constant 3584 : index
    %358 = vector.load %arg4[%c0_190, %c0_191, %c3584_192] : memref<1x8x4096xf32, #tpu.memory_space<vmem>>, vector<1x8x256xf32>
    %359 = vector.shape_cast %358 : vector<1x8x256xf32> to vector<8x256xf32>
    %360 = vector.broadcast %203 : vector<8x1xf32> to vector<8x256xf32>
    %361 = arith.mulf %360, %359 : vector<8x256xf32>
    %362 = vector.broadcast %198 : vector<8x1xf32> to vector<8x256xf32>
    %363 = arith.addf %361, %362 : vector<8x256xf32>
    %364 = vector.broadcast %199 : vector<8x1xf32> to vector<8x256xf32>
    %365 = arith.maximumf %363, %364 : vector<8x256xf32>
    %c0_193 = arith.constant 0 : index
    %c0_194 = arith.constant 0 : index
    %c3584_195 = arith.constant 3584 : index
    %366 = vector.load %arg4[%c0_193, %c0_194, %c3584_195] : memref<1x8x4096xf32, #tpu.memory_space<vmem>>, vector<1x8x256xf32>
    %367 = vector.shape_cast %366 : vector<1x8x256xf32> to vector<8x256xf32>
    %368 = vector.shape_cast %365 : vector<8x256xf32> to vector<1x8x256xf32>
    tpu.vector_store %arg4[%c0_193, %c0_194, %c3584_195], %368 {strides = array<i32>} : memref<1x8x4096xf32, #tpu.memory_space<vmem>>, vector<1x8x256xf32>,
    %c0_196 = arith.constant 0 : index
    %c0_197 = arith.constant 0 : index
    %c3840_198 = arith.constant 3840 : index
    %369 = vector.load %arg4[%c0_196, %c0_197, %c3840_198] : memref<1x8x4096xf32, #tpu.memory_space<vmem>>, vector<1x8x256xf32>
    %370 = vector.shape_cast %369 : vector<1x8x256xf32> to vector<8x256xf32>
    %371 = vector.broadcast %203 : vector<8x1xf32> to vector<8x256xf32>
    %372 = arith.mulf %371, %370 : vector<8x256xf32>
    %373 = vector.broadcast %198 : vector<8x1xf32> to vector<8x256xf32>
    %374 = arith.addf %372, %373 : vector<8x256xf32>
    %375 = vector.broadcast %199 : vector<8x1xf32> to vector<8x256xf32>
    %376 = arith.maximumf %374, %375 : vector<8x256xf32>
    %c0_199 = arith.constant 0 : index
    %c0_200 = arith.constant 0 : index
    %c3840_201 = arith.constant 3840 : index
    %377 = vector.load %arg4[%c0_199, %c0_200, %c3840_201] : memref<1x8x4096xf32, #tpu.memory_space<vmem>>, vector<1x8x256xf32>
    %378 = vector.shape_cast %377 : vector<1x8x256xf32> to vector<8x256xf32>
    %379 = vector.shape_cast %376 : vector<8x256xf32> to vector<1x8x256xf32>
    tpu.vector_store %arg4[%c0_199, %c0_200, %c3840_201], %379 {strides = array<i32>} : memref<1x8x4096xf32, #tpu.memory_space<vmem>>, vector<1x8x256xf32>,
    return
  }
  func.func @transform_0(%arg0: i32) -> (i32, i32, i32) {
    %c0_i32 = arith.constant 0 : i32
    %c0_i32_0 = arith.constant 0 : i32
    %c0_i32_1 = arith.constant 0 : i32
    return %arg0, %c0_i32, %c0_i32_0 : i32, i32, i32
  }
  func.func @transform_1(%arg0: i32) -> (i32, i32) {
    %c0_i32 = arith.constant 0 : i32
    %c0_i32_0 = arith.constant 0 : i32
    %c0_i32_1 = arith.constant 0 : i32
    return %c0_i32, %c0_i32_0 : i32, i32
  }
  func.func @transform_2(%arg0: i32) -> (i32, i32) {
    %c0_i32 = arith.constant 0 : i32
    %c0_i32_0 = arith.constant 0 : i32
    %c0_i32_1 = arith.constant 0 : i32
    return %c0_i32, %c0_i32_0 : i32, i32
  }
  func.func @transform_3(%arg0: i32) -> (i32, i32, i32) {
    %c0_i32 = arith.constant 0 : i32
    %c0_i32_0 = arith.constant 0 : i32
    %c0_i32_1 = arith.constant 0 : i32
    return %arg0, %c0_i32, %c0_i32_0 : i32, i32, i32
  }
}

</mosaic_0001>

<llo_original>
// kernel: conv3d_frn_tlu.1
$region0: #{conv3d_frn_tlu.1}
  #allocation0 [shape = 'u32[]', space=smem, size = 0x4, offset = 0x4, fixed_abs, tag = 'smem constant byte address 0x4 - core index']
  #allocation1 [shape = 'u32[144,128]{1,0:T(1,128)}', space=vmem, size = 0x12000, scoped, tag = 'internal scratch']
  %s0 = inlined_call_operand.vmem [shape: bf16[2,864,256], index: 0, kind: input, shape index: {}]
  %s1 = inlined_call_operand.vmem [shape: bf16[8,144], index: 1, kind: input, shape index: {}]
  %s2 = inlined_call_operand.vmem [shape: f32[8,4], index: 2, kind: input, shape index: {}]
  %s3 = inlined_call_operand.vmem [shape: f32[2,8,4096], index: 3, kind: output, shape index: {}]
  %s4 = sld [smem:[#allocation0]]
  $region45: #{conv3d_frn_tlu.1} parent=0
    _
  %s6 = ssub.s32 1, %s4
  %s7 = scalar_select 0, %s6, %s4
  loop: start=0, step=1, limit=4
  $region2: #{conv3d_frn_tlu.1} parent=0 // loop_pre_header
    _
  $region3: #{conv3d_frn_tlu.1} parent=0 // loop_header
    %s9 = sphi 0, %s13
    %p10 = scmp.ge.s32.totalorder %s9, 4
    %s19 = sphi 0, %s21
    %s22 = sphi 0, %s19
    %s23 = sphi 0, %s22
    %s39 = sphi 0, %s23
    %s43 = sphi 0, %s43
    %s45 = sphi 0, %s43
    %s46 = sphi 0, %s45
    %s60 = sphi 0, %s46
    %s64 = sphi 0, %s64
    %s66 = sphi 0, %s64
    %s67 = sphi 0, %s66
    %s81 = sphi 0, %s67
    %s87 = sphi 0, %s89
    %s90 = sphi 0, %s87
    %s91 = sphi 0, %s90
    %s107 = sphi 0, %s91
  $region4: #{conv3d_frn_tlu.1} parent=0 // loop_header_branch
    %12 = sbr.rel (%p10) target = $region8
  $region5: #{conv3d_frn_tlu.1} parent=0 // loop_body
    %s14 = ssub.s32 %s9, 1
    %s15 = ssub.s32 %s9, 2
    %s16 = sadd.s32 %s9, 1
    %s17 = ssub.s32 %s9, %s16
    %p18 = scmp.eq.s32.totalorder %s17, 0
    %s20 = sadd.s32 %s19, 1
    %s21 = scalar_select %p18, %s19, %s20
    %p24 = pneg %p18
    %p25 = scmp.eq.s32.totalorder %s9, 1
    %p26 = por %p24, %p25
    %p27 = scmp.ne.s32.totalorder %s19, %s22
    %p28 = scmp.eq.s32.totalorder %s9, 0
    %p29 = por %p27, %p28
    %p30 = scmp.ne.s32.totalorder %s19, %s22
    %p31 = scmp.eq.s32.totalorder %s14, 1
    %p32 = por %p30, %p31
    %p33 = scmp.ne.s32.totalorder %s22, %s23
    %p34 = scmp.eq.s32.totalorder %s14, 0
    %p35 = por %p33, %p34
    %p36 = scmp.ne.s32.totalorder %s22, %s23
    %p37 = scmp.eq.s32.totalorder %s15, 1
    %p38 = por %p36, %p37
    %p40 = scmp.ne.s32.totalorder %s23, %s39
    %p41 = scmp.eq.s32.totalorder %s15, 0
    %p42 = por %p40, %p41
    %s44 = sadd.s32 %s43, 1
    %p47 = scmp.eq.s32.totalorder %s9, 1
    %p48 = scmp.ne.s32.totalorder %s43, %s45
    %p49 = scmp.eq.s32.totalorder %s9, 0
    %p50 = por %p48, %p49
    %p51 = scmp.ne.s32.totalorder %s43, %s45
    %p52 = scmp.eq.s32.totalorder %s14, 1
    %p53 = por %p51, %p52
    %p54 = scmp.ne.s32.totalorder %s45, %s46
    %p55 = scmp.eq.s32.totalorder %s14, 0
    %p56 = por %p54, %p55
    %p57 = scmp.ne.s32.totalorder %s45, %s46
    %p58 = scmp.eq.s32.totalorder %s15, 1
    %p59 = por %p57, %p58
    %p61 = scmp.ne.s32.totalorder %s46, %s60
    %p62 = scmp.eq.s32.totalorder %s15, 0
    %p63 = por %p61, %p62
    %s65 = sadd.s32 %s64, 1
    %p68 = scmp.eq.s32.totalorder %s9, 1
    %p69 = scmp.ne.s32.totalorder %s64, %s66
    %p70 = scmp.eq.s32.totalorder %s9, 0
    %p71 = por %p69, %p70
    %p72 = scmp.ne.s32.totalorder %s64, %s66
    %p73 = scmp.eq.s32.totalorder %s14, 1
    %p74 = por %p72, %p73
    %p75 = scmp.ne.s32.totalorder %s66, %s67
    %p76 = scmp.eq.s32.totalorder %s14, 0
    %p77 = por %p75, %p76
    %p78 = scmp.ne.s32.totalorder %s66, %s67
    %p79 = scmp.eq.s32.totalorder %s15, 1
    %p80 = por %p78, %p79
    %p82 = scmp.ne.s32.totalorder %s67, %s81
    %p83 = scmp.eq.s32.totalorder %s15, 0
    %p84 = por %p82, %p83
    %s85 = ssub.s32 %s9, %s16
    %p86 = scmp.eq.s32.totalorder %s85, 0
    %s88 = sadd.s32 %s87, 1
    %s89 = scalar_select %p86, %s87, %s88
    %p92 = pneg %p86
    %p93 = scmp.eq.s32.totalorder %s9, 1
    %p94 = por %p92, %p93
    %p95 = scmp.ne.s32.totalorder %s87, %s90
    %p96 = scmp.eq.s32.totalorder %s9, 0
    %p97 = por %p95, %p96
    %p98 = scmp.ne.s32.totalorder %s87, %s90
    %p99 = scmp.eq.s32.totalorder %s14, 1
    %p100 = por %p98, %p99
    %p101 = scmp.ne.s32.totalorder %s90, %s91
    %p102 = scmp.eq.s32.totalorder %s14, 0
    %p103 = por %p101, %p102
    %p104 = scmp.ne.s32.totalorder %s90, %s91
    %p105 = scmp.eq.s32.totalorder %s15, 1
    %p106 = por %p104, %p105
    %p108 = scmp.ne.s32.totalorder %s91, %s107
    %p109 = scmp.eq.s32.totalorder %s15, 0
    %p110 = por %p108, %p109
    %p111 = scmp.le.s32.totalorder 1, %s9
    %p112 = scmp.lt.s32.totalorder %s9, 3
    %p113 = pnand %p111, %p112
    %p114 = pneg %p113
    // Predicated region
    $region9: #{conv3d_frn_tlu.1} parent=5 // pred_check
      _
    $region10: #{conv3d_frn_tlu.1} parent=5 // pred_check_branch
      %116 = sbr.rel (%p113) target = $region12
    $region11: #{conv3d_frn_tlu.1} parent=5 // pred_region
      %s117 = ssub.s32 %s9, 1
      // Predicated region
      $region13: #{conv3d_frn_tlu.1} parent=11 // pred_check
        %p118 = pneg %p56
      $region14: #{conv3d_frn_tlu.1} parent=11 // pred_check_branch
        %120 = sbr.rel (%p118) target = $region16
      $region15: #{conv3d_frn_tlu.1} parent=11 // pred_region
        _
      $region16: #{conv3d_frn_tlu.1} parent=11 // pred_fallthru
        _
      // Predicated region
      $region17: #{conv3d_frn_tlu.1} parent=11 // pred_check
        %p121 = pneg %p77
      $region18: #{conv3d_frn_tlu.1} parent=11 // pred_check_branch
        %123 = sbr.rel (%p121) target = $region20
      $region19: #{conv3d_frn_tlu.1} parent=11 // pred_region
        _
      $region20: #{conv3d_frn_tlu.1} parent=11 // pred_fallthru
        _
    $region12: #{conv3d_frn_tlu.1} parent=5 // pred_fallthru
      _
    %p124 = scmp.lt.s32.totalorder %s9, 2
    // Predicated region
    $region21: #{conv3d_frn_tlu.1} parent=5 // pred_check
      %p125 = pneg %p124
    $region22: #{conv3d_frn_tlu.1} parent=5 // pred_check_branch
      %127 = sbr.rel (%p125) target = $region24
    $region23: #{conv3d_frn_tlu.1} parent=5 // pred_region
      // Predicated region
      $region25: #{conv3d_frn_tlu.1} parent=23 // pred_check
        %p128 = pneg %p29
      $region26: #{conv3d_frn_tlu.1} parent=23 // pred_check_branch
        %130 = sbr.rel (%p128) target = $region28
      $region27: #{conv3d_frn_tlu.1} parent=23 // pred_region
        %p131 = scmp.lt.s32.totalorder %s9, 1
        %s132 = scalar_select %p131, %s9, 1
        %s133 = smul.addr %s132, 216
        %s134 = smul.addr %s133, 4
        %s135 = scalar_lea.vmem %s0, %s134
      $region28: #{conv3d_frn_tlu.1} parent=23 // pred_fallthru
        _
    $region24: #{conv3d_frn_tlu.1} parent=5 // pred_fallthru
      _
    %p136 = scmp.le.s32.totalorder 1, %s9
    %p137 = scmp.lt.s32.totalorder %s9, 3
    %p138 = pnand %p136, %p137
    %p139 = pneg %p138
    // Predicated region
    $region29: #{conv3d_frn_tlu.1} parent=5 // pred_check
      _
    $region30: #{conv3d_frn_tlu.1} parent=5 // pred_check_branch
      %141 = sbr.rel (%p138) target = $region32
    $region31: #{conv3d_frn_tlu.1} parent=5 // pred_region
      %s142 = ssub.s32 %s9, 1
      %p143 = scmp.lt.s32.totalorder %s14, 1
      %s144 = scalar_select %p143, %s14, 1
      %s145 = smul.addr %s144, 216
      %s146 = smul.addr %s145, 4
      %s147 = scalar_lea.vmem %s0, %s146
      %p148 = pneg %p35
      %p149 = pneg %p32
      %p150 = pneg %p56
      %p151 = pneg %p53
      %p152 = pneg %p77
      %p153 = pneg %p74
      %p154 = pneg %p103
      %p155 = pneg %p100
      %p156 = scmp.lt.s32.totalorder %s14, 1
      %s157 = scalar_select %p156, %s14, 1
      %s158 = smul.addr %s157, 32
      %s159 = smul.addr %s158, 8
      %s160 = scalar_lea.vmem %s3, %s159
      %p161 = scmp.lt.s32.totalorder %s14, 1
      %s162 = scalar_select %p161, %s14, 1
      %s163 = smul.addr %s162, 216
      %s164 = smul.addr %s163, 4
      %s165 = scalar_lea.vmem %s0, %s164
      %p166 = scmp.lt.s32.totalorder %s14, 1
      %s167 = scalar_select %p166, %s14, 1
      %s168 = smul.addr %s167, 32
      %s169 = smul.addr %s168, 8
      %s170 = scalar_lea.vmem %s3, %s169
      %v172 = vld [vmem:[%s1] sm:$0xff]
      %v173 = vld [vmem:[%s2] sm:$0xff]
      %v174 = vld [vmem:[%s165] sm:$0xff]
      %v175 = vld [vmem:[%s165 + $0x8] sm:$0xff]
      %v176 = vld [vmem:[%s165 + $0x10] sm:$0xff]
      %v177 = vld [vmem:[%s165 + $0x18] sm:$0xff]
      %v178 = vld [vmem:[%s165 + $0x20] sm:$0xff]
      %v179 = vld [vmem:[%s165 + $0x28] sm:$0xff]
      %v180 = vld [vmem:[%s165 + $0x30] sm:$0xff]
      %v181 = vld [vmem:[%s165 + $0x38] sm:$0xff]
      %v182 = vld [vmem:[%s165 + $0x40] sm:$0xff]
      %v183 = vld [vmem:[%s165 + $0x48] sm:$0xff]
      %v184 = vld [vmem:[%s165 + $0x50] sm:$0xff]
      %v185 = vld [vmem:[%s165 + $0x58] sm:$0xff]
      %v186 = vld [vmem:[%s165 + $0x60] sm:$0xff]
      %v187 = vld [vmem:[%s165 + $0x68] sm:$0xff]
      %v188 = vld [vmem:[%s165 + $0x70] sm:$0xff]
      %v189 = vld [vmem:[%s165 + $0x78] sm:$0xff]
      %v190 = vld [vmem:[%s165 + $0x80] sm:$0xff]
      %v191 = vld [vmem:[%s165 + $0x88] sm:$0xff]
      %193 = vset.pattern.permute.xlu0 0
      %194 = vperm.xlu0 %193, %v173
      %v195 = vpop.permute.xlu0 %194
      %v198 = vunpack.c.l.b16 %v172
      %v199 = vunpack.c.h.b16 %v172
      %v200 = vpack.c.b16 %v198, %v198
      %v201 = vpack.c.b16 %v199, %v199
      %v221 = vunpack.c.l.b16 %v174
      %v222 = vunpack.c.h.b16 %v174
      %v223 = vunpack.c.l.b16 %v175
      %v224 = vunpack.c.h.b16 %v175
      %v225 = vunpack.c.l.b16 %v176
      %v226 = vunpack.c.h.b16 %v176
      %v227 = vunpack.c.l.b16 %v177
      %v228 = vunpack.c.h.b16 %v177
      %v229 = vunpack.c.l.b16 %v178
      %v230 = vunpack.c.h.b16 %v178
      %v231 = vunpack.c.l.b16 %v179
      %v232 = vunpack.c.h.b16 %v179
      %v233 = vunpack.c.l.b16 %v180
      %v234 = vunpack.c.h.b16 %v180
      %v235 = vunpack.c.l.b16 %v181
      %v236 = vunpack.c.h.b16 %v181
      %v237 = vunpack.c.l.b16 %v182
      %v238 = vunpack.c.h.b16 %v182
      %v239 = vunpack.c.l.b16 %v183
      %v240 = vunpack.c.h.b16 %v183
      %v241 = vunpack.c.l.b16 %v184
      %v242 = vunpack.c.h.b16 %v184
      %v243 = vunpack.c.l.b16 %v185
      %v244 = vunpack.c.h.b16 %v185
      %v245 = vunpack.c.l.b16 %v186
      %v246 = vunpack.c.h.b16 %v186
      %v247 = vunpack.c.l.b16 %v187
      %v248 = vunpack.c.h.b16 %v187
      %v249 = vunpack.c.l.b16 %v188
      %v250 = vunpack.c.h.b16 %v188
      %v251 = vunpack.c.l.b16 %v189
      %v252 = vunpack.c.h.b16 %v189
      %v253 = vunpack.c.l.b16 %v190
      %v254 = vunpack.c.h.b16 %v190
      %v255 = vunpack.c.l.b16 %v191
      %v256 = vunpack.c.h.b16 %v191
      %v257 = vpack.c.b16 %v223, %v221
      %v258 = vpack.c.b16 %v224, %v222
      %v259 = vpack.c.b16 %v227, %v225
      %v260 = vpack.c.b16 %v228, %v226
      %v261 = vpack.c.b16 %v231, %v229
      %v262 = vpack.c.b16 %v232, %v230
      %v263 = vpack.c.b16 %v235, %v233
      %v264 = vpack.c.b16 %v236, %v234
      %v265 = vpack.c.b16 %v239, %v237
      %v266 = vpack.c.b16 %v240, %v238
      %v267 = vpack.c.b16 %v243, %v241
      %v268 = vpack.c.b16 %v244, %v242
      %v269 = vpack.c.b16 %v247, %v245
      %v270 = vpack.c.b16 %v248, %v246
      %v271 = vpack.c.b16 %v251, %v249
      %v272 = vpack.c.b16 %v252, %v250
      %v273 = vpack.c.b16 %v255, %v253
      %v274 = vpack.c.b16 %v256, %v254
      %vm293 = vcmask 130048
      %v295 = vsel %vm293, %v201, 0
      %297 = vmatprep.subr.bf16.mxu0 %v272
      %298 = vmatpush1.bf16.msra.mxu0 %v271
      %299 = vmatprep.subr.bf16.mxu0 %v270
      %300 = vmatpush1.bf16.msra.mxu0 %v269
      %301 = vmatprep.subr.bf16.mxu0 %v268
      %302 = vmatpush1.bf16.msra.mxu0 %v267
      %303 = vmatprep.subr.bf16.mxu0 %v266
      %304 = vmatpush1.bf16.msra.mxu0 %v265
      %305 = vmatprep.subr.bf16.mxu0 %v264
      %306 = vmatpush1.bf16.msra.mxu0 %v263
      %307 = vmatprep.subr.bf16.mxu0 %v262
      %308 = vmatpush1.bf16.msra.mxu0 %v261
      %309 = vmatprep.subr.bf16.mxu0 %v260
      %310 = vmatpush1.bf16.msra.mxu0 %v259
      %311 = vmatprep.subr.bf16.mxu0 %v258
      %312 = vmatpush1.bf16.msra.mxu0 %v257
      %313 = vmatprep.subr.bf16.mxu0 0
      %314 = vmatpush2.bf16.msra.mxu0 0
      %315 = vmatprep.subr.bf16.mxu0 0
      %316 = vmatpush2.bf16.msra.mxu0 0
      %317 = vmatprep.subr.bf16.mxu0 0
      %318 = vmatpush2.bf16.msra.mxu0 0
      %319 = vmatprep.subr.bf16.mxu0 0
      %320 = vmatpush2.bf16.msra.mxu0 0
      %321 = vmatprep.subr.bf16.mxu0 0
      %322 = vmatpush2.bf16.msra.mxu0 0
      %323 = vmatprep.subr.bf16.mxu0 0
      %324 = vmatpush2.bf16.msra.mxu0 0
      %325 = vmatprep.subr.bf16.mxu0 0
      %326 = vmatpush2.bf16.msra.mxu0 0
      %327 = vmatprep.subr.bf16.mxu0 %v274
      %328 = vmatpush2.bf16.msra.mxu0 %v273
      %329 = vmatprep.mubr.bf16.mxu0 %v295
      %330 = vmatmul.mubr.bf16.gmra.mxu0 %v200
      %v331 = vpop.f32.mrf.mxu0
      %v332 = vadd.f32 %v195, %v331
      %v333 = vpop.f32.mrf.mxu0
      %v334 = vadd.f32 %v195, %v333
      %v335 = vpop.f32.mrf.mxu0
      %v336 = vpop.f32.mrf.mxu0
      %337 = vdwg.mxu0
      %338 = vst [vmem:[%s170] sm:$0xff] %v332
      %339 = vst [vmem:[%s170 + $0x8] sm:$0xff] %v334
      %v340 = vmul.f32 %v332, %v332
      %v341 = vmul.f32 %v334, %v334
      %v342 = vadd.f32 %v340, %v341
      %343 = vadd.xlane.f32.xlu0 %v342
      %v344 = vpop.xlane.xlu0 %343
      %v345 = vadd.f32 %v344, 0.0
      %v346 = vld [vmem:[%s165 + $0x30] sm:$0xff]
      %v347 = vld [vmem:[%s165 + $0x38] sm:$0xff]
      %v348 = vld [vmem:[%s165 + $0x40] sm:$0xff]
      %v349 = vld [vmem:[%s165 + $0x48] sm:$0xff]
      %v350 = vld [vmem:[%s165 + $0x50] sm:$0xff]
      %v351 = vld [vmem:[%s165 + $0x58] sm:$0xff]
      %v352 = vld [vmem:[%s165 + $0x60] sm:$0xff]
      %v353 = vld [vmem:[%s165 + $0x68] sm:$0xff]
      %v354 = vld [vmem:[%s165 + $0x70] sm:$0xff]
      %v355 = vld [vmem:[%s165 + $0x78] sm:$0xff]
      %v356 = vld [vmem:[%s165 + $0x80] sm:$0xff]
      %v357 = vld [vmem:[%s165 + $0x88] sm:$0xff]
      %v358 = vld [vmem:[%s165 + $0x90] sm:$0xff]
      %v359 = vld [vmem:[%s165 + $0x98] sm:$0xff]
      %v360 = vld [vmem:[%s165 + $0xa0] sm:$0xff]
      %v361 = vld [vmem:[%s165 + $0xa8] sm:$0xff]
      %v362 = vld [vmem:[%s165 + $0xb0] sm:$0xff]
      %v363 = vld [vmem:[%s165 + $0xb8] sm:$0xff]
      %v382 = vunpack.c.l.b16 %v346
      %v383 = vunpack.c.h.b16 %v346
      %v384 = vunpack.c.l.b16 %v347
      %v385 = vunpack.c.h.b16 %v347
      %v386 = vunpack.c.l.b16 %v348
      %v387 = vunpack.c.h.b16 %v348
      %v388 = vunpack.c.l.b16 %v349
      %v389 = vunpack.c.h.b16 %v349
      %v390 = vunpack.c.l.b16 %v350
      %v391 = vunpack.c.h.b16 %v350
      %v392 = vunpack.c.l.b16 %v351
      %v393 = vunpack.c.h.b16 %v351
      %v394 = vunpack.c.l.b16 %v352
      %v395 = vunpack.c.h.b16 %v352
      %v396 = vunpack.c.l.b16 %v353
      %v397 = vunpack.c.h.b16 %v353
      %v398 = vunpack.c.l.b16 %v354
      %v399 = vunpack.c.h.b16 %v354
      %v400 = vunpack.c.l.b16 %v355
      %v401 = vunpack.c.h.b16 %v355
      %v402 = vunpack.c.l.b16 %v356
      %v403 = vunpack.c.h.b16 %v356
      %v404 = vunpack.c.l.b16 %v357
      %v405 = vunpack.c.h.b16 %v357
      %v406 = vunpack.c.l.b16 %v358
      %v407 = vunpack.c.h.b16 %v358
      %v408 = vunpack.c.l.b16 %v359
      %v409 = vunpack.c.h.b16 %v359
      %v410 = vunpack.c.l.b16 %v360
      %v411 = vunpack.c.h.b16 %v360
      %v412 = vunpack.c.l.b16 %v361
      %v413 = vunpack.c.h.b16 %v361
      %v414 = vunpack.c.l.b16 %v362
      %v415 = vunpack.c.h.b16 %v362
      %v416 = vunpack.c.l.b16 %v363
      %v417 = vunpack.c.h.b16 %v363
      %v418 = vpack.c.b16 %v384, %v382
      %v419 = vpack.c.b16 %v385, %v383
      %v420 = vpack.c.b16 %v388, %v386
      %v421 = vpack.c.b16 %v389, %v387
      %v422 = vpack.c.b16 %v392, %v390
      %v423 = vpack.c.b16 %v393, %v391
      %v424 = vpack.c.b16 %v396, %v394
      %v425 = vpack.c.b16 %v397, %v395
      %v426 = vpack.c.b16 %v400, %v398
      %v427 = vpack.c.b16 %v401, %v399
      %v428 = vpack.c.b16 %v404, %v402
      %v429 = vpack.c.b16 %v405, %v403
      %v430 = vpack.c.b16 %v408, %v406
      %v431 = vpack.c.b16 %v409, %v407
      %v432 = vpack.c.b16 %v412, %v410
      %v433 = vpack.c.b16 %v413, %v411
      %v434 = vpack.c.b16 %v416, %v414
      %v435 = vpack.c.b16 %v417, %v415
      %454 = vmatprep.subr.bf16.mxu0 %v433
      %455 = vmatpush1.bf16.msra.mxu0 %v432
      %456 = vmatprep.subr.bf16.mxu0 %v431
      %457 = vmatpush1.bf16.msra.mxu0 %v430
      %458 = vmatprep.subr.bf16.mxu0 %v429
      %459 = vmatpush1.bf16.msra.mxu0 %v428
      %460 = vmatprep.subr.bf16.mxu0 %v427
      %461 = vmatpush1.bf16.msra.mxu0 %v426
      %462 = vmatprep.subr.bf16.mxu0 %v425
      %463 = vmatpush1.bf16.msra.mxu0 %v424
      %464 = vmatprep.subr.bf16.mxu0 %v423
      %465 = vmatpush1.bf16.msra.mxu0 %v422
      %466 = vmatprep.subr.bf16.mxu0 %v421
      %467 = vmatpush1.bf16.msra.mxu0 %v420
      %468 = vmatprep.subr.bf16.mxu0 %v419
      %469 = vmatpush1.bf16.msra.mxu0 %v418
      %470 = vmatprep.subr.bf16.mxu0 0
      %471 = vmatpush2.bf16.msra.mxu0 0
      %472 = vmatprep.subr.bf16.mxu0 0
      %473 = vmatpush2.bf16.msra.mxu0 0
      %474 = vmatprep.subr.bf16.mxu0 0
      %475 = vmatpush2.bf16.msra.mxu0 0
      %476 = vmatprep.subr.bf16.mxu0 0
      %477 = vmatpush2.bf16.msra.mxu0 0
      %478 = vmatprep.subr.bf16.mxu0 0
      %479 = vmatpush2.bf16.msra.mxu0 0
      %480 = vmatprep.subr.bf16.mxu0 0
      %481 = vmatpush2.bf16.msra.mxu0 0
      %482 = vmatprep.subr.bf16.mxu0 0
      %483 = vmatpush2.bf16.msra.mxu0 0
      %484 = vmatprep.subr.bf16.mxu0 %v435
      %485 = vmatpush2.bf16.msra.mxu0 %v434
      %486 = vmatprep.mubr.bf16.mxu0 %v295
      %487 = vmatmul.mubr.bf16.gmra.mxu0 %v200
      %v488 = vpop.f32.mrf.mxu0
      %v489 = vadd.f32 %v195, %v488
      %v490 = vpop.f32.mrf.mxu0
      %v491 = vadd.f32 %v195, %v490
      %v492 = vpop.f32.mrf.mxu0
      %v493 = vpop.f32.mrf.mxu0
      %494 = vdwg.mxu0
      %495 = vst [vmem:[%s170 + $0x10] sm:$0xff] %v489
      %496 = vst [vmem:[%s170 + $0x18] sm:$0xff] %v491
      %v497 = vmul.f32 %v489, %v489
      %v498 = vmul.f32 %v491, %v491
      %v499 = vadd.f32 %v497, %v498
      %500 = vadd.xlane.f32.xlu0 %v499
      %v501 = vpop.xlane.xlu0 %500
      %v502 = vadd.f32 %v345, %v501
      %v503 = vld [vmem:[%s165 + $0x60] sm:$0xff]
      %v504 = vld [vmem:[%s165 + $0x68] sm:$0xff]
      %v505 = vld [vmem:[%s165 + $0x70] sm:$0xff]
      %v506 = vld [vmem:[%s165 + $0x78] sm:$0xff]
      %v507 = vld [vmem:[%s165 + $0x80] sm:$0xff]
      %v508 = vld [vmem:[%s165 + $0x88] sm:$0xff]
      %v509 = vld [vmem:[%s165 + $0x90] sm:$0xff]
      %v510 = vld [vmem:[%s165 + $0x98] sm:$0xff]
      %v511 = vld [vmem:[%s165 + $0xa0] sm:$0xff]
      %v512 = vld [vmem:[%s165 + $0xa8] sm:$0xff]
      %v513 = vld [vmem:[%s165 + $0xb0] sm:$0xff]
      %v514 = vld [vmem:[%s165 + $0xb8] sm:$0xff]
      %v515 = vld [vmem:[%s165 + $0xc0] sm:$0xff]
      %v516 = vld [vmem:[%s165 + $0xc8] sm:$0xff]
      %v517 = vld [vmem:[%s165 + $0xd0] sm:$0xff]
      %v518 = vld [vmem:[%s165 + $0xd8] sm:$0xff]
      %v519 = vld [vmem:[%s165 + $0xe0] sm:$0xff]
      %v520 = vld [vmem:[%s165 + $0xe8] sm:$0xff]
      %v539 = vunpack.c.l.b16 %v503
      %v540 = vunpack.c.h.b16 %v503
      %v541 = vunpack.c.l.b16 %v504
      %v542 = vunpack.c.h.b16 %v504
      %v543 = vunpack.c.l.b16 %v505
      %v544 = vunpack.c.h.b16 %v505
      %v545 = vunpack.c.l.b16 %v506
      %v546 = vunpack.c.h.b16 %v506
      %v547 = vunpack.c.l.b16 %v507
      %v548 = vunpack.c.h.b16 %v507
      %v549 = vunpack.c.l.b16 %v508
      %v550 = vunpack.c.h.b16 %v508
      %v551 = vunpack.c.l.b16 %v509
      %v552 = vunpack.c.h.b16 %v509
      %v553 = vunpack.c.l.b16 %v510
      %v554 = vunpack.c.h.b16 %v510
      %v555 = vunpack.c.l.b16 %v511
      %v556 = vunpack.c.h.b16 %v511
      %v557 = vunpack.c.l.b16 %v512
      %v558 = vunpack.c.h.b16 %v512
      %v559 = vunpack.c.l.b16 %v513
      %v560 = vunpack.c.h.b16 %v513
      %v561 = vunpack.c.l.b16 %v514
      %v562 = vunpack.c.h.b16 %v514
      %v563 = vunpack.c.l.b16 %v515
      %v564 = vunpack.c.h.b16 %v515
      %v565 = vunpack.c.l.b16 %v516
      %v566 = vunpack.c.h.b16 %v516
      %v567 = vunpack.c.l.b16 %v517
      %v568 = vunpack.c.h.b16 %v517
      %v569 = vunpack.c.l.b16 %v518
      %v570 = vunpack.c.h.b16 %v518
      %v571 = vunpack.c.l.b16 %v519
      %v572 = vunpack.c.h.b16 %v519
      %v573 = vunpack.c.l.b16 %v520
      %v574 = vunpack.c.h.b16 %v520
      %v575 = vpack.c.b16 %v541, %v539
      %v576 = vpack.c.b16 %v542, %v540
      %v577 = vpack.c.b16 %v545, %v543
      %v578 = vpack.c.b16 %v546, %v544
      %v579 = vpack.c.b16 %v549, %v547
      %v580 = vpack.c.b16 %v550, %v548
      %v581 = vpack.c.b16 %v553, %v551
      %v582 = vpack.c.b16 %v554, %v552
      %v583 = vpack.c.b16 %v557, %v555
      %v584 = vpack.c.b16 %v558, %v556
      %v585 = vpack.c.b16 %v561, %v559
      %v586 = vpack.c.b16 %v562, %v560
      %v587 = vpack.c.b16 %v565, %v563
      %v588 = vpack.c.b16 %v566, %v564
      %v589 = vpack.c.b16 %v569, %v567
      %v590 = vpack.c.b16 %v570, %v568
      %v591 = vpack.c.b16 %v573, %v571
      %v592 = vpack.c.b16 %v574, %v572
      %611 = vmatprep.subr.bf16.mxu0 %v590
      %612 = vmatpush1.bf16.msra.mxu0 %v589
      %613 = vmatprep.subr.bf16.mxu0 %v588
      %614 = vmatpush1.bf16.msra.mxu0 %v587
      %615 = vmatprep.subr.bf16.mxu0 %v586
      %616 = vmatpush1.bf16.msra.mxu0 %v585
      %617 = vmatprep.subr.bf16.mxu0 %v584
      %618 = vmatpush1.bf16.msra.mxu0 %v583
      %619 = vmatprep.subr.bf16.mxu0 %v582
      %620 = vmatpush1.bf16.msra.mxu0 %v581
      %621 = vmatprep.subr.bf16.mxu0 %v580
      %622 = vmatpush1.bf16.msra.mxu0 %v579
      %623 = vmatprep.subr.bf16.mxu0 %v578
      %624 = vmatpush1.bf16.msra.mxu0 %v577
      %625 = vmatprep.subr.bf16.mxu0 %v576
      %626 = vmatpush1.bf16.msra.mxu0 %v575
      %627 = vmatprep.subr.bf16.mxu0 0
      %628 = vmatpush2.bf16.msra.mxu0 0
      %629 = vmatprep.subr.bf16.mxu0 0
      %630 = vmatpush2.bf16.msra.mxu0 0
      %631 = vmatprep.subr.bf16.mxu0 0
      %632 = vmatpush2.bf16.msra.mxu0 0
      %633 = vmatprep.subr.bf16.mxu0 0
      %634 = vmatpush2.bf16.msra.mxu0 0
      %635 = vmatprep.subr.bf16.mxu0 0
      %636 = vmatpush2.bf16.msra.mxu0 0
      %637 = vmatprep.subr.bf16.mxu0 0
      %638 = vmatpush2.bf16.msra.mxu0 0
      %639 = vmatprep.subr.bf16.mxu0 0
      %640 = vmatpush2.bf16.msra.mxu0 0
      %641 = vmatprep.subr.bf16.mxu0 %v592
      %642 = vmatpush2.bf16.msra.mxu0 %v591
      %643 = vmatprep.mubr.bf16.mxu0 %v295
      %644 = vmatmul.mubr.bf16.gmra.mxu0 %v200
      %v645 = vpop.f32.mrf.mxu0
      %v646 = vadd.f32 %v195, %v645
      %v647 = vpop.f32.mrf.mxu0
      %v648 = vadd.f32 %v195, %v647
      %v649 = vpop.f32.mrf.mxu0
      %v650 = vpop.f32.mrf.mxu0
      %651 = vdwg.mxu0
      %652 = vst [vmem:[%s170 + $0x20] sm:$0xff] %v646
      %653 = vst [vmem:[%s170 + $0x28] sm:$0xff] %v648
      %v654 = vmul.f32 %v646, %v646
      %v655 = vmul.f32 %v648, %v648
      %v656 = vadd.f32 %v654, %v655
      %657 = vadd.xlane.f32.xlu0 %v656
      %v658 = vpop.xlane.xlu0 %657
      %v659 = vadd.f32 %v502, %v658
      %v660 = vld [vmem:[%s165 + $0x90] sm:$0xff]
      %v661 = vld [vmem:[%s165 + $0x98] sm:$0xff]
      %v662 = vld [vmem:[%s165 + $0xa0] sm:$0xff]
      %v663 = vld [vmem:[%s165 + $0xa8] sm:$0xff]
      %v664 = vld [vmem:[%s165 + $0xb0] sm:$0xff]
      %v665 = vld [vmem:[%s165 + $0xb8] sm:$0xff]
      %v666 = vld [vmem:[%s165 + $0xc0] sm:$0xff]
      %v667 = vld [vmem:[%s165 + $0xc8] sm:$0xff]
      %v668 = vld [vmem:[%s165 + $0xd0] sm:$0xff]
      %v669 = vld [vmem:[%s165 + $0xd8] sm:$0xff]
      %v670 = vld [vmem:[%s165 + $0xe0] sm:$0xff]
      %v671 = vld [vmem:[%s165 + $0xe8] sm:$0xff]
      %v672 = vld [vmem:[%s165 + $0xf0] sm:$0xff]
      %v673 = vld [vmem:[%s165 + $0xf8] sm:$0xff]
      %v674 = vld [vmem:[%s165 + $0x100] sm:$0xff]
      %v675 = vld [vmem:[%s165 + $0x108] sm:$0xff]
      %v676 = vld [vmem:[%s165 + $0x110] sm:$0xff]
      %v677 = vld [vmem:[%s165 + $0x118] sm:$0xff]
      %v696 = vunpack.c.l.b16 %v660
      %v697 = vunpack.c.h.b16 %v660
      %v698 = vunpack.c.l.b16 %v661
      %v699 = vunpack.c.h.b16 %v661
      %v700 = vunpack.c.l.b16 %v662
      %v701 = vunpack.c.h.b16 %v662
      %v702 = vunpack.c.l.b16 %v663
      %v703 = vunpack.c.h.b16 %v663
      %v704 = vunpack.c.l.b16 %v664
      %v705 = vunpack.c.h.b16 %v664
      %v706 = vunpack.c.l.b16 %v665
      %v707 = vunpack.c.h.b16 %v665
      %v708 = vunpack.c.l.b16 %v666
      %v709 = vunpack.c.h.b16 %v666
      %v710 = vunpack.c.l.b16 %v667
      %v711 = vunpack.c.h.b16 %v667
      %v712 = vunpack.c.l.b16 %v668
      %v713 = vunpack.c.h.b16 %v668
      %v714 = vunpack.c.l.b16 %v669
      %v715 = vunpack.c.h.b16 %v669
      %v716 = vunpack.c.l.b16 %v670
      %v717 = vunpack.c.h.b16 %v670
      %v718 = vunpack.c.l.b16 %v671
      %v719 = vunpack.c.h.b16 %v671
      %v720 = vunpack.c.l.b16 %v672
      %v721 = vunpack.c.h.b16 %v672
      %v722 = vunpack.c.l.b16 %v673
      %v723 = vunpack.c.h.b16 %v673
      %v724 = vunpack.c.l.b16 %v674
      %v725 = vunpack.c.h.b16 %v674
      %v726 = vunpack.c.l.b16 %v675
      %v727 = vunpack.c.h.b16 %v675
      %v728 = vunpack.c.l.b16 %v676
      %v729 = vunpack.c.h.b16 %v676
      %v730 = vunpack.c.l.b16 %v677
      %v731 = vunpack.c.h.b16 %v677
      %v732 = vpack.c.b16 %v698, %v696
      %v733 = vpack.c.b16 %v699, %v697
      %v734 = vpack.c.b16 %v702, %v700
      %v735 = vpack.c.b16 %v703, %v701
      %v736 = vpack.c.b16 %v706, %v704
      %v737 = vpack.c.b16 %v707, %v705
      %v738 = vpack.c.b16 %v710, %v708
      %v739 = vpack.c.b16 %v711, %v709
      %v740 = vpack.c.b16 %v714, %v712
      %v741 = vpack.c.b16 %v715, %v713
      %v742 = vpack.c.b16 %v718, %v716
      %v743 = vpack.c.b16 %v719, %v717
      %v744 = vpack.c.b16 %v722, %v720
      %v745 = vpack.c.b16 %v723, %v721
      %v746 = vpack.c.b16 %v726, %v724
      %v747 = vpack.c.b16 %v727, %v725
      %v748 = vpack.c.b16 %v730, %v728
      %v749 = vpack.c.b16 %v731, %v729
      %768 = vmatprep.subr.bf16.mxu0 %v747
      %769 = vmatpush1.bf16.msra.mxu0 %v746
      %770 = vmatprep.subr.bf16.mxu0 %v745
      %771 = vmatpush1.bf16.msra.mxu0 %v744
      %772 = vmatprep.subr.bf16.mxu0 %v743
      %773 = vmatpush1.bf16.msra.mxu0 %v742
      %774 = vmatprep.subr.bf16.mxu0 %v741
      %775 = vmatpush1.bf16.msra.mxu0 %v740
      %776 = vmatprep.subr.bf16.mxu0 %v739
      %777 = vmatpush1.bf16.msra.mxu0 %v738
      %778 = vmatprep.subr.bf16.mxu0 %v737
      %779 = vmatpush1.bf16.msra.mxu0 %v736
      %780 = vmatprep.subr.bf16.mxu0 %v735
      %781 = vmatpush1.bf16.msra.mxu0 %v734
      %782 = vmatprep.subr.bf16.mxu0 %v733
      %783 = vmatpush1.bf16.msra.mxu0 %v732
      %784 = vmatprep.subr.bf16.mxu0 0
      %785 = vmatpush2.bf16.msra.mxu0 0
      %786 = vmatprep.subr.bf16.mxu0 0
      %787 = vmatpush2.bf16.msra.mxu0 0
      %788 = vmatprep.subr.bf16.mxu0 0
      %789 = vmatpush2.bf16.msra.mxu0 0
      %790 = vmatprep.subr.bf16.mxu0 0
      %791 = vmatpush2.bf16.msra.mxu0 0
      %792 = vmatprep.subr.bf16.mxu0 0
      %793 = vmatpush2.bf16.msra.mxu0 0
      %794 = vmatprep.subr.bf16.mxu0 0
      %795 = vmatpush2.bf16.msra.mxu0 0
      %796 = vmatprep.subr.bf16.mxu0 0
      %797 = vmatpush2.bf16.msra.mxu0 0
      %798 = vmatprep.subr.bf16.mxu0 %v749
      %799 = vmatpush2.bf16.msra.mxu0 %v748
      %800 = vmatprep.mubr.bf16.mxu0 %v295
      %801 = vmatmul.mubr.bf16.gmra.mxu0 %v200
      %v802 = vpop.f32.mrf.mxu0
      %v803 = vadd.f32 %v195, %v802
      %v804 = vpop.f32.mrf.mxu0
      %v805 = vadd.f32 %v195, %v804
      %v806 = vpop.f32.mrf.mxu0
      %v807 = vpop.f32.mrf.mxu0
      %808 = vdwg.mxu0
      %809 = vst [vmem:[%s170 + $0x30] sm:$0xff] %v803
      %810 = vst [vmem:[%s170 + $0x38] sm:$0xff] %v805
      %v811 = vmul.f32 %v803, %v803
      %v812 = vmul.f32 %v805, %v805
      %v813 = vadd.f32 %v811, %v812
      %814 = vadd.xlane.f32.xlu0 %v813
      %v815 = vpop.xlane.xlu0 %814
      %v816 = vadd.f32 %v659, %v815
      %v817 = vld [vmem:[%s165 + $0xc0] sm:$0xff]
      %v818 = vld [vmem:[%s165 + $0xc8] sm:$0xff]
      %v819 = vld [vmem:[%s165 + $0xd0] sm:$0xff]
      %v820 = vld [vmem:[%s165 + $0xd8] sm:$0xff]
      %v821 = vld [vmem:[%s165 + $0xe0] sm:$0xff]
      %v822 = vld [vmem:[%s165 + $0xe8] sm:$0xff]
      %v823 = vld [vmem:[%s165 + $0xf0] sm:$0xff]
      %v824 = vld [vmem:[%s165 + $0xf8] sm:$0xff]
      %v825 = vld [vmem:[%s165 + $0x100] sm:$0xff]
      %v826 = vld [vmem:[%s165 + $0x108] sm:$0xff]
      %v827 = vld [vmem:[%s165 + $0x110] sm:$0xff]
      %v828 = vld [vmem:[%s165 + $0x118] sm:$0xff]
      %v829 = vld [vmem:[%s165 + $0x120] sm:$0xff]
      %v830 = vld [vmem:[%s165 + $0x128] sm:$0xff]
      %v831 = vld [vmem:[%s165 + $0x130] sm:$0xff]
      %v832 = vld [vmem:[%s165 + $0x138] sm:$0xff]
      %v833 = vld [vmem:[%s165 + $0x140] sm:$0xff]
      %v834 = vld [vmem:[%s165 + $0x148] sm:$0xff]
      %v853 = vunpack.c.l.b16 %v817
      %v854 = vunpack.c.h.b16 %v817
      %v855 = vunpack.c.l.b16 %v818
      %v856 = vunpack.c.h.b16 %v818
      %v857 = vunpack.c.l.b16 %v819
      %v858 = vunpack.c.h.b16 %v819
      %v859 = vunpack.c.l.b16 %v820
      %v860 = vunpack.c.h.b16 %v820
      %v861 = vunpack.c.l.b16 %v821
      %v862 = vunpack.c.h.b16 %v821
      %v863 = vunpack.c.l.b16 %v822
      %v864 = vunpack.c.h.b16 %v822
      %v865 = vunpack.c.l.b16 %v823
      %v866 = vunpack.c.h.b16 %v823
      %v867 = vunpack.c.l.b16 %v824
      %v868 = vunpack.c.h.b16 %v824
      %v869 = vunpack.c.l.b16 %v825
      %v870 = vunpack.c.h.b16 %v825
      %v871 = vunpack.c.l.b16 %v826
      %v872 = vunpack.c.h.b16 %v826
      %v873 = vunpack.c.l.b16 %v827
      %v874 = vunpack.c.h.b16 %v827
      %v875 = vunpack.c.l.b16 %v828
      %v876 = vunpack.c.h.b16 %v828
      %v877 = vunpack.c.l.b16 %v829
      %v878 = vunpack.c.h.b16 %v829
      %v879 = vunpack.c.l.b16 %v830
      %v880 = vunpack.c.h.b16 %v830
      %v881 = vunpack.c.l.b16 %v831
      %v882 = vunpack.c.h.b16 %v831
      %v883 = vunpack.c.l.b16 %v832
      %v884 = vunpack.c.h.b16 %v832
      %v885 = vunpack.c.l.b16 %v833
      %v886 = vunpack.c.h.b16 %v833
      %v887 = vunpack.c.l.b16 %v834
      %v888 = vunpack.c.h.b16 %v834
      %v889 = vpack.c.b16 %v855, %v853
      %v890 = vpack.c.b16 %v856, %v854
      %v891 = vpack.c.b16 %v859, %v857
      %v892 = vpack.c.b16 %v860, %v858
      %v893 = vpack.c.b16 %v863, %v861
      %v894 = vpack.c.b16 %v864, %v862
      %v895 = vpack.c.b16 %v867, %v865
      %v896 = vpack.c.b16 %v868, %v866
      %v897 = vpack.c.b16 %v871, %v869
      %v898 = vpack.c.b16 %v872, %v870
      %v899 = vpack.c.b16 %v875, %v873
      %v900 = vpack.c.b16 %v876, %v874
      %v901 = vpack.c.b16 %v879, %v877
      %v902 = vpack.c.b16 %v880, %v878
      %v903 = vpack.c.b16 %v883, %v881
      %v904 = vpack.c.b16 %v884, %v882
      %v905 = vpack.c.b16 %v887, %v885
      %v906 = vpack.c.b16 %v888, %v886
      %925 = vmatprep.subr.bf16.mxu0 %v904
      %926 = vmatpush1.bf16.msra.mxu0 %v903
      %927 = vmatprep.subr.bf16.mxu0 %v902
      %928 = vmatpush1.bf16.msra.mxu0 %v901
      %929 = vmatprep.subr.bf16.mxu0 %v900
      %930 = vmatpush1.bf16.msra.mxu0 %v899
      %931 = vmatprep.subr.bf16.mxu0 %v898
      %932 = vmatpush1.bf16.msra.mxu0 %v897
      %933 = vmatprep.subr.bf16.mxu0 %v896
      %934 = vmatpush1.bf16.msra.mxu0 %v895
      %935 = vmatprep.subr.bf16.mxu0 %v894
      %936 = vmatpush1.bf16.msra.mxu0 %v893
      %937 = vmatprep.subr.bf16.mxu0 %v892
      %938 = vmatpush1.bf16.msra.mxu0 %v891
      %939 = vmatprep.subr.bf16.mxu0 %v890
      %940 = vmatpush1.bf16.msra.mxu0 %v889
      %941 = vmatprep.subr.bf16.mxu0 0
      %942 = vmatpush2.bf16.msra.mxu0 0
      %943 = vmatprep.subr.bf16.mxu0 0
      %944 = vmatpush2.bf16.msra.mxu0 0
      %945 = vmatprep.subr.bf16.mxu0 0
      %946 = vmatpush2.bf16.msra.mxu0 0
      %947 = vmatprep.subr.bf16.mxu0 0
      %948 = vmatpush2.bf16.msra.mxu0 0
      %949 = vmatprep.subr.bf16.mxu0 0
      %950 = vmatpush2.bf16.msra.mxu0 0
      %951 = vmatprep.subr.bf16.mxu0 0
      %952 = vmatpush2.bf16.msra.mxu0 0
      %953 = vmatprep.subr.bf16.mxu0 0
      %954 = vmatpush2.bf16.msra.mxu0 0
      %955 = vmatprep.subr.bf16.mxu0 %v906
      %956 = vmatpush2.bf16.msra.mxu0 %v905
      %957 = vmatprep.mubr.bf16.mxu0 %v295
      %958 = vmatmul.mubr.bf16.gmra.mxu0 %v200
      %v959 = vpop.f32.mrf.mxu0
      %v960 = vadd.f32 %v195, %v959
      %v961 = vpop.f32.mrf.mxu0
      %v962 = vadd.f32 %v195, %v961
      %v963 = vpop.f32.mrf.mxu0
      %v964 = vpop.f32.mrf.mxu0
      %965 = vdwg.mxu0
      %966 = vst [vmem:[%s170 + $0x40] sm:$0xff] %v960
      %967 = vst [vmem:[%s170 + $0x48] sm:$0xff] %v962
      %v968 = vmul.f32 %v960, %v960
      %v969 = vmul.f32 %v962, %v962
      %v970 = vadd.f32 %v968, %v969
      %971 = vadd.xlane.f32.xlu0 %v970
      %v972 = vpop.xlane.xlu0 %971
      %v973 = vadd.f32 %v816, %v972
      %v974 = vld [vmem:[%s165 + $0xf0] sm:$0xff]
      %v975 = vld [vmem:[%s165 + $0xf8] sm:$0xff]
      %v976 = vld [vmem:[%s165 + $0x100] sm:$0xff]
      %v977 = vld [vmem:[%s165 + $0x108] sm:$0xff]
      %v978 = vld [vmem:[%s165 + $0x110] sm:$0xff]
      %v979 = vld [vmem:[%s165 + $0x118] sm:$0xff]
      %v980 = vld [vmem:[%s165 + $0x120] sm:$0xff]
      %v981 = vld [vmem:[%s165 + $0x128] sm:$0xff]
      %v982 = vld [vmem:[%s165 + $0x130] sm:$0xff]
      %v983 = vld [vmem:[%s165 + $0x138] sm:$0xff]
      %v984 = vld [vmem:[%s165 + $0x140] sm:$0xff]
      %v985 = vld [vmem:[%s165 + $0x148] sm:$0xff]
      %v986 = vld [vmem:[%s165 + $0x150] sm:$0xff]
      %v987 = vld [vmem:[%s165 + $0x158] sm:$0xff]
      %v988 = vld [vmem:[%s165 + $0x160] sm:$0xff]
      %v989 = vld [vmem:[%s165 + $0x168] sm:$0xff]
      %v990 = vld [vmem:[%s165 + $0x170] sm:$0xff]
      %v991 = vld [vmem:[%s165 + $0x178] sm:$0xff]
      %v1010 = vunpack.c.l.b16 %v974
      %v1011 = vunpack.c.h.b16 %v974
      %v1012 = vunpack.c.l.b16 %v975
      %v1013 = vunpack.c.h.b16 %v975
      %v1014 = vunpack.c.l.b16 %v976
      %v1015 = vunpack.c.h.b16 %v976
      %v1016 = vunpack.c.l.b16 %v977
      %v1017 = vunpack.c.h.b16 %v977
      %v1018 = vunpack.c.l.b16 %v978
      %v1019 = vunpack.c.h.b16 %v978
      %v1020 = vunpack.c.l.b16 %v979
      %v1021 = vunpack.c.h.b16 %v979
      %v1022 = vunpack.c.l.b16 %v980
      %v1023 = vunpack.c.h.b16 %v980
      %v1024 = vunpack.c.l.b16 %v981
      %v1025 = vunpack.c.h.b16 %v981
      %v1026 = vunpack.c.l.b16 %v982
      %v1027 = vunpack.c.h.b16 %v982
      %v1028 = vunpack.c.l.b16 %v983
      %v1029 = vunpack.c.h.b16 %v983
      %v1030 = vunpack.c.l.b16 %v984
      %v1031 = vunpack.c.h.b16 %v984
      %v1032 = vunpack.c.l.b16 %v985
      %v1033 = vunpack.c.h.b16 %v985
      %v1034 = vunpack.c.l.b16 %v986
      %v1035 = vunpack.c.h.b16 %v986
      %v1036 = vunpack.c.l.b16 %v987
      %v1037 = vunpack.c.h.b16 %v987
      %v1038 = vunpack.c.l.b16 %v988
      %v1039 = vunpack.c.h.b16 %v988
      %v1040 = vunpack.c.l.b16 %v989
      %v1041 = vunpack.c.h.b16 %v989
      %v1042 = vunpack.c.l.b16 %v990
      %v1043 = vunpack.c.h.b16 %v990
      %v1044 = vunpack.c.l.b16 %v991
      %v1045 = vunpack.c.h.b16 %v991
      %v1046 = vpack.c.b16 %v1012, %v1010
      %v1047 = vpack.c.b16 %v1013, %v1011
      %v1048 = vpack.c.b16 %v1016, %v1014
      %v1049 = vpack.c.b16 %v1017, %v1015
      %v1050 = vpack.c.b16 %v1020, %v1018
      %v1051 = vpack.c.b16 %v1021, %v1019
      %v1052 = vpack.c.b16 %v1024, %v1022
      %v1053 = vpack.c.b16 %v1025, %v1023
      %v1054 = vpack.c.b16 %v1028, %v1026
      %v1055 = vpack.c.b16 %v1029, %v1027
      %v1056 = vpack.c.b16 %v1032, %v1030
      %v1057 = vpack.c.b16 %v1033, %v1031
      %v1058 = vpack.c.b16 %v1036, %v1034
      %v1059 = vpack.c.b16 %v1037, %v1035
      %v1060 = vpack.c.b16 %v1040, %v1038
      %v1061 = vpack.c.b16 %v1041, %v1039
      %v1062 = vpack.c.b16 %v1044, %v1042
      %v1063 = vpack.c.b16 %v1045, %v1043
      %1082 = vmatprep.subr.bf16.mxu0 %v1061
      %1083 = vmatpush1.bf16.msra.mxu0 %v1060
      %1084 = vmatprep.subr.bf16.mxu0 %v1059
      %1085 = vmatpush1.bf16.msra.mxu0 %v1058
      %1086 = vmatprep.subr.bf16.mxu0 %v1057
      %1087 = vmatpush1.bf16.msra.mxu0 %v1056
      %1088 = vmatprep.subr.bf16.mxu0 %v1055
      %1089 = vmatpush1.bf16.msra.mxu0 %v1054
      %1090 = vmatprep.subr.bf16.mxu0 %v1053
      %1091 = vmatpush1.bf16.msra.mxu0 %v1052
      %1092 = vmatprep.subr.bf16.mxu0 %v1051
      %1093 = vmatpush1.bf16.msra.mxu0 %v1050
      %1094 = vmatprep.subr.bf16.mxu0 %v1049
      %1095 = vmatpush1.bf16.msra.mxu0 %v1048
      %1096 = vmatprep.subr.bf16.mxu0 %v1047
      %1097 = vmatpush1.bf16.msra.mxu0 %v1046
      %1098 = vmatprep.subr.bf16.mxu0 0
      %1099 = vmatpush2.bf16.msra.mxu0 0
      %1100 = vmatprep.subr.bf16.mxu0 0
      %1101 = vmatpush2.bf16.msra.mxu0 0
      %1102 = vmatprep.subr.bf16.mxu0 0
      %1103 = vmatpush2.bf16.msra.mxu0 0
      %1104 = vmatprep.subr.bf16.mxu0 0
      %1105 = vmatpush2.bf16.msra.mxu0 0
      %1106 = vmatprep.subr.bf16.mxu0 0
      %1107 = vmatpush2.bf16.msra.mxu0 0
      %1108 = vmatprep.subr.bf16.mxu0 0
      %1109 = vmatpush2.bf16.msra.mxu0 0
      %1110 = vmatprep.subr.bf16.mxu0 0
      %1111 = vmatpush2.bf16.msra.mxu0 0
      %1112 = vmatprep.subr.bf16.mxu0 %v1063
      %1113 = vmatpush2.bf16.msra.mxu0 %v1062
      %1114 = vmatprep.mubr.bf16.mxu0 %v295
      %1115 = vmatmul.mubr.bf16.gmra.mxu0 %v200
      %v1116 = vpop.f32.mrf.mxu0
      %v1117 = vadd.f32 %v195, %v1116
      %v1118 = vpop.f32.mrf.mxu0
      %v1119 = vadd.f32 %v195, %v1118
      %v1120 = vpop.f32.mrf.mxu0
      %v1121 = vpop.f32.mrf.mxu0
      %1122 = vdwg.mxu0
      %1123 = vst [vmem:[%s170 + $0x50] sm:$0xff] %v1117
      %1124 = vst [vmem:[%s170 + $0x58] sm:$0xff] %v1119
      %v1125 = vmul.f32 %v1117, %v1117
      %v1126 = vmul.f32 %v1119, %v1119
      %v1127 = vadd.f32 %v1125, %v1126
      %1128 = vadd.xlane.f32.xlu0 %v1127
      %v1129 = vpop.xlane.xlu0 %1128
      %v1130 = vadd.f32 %v973, %v1129
      %v1131 = vld [vmem:[%s165 + $0x120] sm:$0xff]
      %v1132 = vld [vmem:[%s165 + $0x128] sm:$0xff]
      %v1133 = vld [vmem:[%s165 + $0x130] sm:$0xff]
      %v1134 = vld [vmem:[%s165 + $0x138] sm:$0xff]
      %v1135 = vld [vmem:[%s165 + $0x140] sm:$0xff]
      %v1136 = vld [vmem:[%s165 + $0x148] sm:$0xff]
      %v1137 = vld [vmem:[%s165 + $0x150] sm:$0xff]
      %v1138 = vld [vmem:[%s165 + $0x158] sm:$0xff]
      %v1139 = vld [vmem:[%s165 + $0x160] sm:$0xff]
      %v1140 = vld [vmem:[%s165 + $0x168] sm:$0xff]
      %v1141 = vld [vmem:[%s165 + $0x170] sm:$0xff]
      %v1142 = vld [vmem:[%s165 + $0x178] sm:$0xff]
      %v1143 = vld [vmem:[%s165 + $0x180] sm:$0xff]
      %v1144 = vld [vmem:[%s165 + $0x188] sm:$0xff]
      %v1145 = vld [vmem:[%s165 + $0x190] sm:$0xff]
      %v1146 = vld [vmem:[%s165 + $0x198] sm:$0xff]
      %v1147 = vld [vmem:[%s165 + $0x1a0] sm:$0xff]
      %v1148 = vld [vmem:[%s165 + $0x1a8] sm:$0xff]
      %v1167 = vunpack.c.l.b16 %v1131
      %v1168 = vunpack.c.h.b16 %v1131
      %v1169 = vunpack.c.l.b16 %v1132
      %v1170 = vunpack.c.h.b16 %v1132
      %v1171 = vunpack.c.l.b16 %v1133
      %v1172 = vunpack.c.h.b16 %v1133
      %v1173 = vunpack.c.l.b16 %v1134
      %v1174 = vunpack.c.h.b16 %v1134
      %v1175 = vunpack.c.l.b16 %v1135
      %v1176 = vunpack.c.h.b16 %v1135
      %v1177 = vunpack.c.l.b16 %v1136
      %v1178 = vunpack.c.h.b16 %v1136
      %v1179 = vunpack.c.l.b16 %v1137
      %v1180 = vunpack.c.h.b16 %v1137
      %v1181 = vunpack.c.l.b16 %v1138
      %v1182 = vunpack.c.h.b16 %v1138
      %v1183 = vunpack.c.l.b16 %v1139
      %v1184 = vunpack.c.h.b16 %v1139
      %v1185 = vunpack.c.l.b16 %v1140
      %v1186 = vunpack.c.h.b16 %v1140
      %v1187 = vunpack.c.l.b16 %v1141
      %v1188 = vunpack.c.h.b16 %v1141
      %v1189 = vunpack.c.l.b16 %v1142
      %v1190 = vunpack.c.h.b16 %v1142
      %v1191 = vunpack.c.l.b16 %v1143
      %v1192 = vunpack.c.h.b16 %v1143
      %v1193 = vunpack.c.l.b16 %v1144
      %v1194 = vunpack.c.h.b16 %v1144
      %v1195 = vunpack.c.l.b16 %v1145
      %v1196 = vunpack.c.h.b16 %v1145
      %v1197 = vunpack.c.l.b16 %v1146
      %v1198 = vunpack.c.h.b16 %v1146
      %v1199 = vunpack.c.l.b16 %v1147
      %v1200 = vunpack.c.h.b16 %v1147
      %v1201 = vunpack.c.l.b16 %v1148
      %v1202 = vunpack.c.h.b16 %v1148
      %v1203 = vpack.c.b16 %v1169, %v1167
      %v1204 = vpack.c.b16 %v1170, %v1168
      %v1205 = vpack.c.b16 %v1173, %v1171
      %v1206 = vpack.c.b16 %v1174, %v1172
      %v1207 = vpack.c.b16 %v1177, %v1175
      %v1208 = vpack.c.b16 %v1178, %v1176
      %v1209 = vpack.c.b16 %v1181, %v1179
      %v1210 = vpack.c.b16 %v1182, %v1180
      %v1211 = vpack.c.b16 %v1185, %v1183
      %v1212 = vpack.c.b16 %v1186, %v1184
      %v1213 = vpack.c.b16 %v1189, %v1187
      %v1214 = vpack.c.b16 %v1190, %v1188
      %v1215 = vpack.c.b16 %v1193, %v1191
      %v1216 = vpack.c.b16 %v1194, %v1192
      %v1217 = vpack.c.b16 %v1197, %v1195
      %v1218 = vpack.c.b16 %v1198, %v1196
      %v1219 = vpack.c.b16 %v1201, %v1199
      %v1220 = vpack.c.b16 %v1202, %v1200
      %1239 = vmatprep.subr.bf16.mxu0 %v1218
      %1240 = vmatpush1.bf16.msra.mxu0 %v1217
      %1241 = vmatprep.subr.bf16.mxu0 %v1216
      %1242 = vmatpush1.bf16.msra.mxu0 %v1215
      %1243 = vmatprep.subr.bf16.mxu0 %v1214
      %1244 = vmatpush1.bf16.msra.mxu0 %v1213
      %1245 = vmatprep.subr.bf16.mxu0 %v1212
      %1246 = vmatpush1.bf16.msra.mxu0 %v1211
      %1247 = vmatprep.subr.bf16.mxu0 %v1210
      %1248 = vmatpush1.bf16.msra.mxu0 %v1209
      %1249 = vmatprep.subr.bf16.mxu0 %v1208
      %1250 = vmatpush1.bf16.msra.mxu0 %v1207
      %1251 = vmatprep.subr.bf16.mxu0 %v1206
      %1252 = vmatpush1.bf16.msra.mxu0 %v1205
      %1253 = vmatprep.subr.bf16.mxu0 %v1204
      %1254 = vmatpush1.bf16.msra.mxu0 %v1203
      %1255 = vmatprep.subr.bf16.mxu0 0
      %1256 = vmatpush2.bf16.msra.mxu0 0
      %1257 = vmatprep.subr.bf16.mxu0 0
      %1258 = vmatpush2.bf16.msra.mxu0 0
      %1259 = vmatprep.subr.bf16.mxu0 0
      %1260 = vmatpush2.bf16.msra.mxu0 0
      %1261 = vmatprep.subr.bf16.mxu0 0
      %1262 = vmatpush2.bf16.msra.mxu0 0
      %1263 = vmatprep.subr.bf16.mxu0 0
      %1264 = vmatpush2.bf16.msra.mxu0 0
      %1265 = vmatprep.subr.bf16.mxu0 0
      %1266 = vmatpush2.bf16.msra.mxu0 0
      %1267 = vmatprep.subr.bf16.mxu0 0
      %1268 = vmatpush2.bf16.msra.mxu0 0
      %1269 = vmatprep.subr.bf16.mxu0 %v1220
      %1270 = vmatpush2.bf16.msra.mxu0 %v1219
      %1271 = vmatprep.mubr.bf16.mxu0 %v295
      %1272 = vmatmul.mubr.bf16.gmra.mxu0 %v200
      %v1273 = vpop.f32.mrf.mxu0
      %v1274 = vadd.f32 %v195, %v1273
      %v1275 = vpop.f32.mrf.mxu0
      %v1276 = vadd.f32 %v195, %v1275
      %v1277 = vpop.f32.mrf.mxu0
      %v1278 = vpop.f32.mrf.mxu0
      %1279 = vdwg.mxu0
      %1280 = vst [vmem:[%s170 + $0x60] sm:$0xff] %v1274
      %1281 = vst [vmem:[%s170 + $0x68] sm:$0xff] %v1276
      %v1282 = vmul.f32 %v1274, %v1274
      %v1283 = vmul.f32 %v1276, %v1276
      %v1284 = vadd.f32 %v1282, %v1283
      %1285 = vadd.xlane.f32.xlu0 %v1284
      %v1286 = vpop.xlane.xlu0 %1285
      %v1287 = vadd.f32 %v1130, %v1286
      %v1288 = vld [vmem:[%s165 + $0x150] sm:$0xff]
      %v1289 = vld [vmem:[%s165 + $0x158] sm:$0xff]
      %v1290 = vld [vmem:[%s165 + $0x160] sm:$0xff]
      %v1291 = vld [vmem:[%s165 + $0x168] sm:$0xff]
      %v1292 = vld [vmem:[%s165 + $0x170] sm:$0xff]
      %v1293 = vld [vmem:[%s165 + $0x178] sm:$0xff]
      %v1294 = vld [vmem:[%s165 + $0x180] sm:$0xff]
      %v1295 = vld [vmem:[%s165 + $0x188] sm:$0xff]
      %v1296 = vld [vmem:[%s165 + $0x190] sm:$0xff]
      %v1297 = vld [vmem:[%s165 + $0x198] sm:$0xff]
      %v1298 = vld [vmem:[%s165 + $0x1a0] sm:$0xff]
      %v1299 = vld [vmem:[%s165 + $0x1a8] sm:$0xff]
      %v1300 = vld [vmem:[%s165 + $0x1b0] sm:$0xff]
      %v1301 = vld [vmem:[%s165 + $0x1b8] sm:$0xff]
      %v1302 = vld [vmem:[%s165 + $0x1c0] sm:$0xff]
      %v1303 = vld [vmem:[%s165 + $0x1c8] sm:$0xff]
      %v1304 = vld [vmem:[%s165 + $0x1d0] sm:$0xff]
      %v1305 = vld [vmem:[%s165 + $0x1d8] sm:$0xff]
      %v1324 = vunpack.c.l.b16 %v1288
      %v1325 = vunpack.c.h.b16 %v1288
      %v1326 = vunpack.c.l.b16 %v1289
      %v1327 = vunpack.c.h.b16 %v1289
      %v1328 = vunpack.c.l.b16 %v1290
      %v1329 = vunpack.c.h.b16 %v1290
      %v1330 = vunpack.c.l.b16 %v1291
      %v1331 = vunpack.c.h.b16 %v1291
      %v1332 = vunpack.c.l.b16 %v1292
      %v1333 = vunpack.c.h.b16 %v1292
      %v1334 = vunpack.c.l.b16 %v1293
      %v1335 = vunpack.c.h.b16 %v1293
      %v1336 = vunpack.c.l.b16 %v1294
      %v1337 = vunpack.c.h.b16 %v1294
      %v1338 = vunpack.c.l.b16 %v1295
      %v1339 = vunpack.c.h.b16 %v1295
      %v1340 = vunpack.c.l.b16 %v1296
      %v1341 = vunpack.c.h.b16 %v1296
      %v1342 = vunpack.c.l.b16 %v1297
      %v1343 = vunpack.c.h.b16 %v1297
      %v1344 = vunpack.c.l.b16 %v1298
      %v1345 = vunpack.c.h.b16 %v1298
      %v1346 = vunpack.c.l.b16 %v1299
      %v1347 = vunpack.c.h.b16 %v1299
      %v1348 = vunpack.c.l.b16 %v1300
      %v1349 = vunpack.c.h.b16 %v1300
      %v1350 = vunpack.c.l.b16 %v1301
      %v1351 = vunpack.c.h.b16 %v1301
      %v1352 = vunpack.c.l.b16 %v1302
      %v1353 = vunpack.c.h.b16 %v1302
      %v1354 = vunpack.c.l.b16 %v1303
      %v1355 = vunpack.c.h.b16 %v1303
      %v1356 = vunpack.c.l.b16 %v1304
      %v1357 = vunpack.c.h.b16 %v1304
      %v1358 = vunpack.c.l.b16 %v1305
      %v1359 = vunpack.c.h.b16 %v1305
      %v1360 = vpack.c.b16 %v1326, %v1324
      %v1361 = vpack.c.b16 %v1327, %v1325
      %v1362 = vpack.c.b16 %v1330, %v1328
      %v1363 = vpack.c.b16 %v1331, %v1329
      %v1364 = vpack.c.b16 %v1334, %v1332
      %v1365 = vpack.c.b16 %v1335, %v1333
      %v1366 = vpack.c.b16 %v1338, %v1336
      %v1367 = vpack.c.b16 %v1339, %v1337
      %v1368 = vpack.c.b16 %v1342, %v1340
      %v1369 = vpack.c.b16 %v1343, %v1341
      %v1370 = vpack.c.b16 %v1346, %v1344
      %v1371 = vpack.c.b16 %v1347, %v1345
      %v1372 = vpack.c.b16 %v1350, %v1348
      %v1373 = vpack.c.b16 %v1351, %v1349
      %v1374 = vpack.c.b16 %v1354, %v1352
      %v1375 = vpack.c.b16 %v1355, %v1353
      %v1376 = vpack.c.b16 %v1358, %v1356
      %v1377 = vpack.c.b16 %v1359, %v1357
      %1396 = vmatprep.subr.bf16.mxu0 %v1375
      %1397 = vmatpush1.bf16.msra.mxu0 %v1374
      %1398 = vmatprep.subr.bf16.mxu0 %v1373
      %1399 = vmatpush1.bf16.msra.mxu0 %v1372
      %1400 = vmatprep.subr.bf16.mxu0 %v1371
      %1401 = vmatpush1.bf16.msra.mxu0 %v1370
      %1402 = vmatprep.subr.bf16.mxu0 %v1369
      %1403 = vmatpush1.bf16.msra.mxu0 %v1368
      %1404 = vmatprep.subr.bf16.mxu0 %v1367
      %1405 = vmatpush1.bf16.msra.mxu0 %v1366
      %1406 = vmatprep.subr.bf16.mxu0 %v1365
      %1407 = vmatpush1.bf16.msra.mxu0 %v1364
      %1408 = vmatprep.subr.bf16.mxu0 %v1363
      %1409 = vmatpush1.bf16.msra.mxu0 %v1362
      %1410 = vmatprep.subr.bf16.mxu0 %v1361
      %1411 = vmatpush1.bf16.msra.mxu0 %v1360
      %1412 = vmatprep.subr.bf16.mxu0 0
      %1413 = vmatpush2.bf16.msra.mxu0 0
      %1414 = vmatprep.subr.bf16.mxu0 0
      %1415 = vmatpush2.bf16.msra.mxu0 0
      %1416 = vmatprep.subr.bf16.mxu0 0
      %1417 = vmatpush2.bf16.msra.mxu0 0
      %1418 = vmatprep.subr.bf16.mxu0 0
      %1419 = vmatpush2.bf16.msra.mxu0 0
      %1420 = vmatprep.subr.bf16.mxu0 0
      %1421 = vmatpush2.bf16.msra.mxu0 0
      %1422 = vmatprep.subr.bf16.mxu0 0
      %1423 = vmatpush2.bf16.msra.mxu0 0
      %1424 = vmatprep.subr.bf16.mxu0 0
      %1425 = vmatpush2.bf16.msra.mxu0 0
      %1426 = vmatprep.subr.bf16.mxu0 %v1377
      %1427 = vmatpush2.bf16.msra.mxu0 %v1376
      %1428 = vmatprep.mubr.bf16.mxu0 %v295
      %1429 = vmatmul.mubr.bf16.gmra.mxu0 %v200
      %v1430 = vpop.f32.mrf.mxu0
      %v1431 = vadd.f32 %v195, %v1430
      %v1432 = vpop.f32.mrf.mxu0
      %v1433 = vadd.f32 %v195, %v1432
      %v1434 = vpop.f32.mrf.mxu0
      %v1435 = vpop.f32.mrf.mxu0
      %1436 = vdwg.mxu0
      %1437 = vst [vmem:[%s170 + $0x70] sm:$0xff] %v1431
      %1438 = vst [vmem:[%s170 + $0x78] sm:$0xff] %v1433
      %v1439 = vmul.f32 %v1431, %v1431
      %v1440 = vmul.f32 %v1433, %v1433
      %v1441 = vadd.f32 %v1439, %v1440
      %1442 = vadd.xlane.f32.xlu0 %v1441
      %v1443 = vpop.xlane.xlu0 %1442
      %v1444 = vadd.f32 %v1287, %v1443
      %v1445 = vld [vmem:[%s165 + $0x180] sm:$0xff]
      %v1446 = vld [vmem:[%s165 + $0x188] sm:$0xff]
      %v1447 = vld [vmem:[%s165 + $0x190] sm:$0xff]
      %v1448 = vld [vmem:[%s165 + $0x198] sm:$0xff]
      %v1449 = vld [vmem:[%s165 + $0x1a0] sm:$0xff]
      %v1450 = vld [vmem:[%s165 + $0x1a8] sm:$0xff]
      %v1451 = vld [vmem:[%s165 + $0x1b0] sm:$0xff]
      %v1452 = vld [vmem:[%s165 + $0x1b8] sm:$0xff]
      %v1453 = vld [vmem:[%s165 + $0x1c0] sm:$0xff]
      %v1454 = vld [vmem:[%s165 + $0x1c8] sm:$0xff]
      %v1455 = vld [vmem:[%s165 + $0x1d0] sm:$0xff]
      %v1456 = vld [vmem:[%s165 + $0x1d8] sm:$0xff]
      %v1457 = vld [vmem:[%s165 + $0x1e0] sm:$0xff]
      %v1458 = vld [vmem:[%s165 + $0x1e8] sm:$0xff]
      %v1459 = vld [vmem:[%s165 + $0x1f0] sm:$0xff]
      %v1460 = vld [vmem:[%s165 + $0x1f8] sm:$0xff]
      %v1461 = vld [vmem:[%s165 + $0x200] sm:$0xff]
      %v1462 = vld [vmem:[%s165 + $0x208] sm:$0xff]
      %v1481 = vunpack.c.l.b16 %v1445
      %v1482 = vunpack.c.h.b16 %v1445
      %v1483 = vunpack.c.l.b16 %v1446
      %v1484 = vunpack.c.h.b16 %v1446
      %v1485 = vunpack.c.l.b16 %v1447
      %v1486 = vunpack.c.h.b16 %v1447
      %v1487 = vunpack.c.l.b16 %v1448
      %v1488 = vunpack.c.h.b16 %v1448
      %v1489 = vunpack.c.l.b16 %v1449
      %v1490 = vunpack.c.h.b16 %v1449
      %v1491 = vunpack.c.l.b16 %v1450
      %v1492 = vunpack.c.h.b16 %v1450
      %v1493 = vunpack.c.l.b16 %v1451
      %v1494 = vunpack.c.h.b16 %v1451
      %v1495 = vunpack.c.l.b16 %v1452
      %v1496 = vunpack.c.h.b16 %v1452
      %v1497 = vunpack.c.l.b16 %v1453
      %v1498 = vunpack.c.h.b16 %v1453
      %v1499 = vunpack.c.l.b16 %v1454
      %v1500 = vunpack.c.h.b16 %v1454
      %v1501 = vunpack.c.l.b16 %v1455
      %v1502 = vunpack.c.h.b16 %v1455
      %v1503 = vunpack.c.l.b16 %v1456
      %v1504 = vunpack.c.h.b16 %v1456
      %v1505 = vunpack.c.l.b16 %v1457
      %v1506 = vunpack.c.h.b16 %v1457
      %v1507 = vunpack.c.l.b16 %v1458
      %v1508 = vunpack.c.h.b16 %v1458
      %v1509 = vunpack.c.l.b16 %v1459
      %v1510 = vunpack.c.h.b16 %v1459
      %v1511 = vunpack.c.l.b16 %v1460
      %v1512 = vunpack.c.h.b16 %v1460
      %v1513 = vunpack.c.l.b16 %v1461
      %v1514 = vunpack.c.h.b16 %v1461
      %v1515 = vunpack.c.l.b16 %v1462
      %v1516 = vunpack.c.h.b16 %v1462
      %v1517 = vpack.c.b16 %v1483, %v1481
      %v1518 = vpack.c.b16 %v1484, %v1482
      %v1519 = vpack.c.b16 %v1487, %v1485
      %v1520 = vpack.c.b16 %v1488, %v1486
      %v1521 = vpack.c.b16 %v1491, %v1489
      %v1522 = vpack.c.b16 %v1492, %v1490
      %v1523 = vpack.c.b16 %v1495, %v1493
      %v1524 = vpack.c.b16 %v1496, %v1494
      %v1525 = vpack.c.b16 %v1499, %v1497
      %v1526 = vpack.c.b16 %v1500, %v1498
      %v1527 = vpack.c.b16 %v1503, %v1501
      %v1528 = vpack.c.b16 %v1504, %v1502
      %v1529 = vpack.c.b16 %v1507, %v1505
      %v1530 = vpack.c.b16 %v1508, %v1506
      %v1531 = vpack.c.b16 %v1511, %v1509
      %v1532 = vpack.c.b16 %v1512, %v1510
      %v1533 = vpack.c.b16 %v1515, %v1513
      %v1534 = vpack.c.b16 %v1516, %v1514
      %1553 = vmatprep.subr.bf16.mxu0 %v1532
      %1554 = vmatpush1.bf16.msra.mxu0 %v1531
      %1555 = vmatprep.subr.bf16.mxu0 %v1530
      %1556 = vmatpush1.bf16.msra.mxu0 %v1529
      %1557 = vmatprep.subr.bf16.mxu0 %v1528
      %1558 = vmatpush1.bf16.msra.mxu0 %v1527
      %1559 = vmatprep.subr.bf16.mxu0 %v1526
      %1560 = vmatpush1.bf16.msra.mxu0 %v1525
      %1561 = vmatprep.subr.bf16.mxu0 %v1524
      %1562 = vmatpush1.bf16.msra.mxu0 %v1523
      %1563 = vmatprep.subr.bf16.mxu0 %v1522
      %1564 = vmatpush1.bf16.msra.mxu0 %v1521
      %1565 = vmatprep.subr.bf16.mxu0 %v1520
      %1566 = vmatpush1.bf16.msra.mxu0 %v1519
      %1567 = vmatprep.subr.bf16.mxu0 %v1518
      %1568 = vmatpush1.bf16.msra.mxu0 %v1517
      %1569 = vmatprep.subr.bf16.mxu0 0
      %1570 = vmatpush2.bf16.msra.mxu0 0
      %1571 = vmatprep.subr.bf16.mxu0 0
      %1572 = vmatpush2.bf16.msra.mxu0 0
      %1573 = vmatprep.subr.bf16.mxu0 0
      %1574 = vmatpush2.bf16.msra.mxu0 0
      %1575 = vmatprep.subr.bf16.mxu0 0
      %1576 = vmatpush2.bf16.msra.mxu0 0
      %1577 = vmatprep.subr.bf16.mxu0 0
      %1578 = vmatpush2.bf16.msra.mxu0 0
      %1579 = vmatprep.subr.bf16.mxu0 0
      %1580 = vmatpush2.bf16.msra.mxu0 0
      %1581 = vmatprep.subr.bf16.mxu0 0
      %1582 = vmatpush2.bf16.msra.mxu0 0
      %1583 = vmatprep.subr.bf16.mxu0 %v1534
      %1584 = vmatpush2.bf16.msra.mxu0 %v1533
      %1585 = vmatprep.mubr.bf16.mxu0 %v295
      %1586 = vmatmul.mubr.bf16.gmra.mxu0 %v200
      %v1587 = vpop.f32.mrf.mxu0
      %v1588 = vadd.f32 %v195, %v1587
      %v1589 = vpop.f32.mrf.mxu0
      %v1590 = vadd.f32 %v195, %v1589
      %v1591 = vpop.f32.mrf.mxu0
      %v1592 = vpop.f32.mrf.mxu0
      %1593 = vdwg.mxu0
      %1594 = vst [vmem:[%s170 + $0x80] sm:$0xff] %v1588
      %1595 = vst [vmem:[%s170 + $0x88] sm:$0xff] %v1590
      %v1596 = vmul.f32 %v1588, %v1588
      %v1597 = vmul.f32 %v1590, %v1590
      %v1598 = vadd.f32 %v1596, %v1597
      %1599 = vadd.xlane.f32.xlu0 %v1598
      %v1600 = vpop.xlane.xlu0 %1599
      %v1601 = vadd.f32 %v1444, %v1600
      %v1602 = vld [vmem:[%s165 + $0x1b0] sm:$0xff]
      %v1603 = vld [vmem:[%s165 + $0x1b8] sm:$0xff]
      %v1604 = vld [vmem:[%s165 + $0x1c0] sm:$0xff]
      %v1605 = vld [vmem:[%s165 + $0x1c8] sm:$0xff]
      %v1606 = vld [vmem:[%s165 + $0x1d0] sm:$0xff]
      %v1607 = vld [vmem:[%s165 + $0x1d8] sm:$0xff]
      %v1608 = vld [vmem:[%s165 + $0x1e0] sm:$0xff]
      %v1609 = vld [vmem:[%s165 + $0x1e8] sm:$0xff]
      %v1610 = vld [vmem:[%s165 + $0x1f0] sm:$0xff]
      %v1611 = vld [vmem:[%s165 + $0x1f8] sm:$0xff]
      %v1612 = vld [vmem:[%s165 + $0x200] sm:$0xff]
      %v1613 = vld [vmem:[%s165 + $0x208] sm:$0xff]
      %v1614 = vld [vmem:[%s165 + $0x210] sm:$0xff]
      %v1615 = vld [vmem:[%s165 + $0x218] sm:$0xff]
      %v1616 = vld [vmem:[%s165 + $0x220] sm:$0xff]
      %v1617 = vld [vmem:[%s165 + $0x228] sm:$0xff]
      %v1618 = vld [vmem:[%s165 + $0x230] sm:$0xff]
      %v1619 = vld [vmem:[%s165 + $0x238] sm:$0xff]
      %v1638 = vunpack.c.l.b16 %v1602
      %v1639 = vunpack.c.h.b16 %v1602
      %v1640 = vunpack.c.l.b16 %v1603
      %v1641 = vunpack.c.h.b16 %v1603
      %v1642 = vunpack.c.l.b16 %v1604
      %v1643 = vunpack.c.h.b16 %v1604
      %v1644 = vunpack.c.l.b16 %v1605
      %v1645 = vunpack.c.h.b16 %v1605
      %v1646 = vunpack.c.l.b16 %v1606
      %v1647 = vunpack.c.h.b16 %v1606
      %v1648 = vunpack.c.l.b16 %v1607
      %v1649 = vunpack.c.h.b16 %v1607
      %v1650 = vunpack.c.l.b16 %v1608
      %v1651 = vunpack.c.h.b16 %v1608
      %v1652 = vunpack.c.l.b16 %v1609
      %v1653 = vunpack.c.h.b16 %v1609
      %v1654 = vunpack.c.l.b16 %v1610
      %v1655 = vunpack.c.h.b16 %v1610
      %v1656 = vunpack.c.l.b16 %v1611
      %v1657 = vunpack.c.h.b16 %v1611
      %v1658 = vunpack.c.l.b16 %v1612
      %v1659 = vunpack.c.h.b16 %v1612
      %v1660 = vunpack.c.l.b16 %v1613
      %v1661 = vunpack.c.h.b16 %v1613
      %v1662 = vunpack.c.l.b16 %v1614
      %v1663 = vunpack.c.h.b16 %v1614
      %v1664 = vunpack.c.l.b16 %v1615
      %v1665 = vunpack.c.h.b16 %v1615
      %v1666 = vunpack.c.l.b16 %v1616
      %v1667 = vunpack.c.h.b16 %v1616
      %v1668 = vunpack.c.l.b16 %v1617
      %v1669 = vunpack.c.h.b16 %v1617
      %v1670 = vunpack.c.l.b16 %v1618
      %v1671 = vunpack.c.h.b16 %v1618
      %v1672 = vunpack.c.l.b16 %v1619
      %v1673 = vunpack.c.h.b16 %v1619
      %v1674 = vpack.c.b16 %v1640, %v1638
      %v1675 = vpack.c.b16 %v1641, %v1639
      %v1676 = vpack.c.b16 %v1644, %v1642
      %v1677 = vpack.c.b16 %v1645, %v1643
      %v1678 = vpack.c.b16 %v1648, %v1646
      %v1679 = vpack.c.b16 %v1649, %v1647
      %v1680 = vpack.c.b16 %v1652, %v1650
      %v1681 = vpack.c.b16 %v1653, %v1651
      %v1682 = vpack.c.b16 %v1656, %v1654
      %v1683 = vpack.c.b16 %v1657, %v1655
      %v1684 = vpack.c.b16 %v1660, %v1658
      %v1685 = vpack.c.b16 %v1661, %v1659
      %v1686 = vpack.c.b16 %v1664, %v1662
      %v1687 = vpack.c.b16 %v1665, %v1663
      %v1688 = vpack.c.b16 %v1668, %v1666
      %v1689 = vpack.c.b16 %v1669, %v1667
      %v1690 = vpack.c.b16 %v1672, %v1670
      %v1691 = vpack.c.b16 %v1673, %v1671
      %1710 = vmatprep.subr.bf16.mxu0 %v1689
      %1711 = vmatpush1.bf16.msra.mxu0 %v1688
      %1712 = vmatprep.subr.bf16.mxu0 %v1687
      %1713 = vmatpush1.bf16.msra.mxu0 %v1686
      %1714 = vmatprep.subr.bf16.mxu0 %v1685
      %1715 = vmatpush1.bf16.msra.mxu0 %v1684
      %1716 = vmatprep.subr.bf16.mxu0 %v1683
      %1717 = vmatpush1.bf16.msra.mxu0 %v1682
      %1718 = vmatprep.subr.bf16.mxu0 %v1681
      %1719 = vmatpush1.bf16.msra.mxu0 %v1680
      %1720 = vmatprep.subr.bf16.mxu0 %v1679
      %1721 = vmatpush1.bf16.msra.mxu0 %v1678
      %1722 = vmatprep.subr.bf16.mxu0 %v1677
      %1723 = vmatpush1.bf16.msra.mxu0 %v1676
      %1724 = vmatprep.subr.bf16.mxu0 %v1675
      %1725 = vmatpush1.bf16.msra.mxu0 %v1674
      %1726 = vmatprep.subr.bf16.mxu0 0
      %1727 = vmatpush2.bf16.msra.mxu0 0
      %1728 = vmatprep.subr.bf16.mxu0 0
      %1729 = vmatpush2.bf16.msra.mxu0 0
      %1730 = vmatprep.subr.bf16.mxu0 0
      %1731 = vmatpush2.bf16.msra.mxu0 0
      %1732 = vmatprep.subr.bf16.mxu0 0
      %1733 = vmatpush2.bf16.msra.mxu0 0
      %1734 = vmatprep.subr.bf16.mxu0 0
      %1735 = vmatpush2.bf16.msra.mxu0 0
      %1736 = vmatprep.subr.bf16.mxu0 0
      %1737 = vmatpush2.bf16.msra.mxu0 0
      %1738 = vmatprep.subr.bf16.mxu0 0
      %1739 = vmatpush2.bf16.msra.mxu0 0
      %1740 = vmatprep.subr.bf16.mxu0 %v1691
      %1741 = vmatpush2.bf16.msra.mxu0 %v1690
      %1742 = vmatprep.mubr.bf16.mxu0 %v295
      %1743 = vmatmul.mubr.bf16.gmra.mxu0 %v200
      %v1744 = vpop.f32.mrf.mxu0
      %v1745 = vadd.f32 %v195, %v1744
      %v1746 = vpop.f32.mrf.mxu0
      %v1747 = vadd.f32 %v195, %v1746
      %v1748 = vpop.f32.mrf.mxu0
      %v1749 = vpop.f32.mrf.mxu0
      %1750 = vdwg.mxu0
      %1751 = vst [vmem:[%s170 + $0x90] sm:$0xff] %v1745
      %1752 = vst [vmem:[%s170 + $0x98] sm:$0xff] %v1747
      %v1753 = vmul.f32 %v1745, %v1745
      %v1754 = vmul.f32 %v1747, %v1747
      %v1755 = vadd.f32 %v1753, %v1754
      %1756 = vadd.xlane.f32.xlu0 %v1755
      %v1757 = vpop.xlane.xlu0 %1756
      %v1758 = vadd.f32 %v1601, %v1757
      %v1759 = vld [vmem:[%s165 + $0x1e0] sm:$0xff]
      %v1760 = vld [vmem:[%s165 + $0x1e8] sm:$0xff]
      %v1761 = vld [vmem:[%s165 + $0x1f0] sm:$0xff]
      %v1762 = vld [vmem:[%s165 + $0x1f8] sm:$0xff]
      %v1763 = vld [vmem:[%s165 + $0x200] sm:$0xff]
      %v1764 = vld [vmem:[%s165 + $0x208] sm:$0xff]
      %v1765 = vld [vmem:[%s165 + $0x210] sm:$0xff]
      %v1766 = vld [vmem:[%s165 + $0x218] sm:$0xff]
      %v1767 = vld [vmem:[%s165 + $0x220] sm:$0xff]
      %v1768 = vld [vmem:[%s165 + $0x228] sm:$0xff]
      %v1769 = vld [vmem:[%s165 + $0x230] sm:$0xff]
      %v1770 = vld [vmem:[%s165 + $0x238] sm:$0xff]
      %v1771 = vld [vmem:[%s165 + $0x240] sm:$0xff]
      %v1772 = vld [vmem:[%s165 + $0x248] sm:$0xff]
      %v1773 = vld [vmem:[%s165 + $0x250] sm:$0xff]
      %v1774 = vld [vmem:[%s165 + $0x258] sm:$0xff]
      %v1775 = vld [vmem:[%s165 + $0x260] sm:$0xff]
      %v1776 = vld [vmem:[%s165 + $0x268] sm:$0xff]
      %v1795 = vunpack.c.l.b16 %v1759
      %v1796 = vunpack.c.h.b16 %v1759
      %v1797 = vunpack.c.l.b16 %v1760
      %v1798 = vunpack.c.h.b16 %v1760
      %v1799 = vunpack.c.l.b16 %v1761
      %v1800 = vunpack.c.h.b16 %v1761
      %v1801 = vunpack.c.l.b16 %v1762
      %v1802 = vunpack.c.h.b16 %v1762
      %v1803 = vunpack.c.l.b16 %v1763
      %v1804 = vunpack.c.h.b16 %v1763
      %v1805 = vunpack.c.l.b16 %v1764
      %v1806 = vunpack.c.h.b16 %v1764
      %v1807 = vunpack.c.l.b16 %v1765
      %v1808 = vunpack.c.h.b16 %v1765
      %v1809 = vunpack.c.l.b16 %v1766
      %v1810 = vunpack.c.h.b16 %v1766
      %v1811 = vunpack.c.l.b16 %v1767
      %v1812 = vunpack.c.h.b16 %v1767
      %v1813 = vunpack.c.l.b16 %v1768
      %v1814 = vunpack.c.h.b16 %v1768
      %v1815 = vunpack.c.l.b16 %v1769
      %v1816 = vunpack.c.h.b16 %v1769
      %v1817 = vunpack.c.l.b16 %v1770
      %v1818 = vunpack.c.h.b16 %v1770
      %v1819 = vunpack.c.l.b16 %v1771
      %v1820 = vunpack.c.h.b16 %v1771
      %v1821 = vunpack.c.l.b16 %v1772
      %v1822 = vunpack.c.h.b16 %v1772
      %v1823 = vunpack.c.l.b16 %v1773
      %v1824 = vunpack.c.h.b16 %v1773
      %v1825 = vunpack.c.l.b16 %v1774
      %v1826 = vunpack.c.h.b16 %v1774
      %v1827 = vunpack.c.l.b16 %v1775
      %v1828 = vunpack.c.h.b16 %v1775
      %v1829 = vunpack.c.l.b16 %v1776
      %v1830 = vunpack.c.h.b16 %v1776
      %v1831 = vpack.c.b16 %v1797, %v1795
      %v1832 = vpack.c.b16 %v1798, %v1796
      %v1833 = vpack.c.b16 %v1801, %v1799
      %v1834 = vpack.c.b16 %v1802, %v1800
      %v1835 = vpack.c.b16 %v1805, %v1803
      %v1836 = vpack.c.b16 %v1806, %v1804
      %v1837 = vpack.c.b16 %v1809, %v1807
      %v1838 = vpack.c.b16 %v1810, %v1808
      %v1839 = vpack.c.b16 %v1813, %v1811
      %v1840 = vpack.c.b16 %v1814, %v1812
      %v1841 = vpack.c.b16 %v1817, %v1815
      %v1842 = vpack.c.b16 %v1818, %v1816
      %v1843 = vpack.c.b16 %v1821, %v1819
      %v1844 = vpack.c.b16 %v1822, %v1820
      %v1845 = vpack.c.b16 %v1825, %v1823
      %v1846 = vpack.c.b16 %v1826, %v1824
      %v1847 = vpack.c.b16 %v1829, %v1827
      %v1848 = vpack.c.b16 %v1830, %v1828
      %1867 = vmatprep.subr.bf16.mxu0 %v1846
      %1868 = vmatpush1.bf16.msra.mxu0 %v1845
      %1869 = vmatprep.subr.bf16.mxu0 %v1844
      %1870 = vmatpush1.bf16.msra.mxu0 %v1843
      %1871 = vmatprep.subr.bf16.mxu0 %v1842
      %1872 = vmatpush1.bf16.msra.mxu0 %v1841
      %1873 = vmatprep.subr.bf16.mxu0 %v1840
      %1874 = vmatpush1.bf16.msra.mxu0 %v1839
      %1875 = vmatprep.subr.bf16.mxu0 %v1838
      %1876 = vmatpush1.bf16.msra.mxu0 %v1837
      %1877 = vmatprep.subr.bf16.mxu0 %v1836
      %1878 = vmatpush1.bf16.msra.mxu0 %v1835
      %1879 = vmatprep.subr.bf16.mxu0 %v1834
      %1880 = vmatpush1.bf16.msra.mxu0 %v1833
      %1881 = vmatprep.subr.bf16.mxu0 %v1832
      %1882 = vmatpush1.bf16.msra.mxu0 %v1831
      %1883 = vmatprep.subr.bf16.mxu0 0
      %1884 = vmatpush2.bf16.msra.mxu0 0
      %1885 = vmatprep.subr.bf16.mxu0 0
      %1886 = vmatpush2.bf16.msra.mxu0 0
      %1887 = vmatprep.subr.bf16.mxu0 0
      %1888 = vmatpush2.bf16.msra.mxu0 0
      %1889 = vmatprep.subr.bf16.mxu0 0
      %1890 = vmatpush2.bf16.msra.mxu0 0
      %1891 = vmatprep.subr.bf16.mxu0 0
      %1892 = vmatpush2.bf16.msra.mxu0 0
      %1893 = vmatprep.subr.bf16.mxu0 0
      %1894 = vmatpush2.bf16.msra.mxu0 0
      %1895 = vmatprep.subr.bf16.mxu0 0
      %1896 = vmatpush2.bf16.msra.mxu0 0
      %1897 = vmatprep.subr.bf16.mxu0 %v1848
      %1898 = vmatpush2.bf16.msra.mxu0 %v1847
      %1899 = vmatprep.mubr.bf16.mxu0 %v295
      %1900 = vmatmul.mubr.bf16.gmra.mxu0 %v200
      %v1901 = vpop.f32.mrf.mxu0
      %v1902 = vadd.f32 %v195, %v1901
      %v1903 = vpop.f32.mrf.mxu0
      %v1904 = vadd.f32 %v195, %v1903
      %v1905 = vpop.f32.mrf.mxu0
      %v1906 = vpop.f32.mrf.mxu0
      %1907 = vdwg.mxu0
      %1908 = vst [vmem:[%s170 + $0xa0] sm:$0xff] %v1902
      %1909 = vst [vmem:[%s170 + $0xa8] sm:$0xff] %v1904
      %v1910 = vmul.f32 %v1902, %v1902
      %v1911 = vmul.f32 %v1904, %v1904
      %v1912 = vadd.f32 %v1910, %v1911
      %1913 = vadd.xlane.f32.xlu0 %v1912
      %v1914 = vpop.xlane.xlu0 %1913
      %v1915 = vadd.f32 %v1758, %v1914
      %v1916 = vld [vmem:[%s165 + $0x210] sm:$0xff]
      %v1917 = vld [vmem:[%s165 + $0x218] sm:$0xff]
      %v1918 = vld [vmem:[%s165 + $0x220] sm:$0xff]
      %v1919 = vld [vmem:[%s165 + $0x228] sm:$0xff]
      %v1920 = vld [vmem:[%s165 + $0x230] sm:$0xff]
      %v1921 = vld [vmem:[%s165 + $0x238] sm:$0xff]
      %v1922 = vld [vmem:[%s165 + $0x240] sm:$0xff]
      %v1923 = vld [vmem:[%s165 + $0x248] sm:$0xff]
      %v1924 = vld [vmem:[%s165 + $0x250] sm:$0xff]
      %v1925 = vld [vmem:[%s165 + $0x258] sm:$0xff]
      %v1926 = vld [vmem:[%s165 + $0x260] sm:$0xff]
      %v1927 = vld [vmem:[%s165 + $0x268] sm:$0xff]
      %v1928 = vld [vmem:[%s165 + $0x270] sm:$0xff]
      %v1929 = vld [vmem:[%s165 + $0x278] sm:$0xff]
      %v1930 = vld [vmem:[%s165 + $0x280] sm:$0xff]
      %v1931 = vld [vmem:[%s165 + $0x288] sm:$0xff]
      %v1932 = vld [vmem:[%s165 + $0x290] sm:$0xff]
      %v1933 = vld [vmem:[%s165 + $0x298] sm:$0xff]
      %v1952 = vunpack.c.l.b16 %v1916
      %v1953 = vunpack.c.h.b16 %v1916
      %v1954 = vunpack.c.l.b16 %v1917
      %v1955 = vunpack.c.h.b16 %v1917
      %v1956 = vunpack.c.l.b16 %v1918
      %v1957 = vunpack.c.h.b16 %v1918
      %v1958 = vunpack.c.l.b16 %v1919
      %v1959 = vunpack.c.h.b16 %v1919
      %v1960 = vunpack.c.l.b16 %v1920
      %v1961 = vunpack.c.h.b16 %v1920
      %v1962 = vunpack.c.l.b16 %v1921
      %v1963 = vunpack.c.h.b16 %v1921
      %v1964 = vunpack.c.l.b16 %v1922
      %v1965 = vunpack.c.h.b16 %v1922
      %v1966 = vunpack.c.l.b16 %v1923
      %v1967 = vunpack.c.h.b16 %v1923
      %v1968 = vunpack.c.l.b16 %v1924
      %v1969 = vunpack.c.h.b16 %v1924
      %v1970 = vunpack.c.l.b16 %v1925
      %v1971 = vunpack.c.h.b16 %v1925
      %v1972 = vunpack.c.l.b16 %v1926
      %v1973 = vunpack.c.h.b16 %v1926
      %v1974 = vunpack.c.l.b16 %v1927
      %v1975 = vunpack.c.h.b16 %v1927
      %v1976 = vunpack.c.l.b16 %v1928
      %v1977 = vunpack.c.h.b16 %v1928
      %v1978 = vunpack.c.l.b16 %v1929
      %v1979 = vunpack.c.h.b16 %v1929
      %v1980 = vunpack.c.l.b16 %v1930
      %v1981 = vunpack.c.h.b16 %v1930
      %v1982 = vunpack.c.l.b16 %v1931
      %v1983 = vunpack.c.h.b16 %v1931
      %v1984 = vunpack.c.l.b16 %v1932
      %v1985 = vunpack.c.h.b16 %v1932
      %v1986 = vunpack.c.l.b16 %v1933
      %v1987 = vunpack.c.h.b16 %v1933
      %v1988 = vpack.c.b16 %v1954, %v1952
      %v1989 = vpack.c.b16 %v1955, %v1953
      %v1990 = vpack.c.b16 %v1958, %v1956
      %v1991 = vpack.c.b16 %v1959, %v1957
      %v1992 = vpack.c.b16 %v1962, %v1960
      %v1993 = vpack.c.b16 %v1963, %v1961
      %v1994 = vpack.c.b16 %v1966, %v1964
      %v1995 = vpack.c.b16 %v1967, %v1965
      %v1996 = vpack.c.b16 %v1970, %v1968
      %v1997 = vpack.c.b16 %v1971, %v1969
      %v1998 = vpack.c.b16 %v1974, %v1972
      %v1999 = vpack.c.b16 %v1975, %v1973
      %v2000 = vpack.c.b16 %v1978, %v1976
      %v2001 = vpack.c.b16 %v1979, %v1977
      %v2002 = vpack.c.b16 %v1982, %v1980
      %v2003 = vpack.c.b16 %v1983, %v1981
      %v2004 = vpack.c.b16 %v1986, %v1984
      %v2005 = vpack.c.b16 %v1987, %v1985
      %2024 = vmatprep.subr.bf16.mxu0 %v2003
      %2025 = vmatpush1.bf16.msra.mxu0 %v2002
      %2026 = vmatprep.subr.bf16.mxu0 %v2001
      %2027 = vmatpush1.bf16.msra.mxu0 %v2000
      %2028 = vmatprep.subr.bf16.mxu0 %v1999
      %2029 = vmatpush1.bf16.msra.mxu0 %v1998
      %2030 = vmatprep.subr.bf16.mxu0 %v1997
      %2031 = vmatpush1.bf16.msra.mxu0 %v1996
      %2032 = vmatprep.subr.bf16.mxu0 %v1995
      %2033 = vmatpush1.bf16.msra.mxu0 %v1994
      %2034 = vmatprep.subr.bf16.mxu0 %v1993
      %2035 = vmatpush1.bf16.msra.mxu0 %v1992
      %2036 = vmatprep.subr.bf16.mxu0 %v1991
      %2037 = vmatpush1.bf16.msra.mxu0 %v1990
      %2038 = vmatprep.subr.bf16.mxu0 %v1989
      %2039 = vmatpush1.bf16.msra.mxu0 %v1988
      %2040 = vmatprep.subr.bf16.mxu0 0
      %2041 = vmatpush2.bf16.msra.mxu0 0
      %2042 = vmatprep.subr.bf16.mxu0 0
      %2043 = vmatpush2.bf16.msra.mxu0 0
      %2044 = vmatprep.subr.bf16.mxu0 0
      %2045 = vmatpush2.bf16.msra.mxu0 0
      %2046 = vmatprep.subr.bf16.mxu0 0
      %2047 = vmatpush2.bf16.msra.mxu0 0
      %2048 = vmatprep.subr.bf16.mxu0 0
      %2049 = vmatpush2.bf16.msra.mxu0 0
      %2050 = vmatprep.subr.bf16.mxu0 0
      %2051 = vmatpush2.bf16.msra.mxu0 0
      %2052 = vmatprep.subr.bf16.mxu0 0
      %2053 = vmatpush2.bf16.msra.mxu0 0
      %2054 = vmatprep.subr.bf16.mxu0 %v2005
      %2055 = vmatpush2.bf16.msra.mxu0 %v2004
      %2056 = vmatprep.mubr.bf16.mxu0 %v295
      %2057 = vmatmul.mubr.bf16.gmra.mxu0 %v200
      %v2058 = vpop.f32.mrf.mxu0
      %v2059 = vadd.f32 %v195, %v2058
      %v2060 = vpop.f32.mrf.mxu0
      %v2061 = vadd.f32 %v195, %v2060
      %v2062 = vpop.f32.mrf.mxu0
      %v2063 = vpop.f32.mrf.mxu0
      %2064 = vdwg.mxu0
      %2065 = vst [vmem:[%s170 + $0xb0] sm:$0xff] %v2059
      %2066 = vst [vmem:[%s170 + $0xb8] sm:$0xff] %v2061
      %v2067 = vmul.f32 %v2059, %v2059
      %v2068 = vmul.f32 %v2061, %v2061
      %v2069 = vadd.f32 %v2067, %v2068
      %2070 = vadd.xlane.f32.xlu0 %v2069
      %v2071 = vpop.xlane.xlu0 %2070
      %v2072 = vadd.f32 %v1915, %v2071
      %v2073 = vld [vmem:[%s165 + $0x240] sm:$0xff]
      %v2074 = vld [vmem:[%s165 + $0x248] sm:$0xff]
      %v2075 = vld [vmem:[%s165 + $0x250] sm:$0xff]
      %v2076 = vld [vmem:[%s165 + $0x258] sm:$0xff]
      %v2077 = vld [vmem:[%s165 + $0x260] sm:$0xff]
      %v2078 = vld [vmem:[%s165 + $0x268] sm:$0xff]
      %v2079 = vld [vmem:[%s165 + $0x270] sm:$0xff]
      %v2080 = vld [vmem:[%s165 + $0x278] sm:$0xff]
      %v2081 = vld [vmem:[%s165 + $0x280] sm:$0xff]
      %v2082 = vld [vmem:[%s165 + $0x288] sm:$0xff]
      %v2083 = vld [vmem:[%s165 + $0x290] sm:$0xff]
      %v2084 = vld [vmem:[%s165 + $0x298] sm:$0xff]
      %v2085 = vld [vmem:[%s165 + $0x2a0] sm:$0xff]
      %v2086 = vld [vmem:[%s165 + $0x2a8] sm:$0xff]
      %v2087 = vld [vmem:[%s165 + $0x2b0] sm:$0xff]
      %v2088 = vld [vmem:[%s165 + $0x2b8] sm:$0xff]
      %v2089 = vld [vmem:[%s165 + $0x2c0] sm:$0xff]
      %v2090 = vld [vmem:[%s165 + $0x2c8] sm:$0xff]
      %v2109 = vunpack.c.l.b16 %v2073
      %v2110 = vunpack.c.h.b16 %v2073
      %v2111 = vunpack.c.l.b16 %v2074
      %v2112 = vunpack.c.h.b16 %v2074
      %v2113 = vunpack.c.l.b16 %v2075
      %v2114 = vunpack.c.h.b16 %v2075
      %v2115 = vunpack.c.l.b16 %v2076
      %v2116 = vunpack.c.h.b16 %v2076
      %v2117 = vunpack.c.l.b16 %v2077
      %v2118 = vunpack.c.h.b16 %v2077
      %v2119 = vunpack.c.l.b16 %v2078
      %v2120 = vunpack.c.h.b16 %v2078
      %v2121 = vunpack.c.l.b16 %v2079
      %v2122 = vunpack.c.h.b16 %v2079
      %v2123 = vunpack.c.l.b16 %v2080
      %v2124 = vunpack.c.h.b16 %v2080
      %v2125 = vunpack.c.l.b16 %v2081
      %v2126 = vunpack.c.h.b16 %v2081
      %v2127 = vunpack.c.l.b16 %v2082
      %v2128 = vunpack.c.h.b16 %v2082
      %v2129 = vunpack.c.l.b16 %v2083
      %v2130 = vunpack.c.h.b16 %v2083
      %v2131 = vunpack.c.l.b16 %v2084
      %v2132 = vunpack.c.h.b16 %v2084
      %v2133 = vunpack.c.l.b16 %v2085
      %v2134 = vunpack.c.h.b16 %v2085
      %v2135 = vunpack.c.l.b16 %v2086
      %v2136 = vunpack.c.h.b16 %v2086
      %v2137 = vunpack.c.l.b16 %v2087
      %v2138 = vunpack.c.h.b16 %v2087
      %v2139 = vunpack.c.l.b16 %v2088
      %v2140 = vunpack.c.h.b16 %v2088
      %v2141 = vunpack.c.l.b16 %v2089
      %v2142 = vunpack.c.h.b16 %v2089
      %v2143 = vunpack.c.l.b16 %v2090
      %v2144 = vunpack.c.h.b16 %v2090
      %v2145 = vpack.c.b16 %v2111, %v2109
      %v2146 = vpack.c.b16 %v2112, %v2110
      %v2147 = vpack.c.b16 %v2115, %v2113
      %v2148 = vpack.c.b16 %v2116, %v2114
      %v2149 = vpack.c.b16 %v2119, %v2117
      %v2150 = vpack.c.b16 %v2120, %v2118
      %v2151 = vpack.c.b16 %v2123, %v2121
      %v2152 = vpack.c.b16 %v2124, %v2122
      %v2153 = vpack.c.b16 %v2127, %v2125
      %v2154 = vpack.c.b16 %v2128, %v2126
      %v2155 = vpack.c.b16 %v2131, %v2129
      %v2156 = vpack.c.b16 %v2132, %v2130
      %v2157 = vpack.c.b16 %v2135, %v2133
      %v2158 = vpack.c.b16 %v2136, %v2134
      %v2159 = vpack.c.b16 %v2139, %v2137
      %v2160 = vpack.c.b16 %v2140, %v2138
      %v2161 = vpack.c.b16 %v2143, %v2141
      %v2162 = vpack.c.b16 %v2144, %v2142
      %2181 = vmatprep.subr.bf16.mxu0 %v2160
      %2182 = vmatpush1.bf16.msra.mxu0 %v2159
      %2183 = vmatprep.subr.bf16.mxu0 %v2158
      %2184 = vmatpush1.bf16.msra.mxu0 %v2157
      %2185 = vmatprep.subr.bf16.mxu0 %v2156
      %2186 = vmatpush1.bf16.msra.mxu0 %v2155
      %2187 = vmatprep.subr.bf16.mxu0 %v2154
      %2188 = vmatpush1.bf16.msra.mxu0 %v2153
      %2189 = vmatprep.subr.bf16.mxu0 %v2152
      %2190 = vmatpush1.bf16.msra.mxu0 %v2151
      %2191 = vmatprep.subr.bf16.mxu0 %v2150
      %2192 = vmatpush1.bf16.msra.mxu0 %v2149
      %2193 = vmatprep.subr.bf16.mxu0 %v2148
      %2194 = vmatpush1.bf16.msra.mxu0 %v2147
      %2195 = vmatprep.subr.bf16.mxu0 %v2146
      %2196 = vmatpush1.bf16.msra.mxu0 %v2145
      %2197 = vmatprep.subr.bf16.mxu0 0
      %2198 = vmatpush2.bf16.msra.mxu0 0
      %2199 = vmatprep.subr.bf16.mxu0 0
      %2200 = vmatpush2.bf16.msra.mxu0 0
      %2201 = vmatprep.subr.bf16.mxu0 0
      %2202 = vmatpush2.bf16.msra.mxu0 0
      %2203 = vmatprep.subr.bf16.mxu0 0
      %2204 = vmatpush2.bf16.msra.mxu0 0
      %2205 = vmatprep.subr.bf16.mxu0 0
      %2206 = vmatpush2.bf16.msra.mxu0 0
      %2207 = vmatprep.subr.bf16.mxu0 0
      %2208 = vmatpush2.bf16.msra.mxu0 0
      %2209 = vmatprep.subr.bf16.mxu0 0
      %2210 = vmatpush2.bf16.msra.mxu0 0
      %2211 = vmatprep.subr.bf16.mxu0 %v2162
      %2212 = vmatpush2.bf16.msra.mxu0 %v2161
      %2213 = vmatprep.mubr.bf16.mxu0 %v295
      %2214 = vmatmul.mubr.bf16.gmra.mxu0 %v200
      %v2215 = vpop.f32.mrf.mxu0
      %v2216 = vadd.f32 %v195, %v2215
      %v2217 = vpop.f32.mrf.mxu0
      %v2218 = vadd.f32 %v195, %v2217
      %v2219 = vpop.f32.mrf.mxu0
      %v2220 = vpop.f32.mrf.mxu0
      %2221 = vdwg.mxu0
      %2222 = vst [vmem:[%s170 + $0xc0] sm:$0xff] %v2216
      %2223 = vst [vmem:[%s170 + $0xc8] sm:$0xff] %v2218
      %v2224 = vmul.f32 %v2216, %v2216
      %v2225 = vmul.f32 %v2218, %v2218
      %v2226 = vadd.f32 %v2224, %v2225
      %2227 = vadd.xlane.f32.xlu0 %v2226
      %v2228 = vpop.xlane.xlu0 %2227
      %v2229 = vadd.f32 %v2072, %v2228
      %v2230 = vld [vmem:[%s165 + $0x270] sm:$0xff]
      %v2231 = vld [vmem:[%s165 + $0x278] sm:$0xff]
      %v2232 = vld [vmem:[%s165 + $0x280] sm:$0xff]
      %v2233 = vld [vmem:[%s165 + $0x288] sm:$0xff]
      %v2234 = vld [vmem:[%s165 + $0x290] sm:$0xff]
      %v2235 = vld [vmem:[%s165 + $0x298] sm:$0xff]
      %v2236 = vld [vmem:[%s165 + $0x2a0] sm:$0xff]
      %v2237 = vld [vmem:[%s165 + $0x2a8] sm:$0xff]
      %v2238 = vld [vmem:[%s165 + $0x2b0] sm:$0xff]
      %v2239 = vld [vmem:[%s165 + $0x2b8] sm:$0xff]
      %v2240 = vld [vmem:[%s165 + $0x2c0] sm:$0xff]
      %v2241 = vld [vmem:[%s165 + $0x2c8] sm:$0xff]
      %v2242 = vld [vmem:[%s165 + $0x2d0] sm:$0xff]
      %v2243 = vld [vmem:[%s165 + $0x2d8] sm:$0xff]
      %v2244 = vld [vmem:[%s165 + $0x2e0] sm:$0xff]
      %v2245 = vld [vmem:[%s165 + $0x2e8] sm:$0xff]
      %v2246 = vld [vmem:[%s165 + $0x2f0] sm:$0xff]
      %v2247 = vld [vmem:[%s165 + $0x2f8] sm:$0xff]
      %v2266 = vunpack.c.l.b16 %v2230
      %v2267 = vunpack.c.h.b16 %v2230
      %v2268 = vunpack.c.l.b16 %v2231
      %v2269 = vunpack.c.h.b16 %v2231
      %v2270 = vunpack.c.l.b16 %v2232
      %v2271 = vunpack.c.h.b16 %v2232
      %v2272 = vunpack.c.l.b16 %v2233
      %v2273 = vunpack.c.h.b16 %v2233
      %v2274 = vunpack.c.l.b16 %v2234
      %v2275 = vunpack.c.h.b16 %v2234
      %v2276 = vunpack.c.l.b16 %v2235
      %v2277 = vunpack.c.h.b16 %v2235
      %v2278 = vunpack.c.l.b16 %v2236
      %v2279 = vunpack.c.h.b16 %v2236
      %v2280 = vunpack.c.l.b16 %v2237
      %v2281 = vunpack.c.h.b16 %v2237
      %v2282 = vunpack.c.l.b16 %v2238
      %v2283 = vunpack.c.h.b16 %v2238
      %v2284 = vunpack.c.l.b16 %v2239
      %v2285 = vunpack.c.h.b16 %v2239
      %v2286 = vunpack.c.l.b16 %v2240
      %v2287 = vunpack.c.h.b16 %v2240
      %v2288 = vunpack.c.l.b16 %v2241
      %v2289 = vunpack.c.h.b16 %v2241
      %v2290 = vunpack.c.l.b16 %v2242
      %v2291 = vunpack.c.h.b16 %v2242
      %v2292 = vunpack.c.l.b16 %v2243
      %v2293 = vunpack.c.h.b16 %v2243
      %v2294 = vunpack.c.l.b16 %v2244
      %v2295 = vunpack.c.h.b16 %v2244
      %v2296 = vunpack.c.l.b16 %v2245
      %v2297 = vunpack.c.h.b16 %v2245
      %v2298 = vunpack.c.l.b16 %v2246
      %v2299 = vunpack.c.h.b16 %v2246
      %v2300 = vunpack.c.l.b16 %v2247
      %v2301 = vunpack.c.h.b16 %v2247
      %v2302 = vpack.c.b16 %v2268, %v2266
      %v2303 = vpack.c.b16 %v2269, %v2267
      %v2304 = vpack.c.b16 %v2272, %v2270
      %v2305 = vpack.c.b16 %v2273, %v2271
      %v2306 = vpack.c.b16 %v2276, %v2274
      %v2307 = vpack.c.b16 %v2277, %v2275
      %v2308 = vpack.c.b16 %v2280, %v2278
      %v2309 = vpack.c.b16 %v2281, %v2279
      %v2310 = vpack.c.b16 %v2284, %v2282
      %v2311 = vpack.c.b16 %v2285, %v2283
      %v2312 = vpack.c.b16 %v2288, %v2286
      %v2313 = vpack.c.b16 %v2289, %v2287
      %v2314 = vpack.c.b16 %v2292, %v2290
      %v2315 = vpack.c.b16 %v2293, %v2291
      %v2316 = vpack.c.b16 %v2296, %v2294
      %v2317 = vpack.c.b16 %v2297, %v2295
      %v2318 = vpack.c.b16 %v2300, %v2298
      %v2319 = vpack.c.b16 %v2301, %v2299
      %2338 = vmatprep.subr.bf16.mxu0 %v2317
      %2339 = vmatpush1.bf16.msra.mxu0 %v2316
      %2340 = vmatprep.subr.bf16.mxu0 %v2315
      %2341 = vmatpush1.bf16.msra.mxu0 %v2314
      %2342 = vmatprep.subr.bf16.mxu0 %v2313
      %2343 = vmatpush1.bf16.msra.mxu0 %v2312
      %2344 = vmatprep.subr.bf16.mxu0 %v2311
      %2345 = vmatpush1.bf16.msra.mxu0 %v2310
      %2346 = vmatprep.subr.bf16.mxu0 %v2309
      %2347 = vmatpush1.bf16.msra.mxu0 %v2308
      %2348 = vmatprep.subr.bf16.mxu0 %v2307
      %2349 = vmatpush1.bf16.msra.mxu0 %v2306
      %2350 = vmatprep.subr.bf16.mxu0 %v2305
      %2351 = vmatpush1.bf16.msra.mxu0 %v2304
      %2352 = vmatprep.subr.bf16.mxu0 %v2303
      %2353 = vmatpush1.bf16.msra.mxu0 %v2302
      %2354 = vmatprep.subr.bf16.mxu0 0
      %2355 = vmatpush2.bf16.msra.mxu0 0
      %2356 = vmatprep.subr.bf16.mxu0 0
      %2357 = vmatpush2.bf16.msra.mxu0 0
      %2358 = vmatprep.subr.bf16.mxu0 0
      %2359 = vmatpush2.bf16.msra.mxu0 0
      %2360 = vmatprep.subr.bf16.mxu0 0
      %2361 = vmatpush2.bf16.msra.mxu0 0
      %2362 = vmatprep.subr.bf16.mxu0 0
      %2363 = vmatpush2.bf16.msra.mxu0 0
      %2364 = vmatprep.subr.bf16.mxu0 0
      %2365 = vmatpush2.bf16.msra.mxu0 0
      %2366 = vmatprep.subr.bf16.mxu0 0
      %2367 = vmatpush2.bf16.msra.mxu0 0
      %2368 = vmatprep.subr.bf16.mxu0 %v2319
      %2369 = vmatpush2.bf16.msra.mxu0 %v2318
      %2370 = vmatprep.mubr.bf16.mxu0 %v295
      %2371 = vmatmul.mubr.bf16.gmra.mxu0 %v200
      %v2372 = vpop.f32.mrf.mxu0
      %v2373 = vadd.f32 %v195, %v2372
      %v2374 = vpop.f32.mrf.mxu0
      %v2375 = vadd.f32 %v195, %v2374
      %v2376 = vpop.f32.mrf.mxu0
      %v2377 = vpop.f32.mrf.mxu0
      %2378 = vdwg.mxu0
      %2379 = vst [vmem:[%s170 + $0xd0] sm:$0xff] %v2373
      %2380 = vst [vmem:[%s170 + $0xd8] sm:$0xff] %v2375
      %v2381 = vmul.f32 %v2373, %v2373
      %v2382 = vmul.f32 %v2375, %v2375
      %v2383 = vadd.f32 %v2381, %v2382
      %2384 = vadd.xlane.f32.xlu0 %v2383
      %v2385 = vpop.xlane.xlu0 %2384
      %v2386 = vadd.f32 %v2229, %v2385
      %v2387 = vld [vmem:[%s165 + $0x2a0] sm:$0xff]
      %v2388 = vld [vmem:[%s165 + $0x2a8] sm:$0xff]
      %v2389 = vld [vmem:[%s165 + $0x2b0] sm:$0xff]
      %v2390 = vld [vmem:[%s165 + $0x2b8] sm:$0xff]
      %v2391 = vld [vmem:[%s165 + $0x2c0] sm:$0xff]
      %v2392 = vld [vmem:[%s165 + $0x2c8] sm:$0xff]
      %v2393 = vld [vmem:[%s165 + $0x2d0] sm:$0xff]
      %v2394 = vld [vmem:[%s165 + $0x2d8] sm:$0xff]
      %v2395 = vld [vmem:[%s165 + $0x2e0] sm:$0xff]
      %v2396 = vld [vmem:[%s165 + $0x2e8] sm:$0xff]
      %v2397 = vld [vmem:[%s165 + $0x2f0] sm:$0xff]
      %v2398 = vld [vmem:[%s165 + $0x2f8] sm:$0xff]
      %v2399 = vld [vmem:[%s165 + $0x300] sm:$0xff]
      %v2400 = vld [vmem:[%s165 + $0x308] sm:$0xff]
      %v2401 = vld [vmem:[%s165 + $0x310] sm:$0xff]
      %v2402 = vld [vmem:[%s165 + $0x318] sm:$0xff]
      %v2403 = vld [vmem:[%s165 + $0x320] sm:$0xff]
      %v2404 = vld [vmem:[%s165 + $0x328] sm:$0xff]
      %v2423 = vunpack.c.l.b16 %v2387
      %v2424 = vunpack.c.h.b16 %v2387
      %v2425 = vunpack.c.l.b16 %v2388
      %v2426 = vunpack.c.h.b16 %v2388
      %v2427 = vunpack.c.l.b16 %v2389
      %v2428 = vunpack.c.h.b16 %v2389
      %v2429 = vunpack.c.l.b16 %v2390
      %v2430 = vunpack.c.h.b16 %v2390
      %v2431 = vunpack.c.l.b16 %v2391
      %v2432 = vunpack.c.h.b16 %v2391
      %v2433 = vunpack.c.l.b16 %v2392
      %v2434 = vunpack.c.h.b16 %v2392
      %v2435 = vunpack.c.l.b16 %v2393
      %v2436 = vunpack.c.h.b16 %v2393
      %v2437 = vunpack.c.l.b16 %v2394
      %v2438 = vunpack.c.h.b16 %v2394
      %v2439 = vunpack.c.l.b16 %v2395
      %v2440 = vunpack.c.h.b16 %v2395
      %v2441 = vunpack.c.l.b16 %v2396
      %v2442 = vunpack.c.h.b16 %v2396
      %v2443 = vunpack.c.l.b16 %v2397
      %v2444 = vunpack.c.h.b16 %v2397
      %v2445 = vunpack.c.l.b16 %v2398
      %v2446 = vunpack.c.h.b16 %v2398
      %v2447 = vunpack.c.l.b16 %v2399
      %v2448 = vunpack.c.h.b16 %v2399
      %v2449 = vunpack.c.l.b16 %v2400
      %v2450 = vunpack.c.h.b16 %v2400
      %v2451 = vunpack.c.l.b16 %v2401
      %v2452 = vunpack.c.h.b16 %v2401
      %v2453 = vunpack.c.l.b16 %v2402
      %v2454 = vunpack.c.h.b16 %v2402
      %v2455 = vunpack.c.l.b16 %v2403
      %v2456 = vunpack.c.h.b16 %v2403
      %v2457 = vunpack.c.l.b16 %v2404
      %v2458 = vunpack.c.h.b16 %v2404
      %v2459 = vpack.c.b16 %v2425, %v2423
      %v2460 = vpack.c.b16 %v2426, %v2424
      %v2461 = vpack.c.b16 %v2429, %v2427
      %v2462 = vpack.c.b16 %v2430, %v2428
      %v2463 = vpack.c.b16 %v2433, %v2431
      %v2464 = vpack.c.b16 %v2434, %v2432
      %v2465 = vpack.c.b16 %v2437, %v2435
      %v2466 = vpack.c.b16 %v2438, %v2436
      %v2467 = vpack.c.b16 %v2441, %v2439
      %v2468 = vpack.c.b16 %v2442, %v2440
      %v2469 = vpack.c.b16 %v2445, %v2443
      %v2470 = vpack.c.b16 %v2446, %v2444
      %v2471 = vpack.c.b16 %v2449, %v2447
      %v2472 = vpack.c.b16 %v2450, %v2448
      %v2473 = vpack.c.b16 %v2453, %v2451
      %v2474 = vpack.c.b16 %v2454, %v2452
      %v2475 = vpack.c.b16 %v2457, %v2455
      %v2476 = vpack.c.b16 %v2458, %v2456
      %2495 = vmatprep.subr.bf16.mxu0 %v2474
      %2496 = vmatpush1.bf16.msra.mxu0 %v2473
      %2497 = vmatprep.subr.bf16.mxu0 %v2472
      %2498 = vmatpush1.bf16.msra.mxu0 %v2471
      %2499 = vmatprep.subr.bf16.mxu0 %v2470
      %2500 = vmatpush1.bf16.msra.mxu0 %v2469
      %2501 = vmatprep.subr.bf16.mxu0 %v2468
      %2502 = vmatpush1.bf16.msra.mxu0 %v2467
      %2503 = vmatprep.subr.bf16.mxu0 %v2466
      %2504 = vmatpush1.bf16.msra.mxu0 %v2465
      %2505 = vmatprep.subr.bf16.mxu0 %v2464
      %2506 = vmatpush1.bf16.msra.mxu0 %v2463
      %2507 = vmatprep.subr.bf16.mxu0 %v2462
      %2508 = vmatpush1.bf16.msra.mxu0 %v2461
      %2509 = vmatprep.subr.bf16.mxu0 %v2460
      %2510 = vmatpush1.bf16.msra.mxu0 %v2459
      %2511 = vmatprep.subr.bf16.mxu0 0
      %2512 = vmatpush2.bf16.msra.mxu0 0
      %2513 = vmatprep.subr.bf16.mxu0 0
      %2514 = vmatpush2.bf16.msra.mxu0 0
      %2515 = vmatprep.subr.bf16.mxu0 0
      %2516 = vmatpush2.bf16.msra.mxu0 0
      %2517 = vmatprep.subr.bf16.mxu0 0
      %2518 = vmatpush2.bf16.msra.mxu0 0
      %2519 = vmatprep.subr.bf16.mxu0 0
      %2520 = vmatpush2.bf16.msra.mxu0 0
      %2521 = vmatprep.subr.bf16.mxu0 0
      %2522 = vmatpush2.bf16.msra.mxu0 0
      %2523 = vmatprep.subr.bf16.mxu0 0
      %2524 = vmatpush2.bf16.msra.mxu0 0
      %2525 = vmatprep.subr.bf16.mxu0 %v2476
      %2526 = vmatpush2.bf16.msra.mxu0 %v2475
      %2527 = vmatprep.mubr.bf16.mxu0 %v295
      %2528 = vmatmul.mubr.bf16.gmra.mxu0 %v200
      %v2529 = vpop.f32.mrf.mxu0
      %v2530 = vadd.f32 %v195, %v2529
      %v2531 = vpop.f32.mrf.mxu0
      %v2532 = vadd.f32 %v195, %v2531
      %v2533 = vpop.f32.mrf.mxu0
      %v2534 = vpop.f32.mrf.mxu0
      %2535 = vdwg.mxu0
      %2536 = vst [vmem:[%s170 + $0xe0] sm:$0xff] %v2530
      %2537 = vst [vmem:[%s170 + $0xe8] sm:$0xff] %v2532
      %v2538 = vmul.f32 %v2530, %v2530
      %v2539 = vmul.f32 %v2532, %v2532
      %v2540 = vadd.f32 %v2538, %v2539
      %2541 = vadd.xlane.f32.xlu0 %v2540
      %v2542 = vpop.xlane.xlu0 %2541
      %v2543 = vadd.f32 %v2386, %v2542
      %v2544 = vld [vmem:[%s165 + $0x2d0] sm:$0xff]
      %v2545 = vld [vmem:[%s165 + $0x2d8] sm:$0xff]
      %v2546 = vld [vmem:[%s165 + $0x2e0] sm:$0xff]
      %v2547 = vld [vmem:[%s165 + $0x2e8] sm:$0xff]
      %v2548 = vld [vmem:[%s165 + $0x2f0] sm:$0xff]
      %v2549 = vld [vmem:[%s165 + $0x2f8] sm:$0xff]
      %v2550 = vld [vmem:[%s165 + $0x300] sm:$0xff]
      %v2551 = vld [vmem:[%s165 + $0x308] sm:$0xff]
      %v2552 = vld [vmem:[%s165 + $0x310] sm:$0xff]
      %v2553 = vld [vmem:[%s165 + $0x318] sm:$0xff]
      %v2554 = vld [vmem:[%s165 + $0x320] sm:$0xff]
      %v2555 = vld [vmem:[%s165 + $0x328] sm:$0xff]
      %v2556 = vld [vmem:[%s165 + $0x330] sm:$0xff]
      %v2557 = vld [vmem:[%s165 + $0x338] sm:$0xff]
      %v2558 = vld [vmem:[%s165 + $0x340] sm:$0xff]
      %v2559 = vld [vmem:[%s165 + $0x348] sm:$0xff]
      %v2560 = vld [vmem:[%s165 + $0x350] sm:$0xff]
      %v2561 = vld [vmem:[%s165 + $0x358] sm:$0xff]
      %v2580 = vunpack.c.l.b16 %v2544
      %v2581 = vunpack.c.h.b16 %v2544
      %v2582 = vunpack.c.l.b16 %v2545
      %v2583 = vunpack.c.h.b16 %v2545
      %v2584 = vunpack.c.l.b16 %v2546
      %v2585 = vunpack.c.h.b16 %v2546
      %v2586 = vunpack.c.l.b16 %v2547
      %v2587 = vunpack.c.h.b16 %v2547
      %v2588 = vunpack.c.l.b16 %v2548
      %v2589 = vunpack.c.h.b16 %v2548
      %v2590 = vunpack.c.l.b16 %v2549
      %v2591 = vunpack.c.h.b16 %v2549
      %v2592 = vunpack.c.l.b16 %v2550
      %v2593 = vunpack.c.h.b16 %v2550
      %v2594 = vunpack.c.l.b16 %v2551
      %v2595 = vunpack.c.h.b16 %v2551
      %v2596 = vunpack.c.l.b16 %v2552
      %v2597 = vunpack.c.h.b16 %v2552
      %v2598 = vunpack.c.l.b16 %v2553
      %v2599 = vunpack.c.h.b16 %v2553
      %v2600 = vunpack.c.l.b16 %v2554
      %v2601 = vunpack.c.h.b16 %v2554
      %v2602 = vunpack.c.l.b16 %v2555
      %v2603 = vunpack.c.h.b16 %v2555
      %v2604 = vunpack.c.l.b16 %v2556
      %v2605 = vunpack.c.h.b16 %v2556
      %v2606 = vunpack.c.l.b16 %v2557
      %v2607 = vunpack.c.h.b16 %v2557
      %v2608 = vunpack.c.l.b16 %v2558
      %v2609 = vunpack.c.h.b16 %v2558
      %v2610 = vunpack.c.l.b16 %v2559
      %v2611 = vunpack.c.h.b16 %v2559
      %v2612 = vunpack.c.l.b16 %v2560
      %v2613 = vunpack.c.h.b16 %v2560
      %v2614 = vunpack.c.l.b16 %v2561
      %v2615 = vunpack.c.h.b16 %v2561
      %v2616 = vpack.c.b16 %v2582, %v2580
      %v2617 = vpack.c.b16 %v2583, %v2581
      %v2618 = vpack.c.b16 %v2586, %v2584
      %v2619 = vpack.c.b16 %v2587, %v2585
      %v2620 = vpack.c.b16 %v2590, %v2588
      %v2621 = vpack.c.b16 %v2591, %v2589
      %v2622 = vpack.c.b16 %v2594, %v2592
      %v2623 = vpack.c.b16 %v2595, %v2593
      %v2624 = vpack.c.b16 %v2598, %v2596
      %v2625 = vpack.c.b16 %v2599, %v2597
      %v2626 = vpack.c.b16 %v2602, %v2600
      %v2627 = vpack.c.b16 %v2603, %v2601
      %v2628 = vpack.c.b16 %v2606, %v2604
      %v2629 = vpack.c.b16 %v2607, %v2605
      %v2630 = vpack.c.b16 %v2610, %v2608
      %v2631 = vpack.c.b16 %v2611, %v2609
      %v2632 = vpack.c.b16 %v2614, %v2612
      %v2633 = vpack.c.b16 %v2615, %v2613
      %2652 = vmatprep.subr.bf16.mxu0 %v2631
      %2653 = vmatpush1.bf16.msra.mxu0 %v2630
      %2654 = vmatprep.subr.bf16.mxu0 %v2629
      %2655 = vmatpush1.bf16.msra.mxu0 %v2628
      %2656 = vmatprep.subr.bf16.mxu0 %v2627
      %2657 = vmatpush1.bf16.msra.mxu0 %v2626
      %2658 = vmatprep.subr.bf16.mxu0 %v2625
      %2659 = vmatpush1.bf16.msra.mxu0 %v2624
      %2660 = vmatprep.subr.bf16.mxu0 %v2623
      %2661 = vmatpush1.bf16.msra.mxu0 %v2622
      %2662 = vmatprep.subr.bf16.mxu0 %v2621
      %2663 = vmatpush1.bf16.msra.mxu0 %v2620
      %2664 = vmatprep.subr.bf16.mxu0 %v2619
      %2665 = vmatpush1.bf16.msra.mxu0 %v2618
      %2666 = vmatprep.subr.bf16.mxu0 %v2617
      %2667 = vmatpush1.bf16.msra.mxu0 %v2616
      %2668 = vmatprep.subr.bf16.mxu0 0
      %2669 = vmatpush2.bf16.msra.mxu0 0
      %2670 = vmatprep.subr.bf16.mxu0 0
      %2671 = vmatpush2.bf16.msra.mxu0 0
      %2672 = vmatprep.subr.bf16.mxu0 0
      %2673 = vmatpush2.bf16.msra.mxu0 0
      %2674 = vmatprep.subr.bf16.mxu0 0
      %2675 = vmatpush2.bf16.msra.mxu0 0
      %2676 = vmatprep.subr.bf16.mxu0 0
      %2677 = vmatpush2.bf16.msra.mxu0 0
      %2678 = vmatprep.subr.bf16.mxu0 0
      %2679 = vmatpush2.bf16.msra.mxu0 0
      %2680 = vmatprep.subr.bf16.mxu0 0
      %2681 = vmatpush2.bf16.msra.mxu0 0
      %2682 = vmatprep.subr.bf16.mxu0 %v2633
      %2683 = vmatpush2.bf16.msra.mxu0 %v2632
      %2684 = vmatprep.mubr.bf16.mxu0 %v295
      %2685 = vmatmul.mubr.bf16.gmra.mxu0 %v200
      %v2686 = vpop.f32.mrf.mxu0
      %v2687 = vadd.f32 %v195, %v2686
      %v2688 = vpop.f32.mrf.mxu0
      %v2689 = vadd.f32 %v195, %v2688
      %v2690 = vpop.f32.mrf.mxu0
      %v2691 = vpop.f32.mrf.mxu0
      %2692 = vdwg.mxu0
      %2693 = vst [vmem:[%s170 + $0xf0] sm:$0xff] %v2687
      %2694 = vst [vmem:[%s170 + $0xf8] sm:$0xff] %v2689
      %v2695 = vmul.f32 %v2687, %v2687
      %v2696 = vmul.f32 %v2689, %v2689
      %v2697 = vadd.f32 %v2695, %v2696
      %2698 = vadd.xlane.f32.xlu0 %v2697
      %v2699 = vpop.xlane.xlu0 %2698
      %v2700 = vadd.f32 %v2543, %v2699
      %v2701 = vmul.f32 %v2700, 0.00024414063
      %v2702 = vld [vmem:[%s2] sm:$0xff]
      %v2703 = vadd.f32 %v2701, 1e-06
      %v2704 = vrsqrt.pop %v2703
      %v2705 = vmul.f32 %v2702, %v2704
      %v2706 = vld [vmem:[%s170] sm:$0xff]
      %v2707 = vld [vmem:[%s170 + $0x8] sm:$0xff]
      %2709 = vset.pattern.permute.xlu0 1
      %2710 = vperm.xlu0 %2709, %v2705
      %v2711 = vpop.permute.xlu0 %2710
      %v2713 = vmul.f32 %v2711, %v2706
      %v2714 = vmul.f32 %v2711, %v2707
      %2716 = vset.pattern.permute.xlu0 2
      %2717 = vperm.xlu0 %2716, %v2702
      %v2718 = vpop.permute.xlu0 %2717
      %v2720 = vadd.f32 %v2713, %v2718
      %v2721 = vadd.f32 %v2714, %v2718
      %2722 = vset.pattern.permute.xlu0 3
      %2723 = vperm.xlu0 %2722, %v2702
      %v2724 = vpop.permute.xlu0 %2723
      %v2726 = vmax.f32 %v2720, %v2724
      %v2727 = vmax.f32 %v2721, %v2724
      %2728 = vst [vmem:[%s170] sm:$0xff] %v2726
      %2729 = vst [vmem:[%s170 + $0x8] sm:$0xff] %v2727
      %v2730 = vld [vmem:[%s170 + $0x10] sm:$0xff]
      %v2731 = vld [vmem:[%s170 + $0x18] sm:$0xff]
      %v2732 = vmul.f32 %v2711, %v2730
      %v2733 = vmul.f32 %v2711, %v2731
      %v2734 = vadd.f32 %v2732, %v2718
      %v2735 = vadd.f32 %v2733, %v2718
      %v2736 = vmax.f32 %v2734, %v2724
      %v2737 = vmax.f32 %v2735, %v2724
      %2738 = vst [vmem:[%s170 + $0x10] sm:$0xff] %v2736
      %2739 = vst [vmem:[%s170 + $0x18] sm:$0xff] %v2737
      %v2740 = vld [vmem:[%s170 + $0x20] sm:$0xff]
      %v2741 = vld [vmem:[%s170 + $0x28] sm:$0xff]
      %v2742 = vmul.f32 %v2711, %v2740
      %v2743 = vmul.f32 %v2711, %v2741
      %v2744 = vadd.f32 %v2742, %v2718
      %v2745 = vadd.f32 %v2743, %v2718
      %v2746 = vmax.f32 %v2744, %v2724
      %v2747 = vmax.f32 %v2745, %v2724
      %2748 = vst [vmem:[%s170 + $0x20] sm:$0xff] %v2746
      %2749 = vst [vmem:[%s170 + $0x28] sm:$0xff] %v2747
      %v2750 = vld [vmem:[%s170 + $0x30] sm:$0xff]
      %v2751 = vld [vmem:[%s170 + $0x38] sm:$0xff]
      %v2752 = vmul.f32 %v2711, %v2750
      %v2753 = vmul.f32 %v2711, %v2751
      %v2754 = vadd.f32 %v2752, %v2718
      %v2755 = vadd.f32 %v2753, %v2718
      %v2756 = vmax.f32 %v2754, %v2724
      %v2757 = vmax.f32 %v2755, %v2724
      %2758 = vst [vmem:[%s170 + $0x30] sm:$0xff] %v2756
      %2759 = vst [vmem:[%s170 + $0x38] sm:$0xff] %v2757
      %v2760 = vld [vmem:[%s170 + $0x40] sm:$0xff]
      %v2761 = vld [vmem:[%s170 + $0x48] sm:$0xff]
      %v2762 = vmul.f32 %v2711, %v2760
      %v2763 = vmul.f32 %v2711, %v2761
      %v2764 = vadd.f32 %v2762, %v2718
      %v2765 = vadd.f32 %v2763, %v2718
      %v2766 = vmax.f32 %v2764, %v2724
      %v2767 = vmax.f32 %v2765, %v2724
      %2768 = vst [vmem:[%s170 + $0x40] sm:$0xff] %v2766
      %2769 = vst [vmem:[%s170 + $0x48] sm:$0xff] %v2767
      %v2770 = vld [vmem:[%s170 + $0x50] sm:$0xff]
      %v2771 = vld [vmem:[%s170 + $0x58] sm:$0xff]
      %v2772 = vmul.f32 %v2711, %v2770
      %v2773 = vmul.f32 %v2711, %v2771
      %v2774 = vadd.f32 %v2772, %v2718
      %v2775 = vadd.f32 %v2773, %v2718
      %v2776 = vmax.f32 %v2774, %v2724
      %v2777 = vmax.f32 %v2775, %v2724
      %2778 = vst [vmem:[%s170 + $0x50] sm:$0xff] %v2776
      %2779 = vst [vmem:[%s170 + $0x58] sm:$0xff] %v2777
      %v2780 = vld [vmem:[%s170 + $0x60] sm:$0xff]
      %v2781 = vld [vmem:[%s170 + $0x68] sm:$0xff]
      %v2782 = vmul.f32 %v2711, %v2780
      %v2783 = vmul.f32 %v2711, %v2781
      %v2784 = vadd.f32 %v2782, %v2718
      %v2785 = vadd.f32 %v2783, %v2718
      %v2786 = vmax.f32 %v2784, %v2724
      %v2787 = vmax.f32 %v2785, %v2724
      %2788 = vst [vmem:[%s170 + $0x60] sm:$0xff] %v2786
      %2789 = vst [vmem:[%s170 + $0x68] sm:$0xff] %v2787
      %v2790 = vld [vmem:[%s170 + $0x70] sm:$0xff]
      %v2791 = vld [vmem:[%s170 + $0x78] sm:$0xff]
      %v2792 = vmul.f32 %v2711, %v2790
      %v2793 = vmul.f32 %v2711, %v2791
      %v2794 = vadd.f32 %v2792, %v2718
      %v2795 = vadd.f32 %v2793, %v2718
      %v2796 = vmax.f32 %v2794, %v2724
      %v2797 = vmax.f32 %v2795, %v2724
      %2798 = vst [vmem:[%s170 + $0x70] sm:$0xff] %v2796
      %2799 = vst [vmem:[%s170 + $0x78] sm:$0xff] %v2797
      %v2800 = vld [vmem:[%s170 + $0x80] sm:$0xff]
      %v2801 = vld [vmem:[%s170 + $0x88] sm:$0xff]
      %v2802 = vmul.f32 %v2711, %v2800
      %v2803 = vmul.f32 %v2711, %v2801
      %v2804 = vadd.f32 %v2802, %v2718
      %v2805 = vadd.f32 %v2803, %v2718
      %v2806 = vmax.f32 %v2804, %v2724
      %v2807 = vmax.f32 %v2805, %v2724
      %2808 = vst [vmem:[%s170 + $0x80] sm:$0xff] %v2806
      %2809 = vst [vmem:[%s170 + $0x88] sm:$0xff] %v2807
      %v2810 = vld [vmem:[%s170 + $0x90] sm:$0xff]
      %v2811 = vld [vmem:[%s170 + $0x98] sm:$0xff]
      %v2812 = vmul.f32 %v2711, %v2810
      %v2813 = vmul.f32 %v2711, %v2811
      %v2814 = vadd.f32 %v2812, %v2718
      %v2815 = vadd.f32 %v2813, %v2718
      %v2816 = vmax.f32 %v2814, %v2724
      %v2817 = vmax.f32 %v2815, %v2724
      %2818 = vst [vmem:[%s170 + $0x90] sm:$0xff] %v2816
      %2819 = vst [vmem:[%s170 + $0x98] sm:$0xff] %v2817
      %v2820 = vld [vmem:[%s170 + $0xa0] sm:$0xff]
      %v2821 = vld [vmem:[%s170 + $0xa8] sm:$0xff]
      %v2822 = vmul.f32 %v2711, %v2820
      %v2823 = vmul.f32 %v2711, %v2821
      %v2824 = vadd.f32 %v2822, %v2718
      %v2825 = vadd.f32 %v2823, %v2718
      %v2826 = vmax.f32 %v2824, %v2724
      %v2827 = vmax.f32 %v2825, %v2724
      %2828 = vst [vmem:[%s170 + $0xa0] sm:$0xff] %v2826
      %2829 = vst [vmem:[%s170 + $0xa8] sm:$0xff] %v2827
      %v2830 = vld [vmem:[%s170 + $0xb0] sm:$0xff]
      %v2831 = vld [vmem:[%s170 + $0xb8] sm:$0xff]
      %v2832 = vmul.f32 %v2711, %v2830
      %v2833 = vmul.f32 %v2711, %v2831
      %v2834 = vadd.f32 %v2832, %v2718
      %v2835 = vadd.f32 %v2833, %v2718
      %v2836 = vmax.f32 %v2834, %v2724
      %v2837 = vmax.f32 %v2835, %v2724
      %2838 = vst [vmem:[%s170 + $0xb0] sm:$0xff] %v2836
      %2839 = vst [vmem:[%s170 + $0xb8] sm:$0xff] %v2837
      %v2840 = vld [vmem:[%s170 + $0xc0] sm:$0xff]
      %v2841 = vld [vmem:[%s170 + $0xc8] sm:$0xff]
      %v2842 = vmul.f32 %v2711, %v2840
      %v2843 = vmul.f32 %v2711, %v2841
      %v2844 = vadd.f32 %v2842, %v2718
      %v2845 = vadd.f32 %v2843, %v2718
      %v2846 = vmax.f32 %v2844, %v2724
      %v2847 = vmax.f32 %v2845, %v2724
      %2848 = vst [vmem:[%s170 + $0xc0] sm:$0xff] %v2846
      %2849 = vst [vmem:[%s170 + $0xc8] sm:$0xff] %v2847
      %v2850 = vld [vmem:[%s170 + $0xd0] sm:$0xff]
      %v2851 = vld [vmem:[%s170 + $0xd8] sm:$0xff]
      %v2852 = vmul.f32 %v2711, %v2850
      %v2853 = vmul.f32 %v2711, %v2851
      %v2854 = vadd.f32 %v2852, %v2718
      %v2855 = vadd.f32 %v2853, %v2718
      %v2856 = vmax.f32 %v2854, %v2724
      %v2857 = vmax.f32 %v2855, %v2724
      %2858 = vst [vmem:[%s170 + $0xd0] sm:$0xff] %v2856
      %2859 = vst [vmem:[%s170 + $0xd8] sm:$0xff] %v2857
      %v2860 = vld [vmem:[%s170 + $0xe0] sm:$0xff]
      %v2861 = vld [vmem:[%s170 + $0xe8] sm:$0xff]
      %v2862 = vmul.f32 %v2711, %v2860
      %v2863 = vmul.f32 %v2711, %v2861
      %v2864 = vadd.f32 %v2862, %v2718
      %v2865 = vadd.f32 %v2863, %v2718
      %v2866 = vmax.f32 %v2864, %v2724
      %v2867 = vmax.f32 %v2865, %v2724
      %2868 = vst [vmem:[%s170 + $0xe0] sm:$0xff] %v2866
      %2869 = vst [vmem:[%s170 + $0xe8] sm:$0xff] %v2867
      %v2870 = vld [vmem:[%s170 + $0xf0] sm:$0xff]
      %v2871 = vld [vmem:[%s170 + $0xf8] sm:$0xff]
      %v2872 = vmul.f32 %v2711, %v2870
      %v2873 = vmul.f32 %v2711, %v2871
      %v2874 = vadd.f32 %v2872, %v2718
      %v2875 = vadd.f32 %v2873, %v2718
      %v2876 = vmax.f32 %v2874, %v2724
      %v2877 = vmax.f32 %v2875, %v2724
      %2878 = vst [vmem:[%s170 + $0xf0] sm:$0xff] %v2876
      %2879 = vst [vmem:[%s170 + $0xf8] sm:$0xff] %v2877
      %p2880 = scmp.lt.s32.totalorder %s14, 1
      %s2881 = scalar_select %p2880, %s14, 1
      %s2882 = smul.addr %s2881, 32
      %s2883 = smul.addr %s2882, 8
      %s2884 = scalar_lea.vmem %s3, %s2883
      // Predicated region
      $region33: #{conv3d_frn_tlu.1} parent=31 // pred_check
        %p2885 = pneg %p100
      $region34: #{conv3d_frn_tlu.1} parent=31 // pred_check_branch
        %2887 = sbr.rel (%p2885) target = $region36
      $region35: #{conv3d_frn_tlu.1} parent=31 // pred_region
        _
      $region36: #{conv3d_frn_tlu.1} parent=31 // pred_fallthru
        _
    $region32: #{conv3d_frn_tlu.1} parent=5 // pred_fallthru
      _
    %p2888 = scmp.le.s32.totalorder 2, %s9
    // Predicated region
    $region37: #{conv3d_frn_tlu.1} parent=5 // pred_check
      %p2889 = pneg %p2888
    $region38: #{conv3d_frn_tlu.1} parent=5 // pred_check_branch
      %2891 = sbr.rel (%p2889) target = $region40
    $region39: #{conv3d_frn_tlu.1} parent=5 // pred_region
      %s2892 = ssub.s32 %s9, 2
      // Predicated region
      $region41: #{conv3d_frn_tlu.1} parent=39 // pred_check
        %p2893 = pneg %p106
      $region42: #{conv3d_frn_tlu.1} parent=39 // pred_check_branch
        %2895 = sbr.rel (%p2893) target = $region44
      $region43: #{conv3d_frn_tlu.1} parent=39 // pred_region
        %p2896 = scmp.lt.s32.totalorder %s15, 1
        %s2897 = scalar_select %p2896, %s15, 1
        %s2898 = smul.addr %s2897, 32
        %s2899 = smul.addr %s2898, 8
        %s2900 = scalar_lea.vmem %s3, %s2899
      $region44: #{conv3d_frn_tlu.1} parent=39 // pred_fallthru
        _
    $region40: #{conv3d_frn_tlu.1} parent=5 // pred_fallthru
      _
  $region6: #{conv3d_frn_tlu.1} parent=0 // loop_footer
    %s13 = sadd.s32 1, %s9
  $region7: #{conv3d_frn_tlu.1} parent=0 // loop_footer_branch
    %8 = sbr.rel target = $region3
  $region8: #{conv3d_frn_tlu.1} parent=0 // loop_exit
    _

</llo_original>
